<compile_context>
chip_gen: v6e
topology: v6e:2x2x1
jax: 0.10.0
libtpu: 0.0.40
codegen_flags: <defaults>
</compile_context>

<pallas_src>
import functools

import jax
import jax.numpy as jnp
from jax.experimental import pallas as pl
from jax.experimental.pallas import tpu as pltpu

LN_EPS = 1e-5         # PyTorch nn.LayerNorm default
NEG_INF = -1e30       # finite "masked" value (avoids NaN for fully-masked rows)


def _attention_layer_kernel(n_heads, batch_tile, mask_is_3d, exact_softmax,
                            x_ref, mask_ref, undo_ref,
                            wqkv_ref, w1_ref, b1_ref, w2_ref, b2_ref,
                            g1_ref, be1_ref, g2_ref, be2_ref,
                            o_ref, attn_ref):
    """One grid step processes `batch_tile` full sequences, flattened to a
    lane-dense (Bt*S, E) row slab so every dense matmul has a large M."""
    Bt = batch_tile
    H = n_heads

    x = x_ref[...]                                   # (Bt*S, E), compute dtype
    cd = x.dtype
    n_rows, E = x.shape
    S = n_rows // Bt
    d = E // H
    scale = float(d) ** -0.5

    xf = x.astype(jnp.float32)

    # ---- fused q/k/v projection: one (Bt*S, E) x (E, 3E) MXU pass
    qkv = jnp.dot(x, wqkv_ref[...], preferred_element_type=jnp.float32)
    q = qkv[:, :E].astype(cd)
    k = qkv[:, E:2 * E].astype(cd)
    v = qkv[:, 2 * E:].astype(cd)

    # ---- boolean keep-mask, computed once (no H-times tiling / copies)
    if mask_is_3d:
        keep = mask_ref[...] > 0.5                   # (Bt, S, S)
    else:
        keep = (mask_ref[...] > 0.5)[None]           # (1, S, S), broadcast on Bt

    # ---- per-head attention; H is a compile-time constant (static unroll).
    # Only one (Bt, S, S) score tensor is live at a time, and each head's
    # output is written straight into the (Bt*S, E) scratch slab.
    for h in range(H):
        lo, hi = h * d, (h + 1) * d
        qh = q[:, lo:hi].reshape(Bt, S, d)
        kh = k[:, lo:hi].reshape(Bt, S, d)
        vh = v[:, lo:hi].reshape(Bt, S, d)

        s = jnp.einsum('bqd,bkd->bqk', qh, kh,
                       preferred_element_type=jnp.float32) * scale   # (Bt,S,S)
        s = jnp.where(keep, s, NEG_INF)
        s = s - jnp.max(s, axis=-1, keepdims=True)
        p = jnp.exp(s)
        denom = jnp.sum(p, axis=-1, keepdims=True)
        if exact_softmax:
            p = p / denom
        else:
            p = p * pl.reciprocal(denom, approx=True)                # EUP slot

        oh = jnp.einsum('bqk,bkd->bqd', p.astype(cd), vh,
                        preferred_element_type=jnp.float32)          # (Bt,S,d)
        attn_ref[:, lo:hi] = oh.reshape(Bt * S, d)

    attn_out = attn_ref[...]                          # (Bt*S, E) f32

    # ---- residual + LayerNorm 1 (f32 statistics)
    h1 = xf + attn_out
    mu1 = jnp.mean(h1, axis=-1, keepdims=True)
    c1 = h1 - mu1
    var1 = jnp.mean(c1 * c1, axis=-1, keepdims=True)
    h1n = c1 * jax.lax.rsqrt(var1 + LN_EPS) * g1_ref[...] + be1_ref[...]

    # ---- FeedForward: Linear -> ReLU -> Linear (cd MXU operands, f32 accum)
    m_hid = jnp.dot(h1n.astype(cd), w1_ref[...],
                    preferred_element_type=jnp.float32) + b1_ref[...]
    m_hid = jnp.maximum(m_hid, 0.0)
    m_out = jnp.dot(m_hid.astype(cd), w2_ref[...],
                    preferred_element_type=jnp.float32) + b2_ref[...]

    # ---- residual + LayerNorm 2 (f32 statistics)
    h2 = h1n + m_out
    mu2 = jnp.mean(h2, axis=-1, keepdims=True)
    c2 = h2 - mu2
    var2 = jnp.mean(c2 * c2, axis=-1, keepdims=True)
    h2n = c2 * jax.lax.rsqrt(var2 + LN_EPS) * g2_ref[...] + be2_ref[...]

    # ---- undo_residual_mask: True -> reset token to the original input
    undo = undo_ref[0][..., None]                     # (Bt, S, 1)
    out = jnp.where(undo > 0.5,
                    xf.reshape(Bt, S, E),
                    h2n.reshape(Bt, S, E)).reshape(Bt * S, E)
    o_ref[...] = out.astype(o_ref.dtype)


def make_params(key, embed_dim, n_heads, mlp_hid_dim):
    """Deterministic synthetic parameters (uniform like PyTorch default init).
    Weights are stored in (in, out) orientation (y = x @ W)."""
    ks = jax.random.split(key, 7)

    def init(k, shape, fan_in):
        bound = 1.0 / (fan_in ** 0.5)
        return jax.random.uniform(k, shape, jnp.float32, -bound, bound)

    return dict(
        wq=init(ks[0], (embed_dim, embed_dim), embed_dim),
        wk=init(ks[1], (embed_dim, embed_dim), embed_dim),
        wv=init(ks[2], (embed_dim, embed_dim), embed_dim),
        w1=init(ks[3], (embed_dim, mlp_hid_dim), embed_dim),
        b1=init(ks[4], (1, mlp_hid_dim), embed_dim),
        w2=init(ks[5], (mlp_hid_dim, embed_dim), mlp_hid_dim),
        b2=init(ks[6], (1, embed_dim), mlp_hid_dim),
        g1=jnp.ones((1, embed_dim), jnp.float32),
        be1=jnp.zeros((1, embed_dim), jnp.float32),
        g2=jnp.ones((1, embed_dim), jnp.float32),
        be2=jnp.zeros((1, embed_dim), jnp.float32),
    )


def _vmem_capacity_bytes():
    try:
        return int(pltpu.get_tpu_info().vmem_capacity_bytes)
    except Exception:
        return 64 * 1024 * 1024          # safe lower bound (v7x physical VMEM)


def _vmem_estimate(Bt, S, E, Hd, H, in_bytes, cd_bytes, mask_is_3d):
    """Rough per-step live-VMEM accounting incl. intermediates."""
    del H
    rows = Bt * S
    io = rows * E * (in_bytes + 4) * 2                          # x + out blocks (2-buf)
    weights = ((3 * E * E + 2 * E * Hd) * cd_bytes + (Hd + 5 * E) * 4) * 2
    mask = (Bt if mask_is_3d else 1) * S * S * 2 * 2
    inter = (3 * rows * E            # fused qkv output (f32)
             + 3 * Bt * S * S        # scores / exp / weights of the live head
             + rows * Hd             # MLP hidden (f32)
             + 5 * rows * E) * 4     # attn scratch + residual / LN temporaries
    return io + weights + mask + inter


def _pick_batch_tile(B, S, E, Hd, H, in_bytes, cd_bytes, mask_is_3d, vmem_budget):
    best = 1
    for t in range(1, B + 1):
        if B % t:
            continue
        # keep tiled row-blocks sublane aligned (covers bf16 packing of 16)
        if t != B and (t * S) % 16 != 0:
            continue
        if t * S > 4096:
            continue
        if _vmem_estimate(t, S, E, Hd, H, in_bytes, cd_bytes,
                          mask_is_3d) > vmem_budget:
            continue
        best = t
    # Prefer >= 2 "parallel" grid steps (v7x has 2 TensorCores) as long as the
    # per-step M stays large enough to keep the MXU busy on 1-TC parts.
    if best == B and B % 2 == 0:
        half = B // 2
        if (half * S) % 16 == 0 and half * S >= 256:
            best = half
    return best


def attention_layer(x, params, n_heads, attn_mask=None, undo_residual_mask=None,
                    compute_dtype=jnp.bfloat16, batch_tile=None):
    """x: (B, S, E) -> (B, S, E).  `compute_dtype` is the MXU-operand and
    activation-streaming precision (bfloat16 by default; pass jnp.float32 for
    parity checks).  Accumulation / softmax / LayerNorm stats are float32."""
    B, S, E = x.shape
    Hd = params["w1"].shape[1]
    cd = jnp.dtype(compute_dtype)
    exact_softmax = (cd == jnp.dtype(jnp.float32))

    # ---- attention mask as a bf16 keep-mask (no f32 additive-bias stream).
    # TODO(synk): for a purely causal mask, generate it in-kernel with
    #             broadcasted_iota instead of streaming it from HBM at all.
    if attn_mask is None:
        mask = jnp.ones((S, S), jnp.bfloat16)
        mask_is_3d = False
    elif attn_mask.ndim == 2:
        mask = attn_mask.astype(jnp.bfloat16)
        mask_is_3d = False
    else:
        mask = attn_mask.astype(jnp.bfloat16)              # (B, S, S)
        mask_is_3d = True

    # ---- choose how many sequences to fuse per grid step (VMEM-aware).
    vmem_cap = _vmem_capacity_bytes()
    if batch_tile is None:
        batch_tile = _pick_batch_tile(B, S, E, Hd, n_heads, cd.itemsize,
                                      cd.itemsize, mask_is_3d,
                                      int(0.7 * vmem_cap))
    Bt = batch_tile
    n_steps = B // Bt

    # ---- activations streamed in compute dtype (halves HBM traffic for bf16).
    x2 = x.reshape(B * S, E).astype(cd)

    # ---- undo-residual mask as a small (n_steps, Bt, S) block (S on lanes).
    if undo_residual_mask is None:
        undo = jnp.zeros((n_steps, Bt, S), jnp.float32)
    else:
        undo = undo_residual_mask.astype(jnp.float32).reshape(n_steps, Bt, S)

    # ---- fused (E, 3E) qkv weight; all MXU operands in compute dtype.
    wqkv = jnp.concatenate([params["wq"], params["wk"], params["wv"]],
                           axis=1).astype(cd)
    w1 = params["w1"].astype(cd)
    w2 = params["w2"].astype(cd)

    kernel = functools.partial(_attention_layer_kernel, n_heads, Bt,
                               mask_is_3d, exact_softmax)

    # ---- advisory cost estimate for the XLA scheduler.
    flops = int(2 * B * S * E * (3 * E)            # fused qkv projection
                + 2 * B * S * S * E * 2            # QK^T + PV over all heads
                + 2 * B * S * E * Hd * 2)          # 2 MLP matmuls
    transcendentals = int(B * n_heads * S * S + 4 * B * S)
    bytes_accessed = int(B * S * E * (cd.itemsize + 4)
                         + (3 * E * E + 2 * E * Hd) * cd.itemsize
                         + mask.size * 2 + undo.size * 4
                         + (5 * E + Hd) * 4)
    cost = pl.CostEstimate(flops=flops, transcendentals=transcendentals,
                           bytes_accessed=bytes_accessed)

    est = _vmem_estimate(Bt, S, E, Hd, n_heads, cd.itemsize, cd.itemsize,
                         mask_is_3d)
    vmem_limit = int(min(int(0.85 * vmem_cap),
                         max(32 * 1024 * 1024, 2 * est)))

    operands = (x2, mask, undo, wqkv, w1, params["b1"], w2, params["b2"],
                params["g1"], params["be1"], params["g2"], params["be2"])

    def _run(single_buffer):
        def cspec(shape):
            idx = lambda b, n=len(shape): (0,) * n
            if single_buffer and hasattr(pl, "Buffered"):
                # constant index_map -> double-buffering buys nothing, halve
                # the weight residency (critical on v7x's 64 MiB VMEM)
                return pl.BlockSpec(shape, idx, pipeline_mode=pl.Buffered(1))
            return pl.BlockSpec(shape, idx)

        x_spec = pl.BlockSpec((Bt * S, E), lambda b: (b, 0))
        if mask_is_3d:
            mask_spec = pl.BlockSpec((Bt, S, S), lambda b: (b, 0, 0))
        else:
            mask_spec = cspec((S, S))
        undo_spec = pl.BlockSpec((1, Bt, S), lambda b: (b, 0, 0))

        in_specs = [
            x_spec,                 # x (flattened tokens, compute dtype)
            mask_spec,              # bf16 keep-mask
            undo_spec,              # undo-residual mask
            cspec((E, 3 * E)),      # fused wqkv
            cspec((E, Hd)),         # w1
            cspec((1, Hd)),         # b1
            cspec((Hd, E)),         # w2
            cspec((1, E)),          # b2
            cspec((1, E)),          # gamma1
            cspec((1, E)),          # beta1
            cspec((1, E)),          # gamma2
            cspec((1, E)),          # beta2
        ]
        out_specs = pl.BlockSpec((Bt * S, E), lambda b: (b, 0))

        return pl.pallas_call(
            kernel,
            out_shape=jax.ShapeDtypeStruct((B * S, E), x.dtype),
            grid_spec=pltpu.PrefetchScalarGridSpec(
                num_scalar_prefetch=0,
                grid=(n_steps,),
                in_specs=in_specs,
                out_specs=out_specs,
                scratch_shapes=[pltpu.VMEM((Bt * S, E), jnp.float32)],
            ),
            compiler_params=pltpu.CompilerParams(
                dimension_semantics=("parallel",),   # batch steps independent
                vmem_limit_bytes=vmem_limit),
            cost_estimate=cost,
        )(*operands)

    try:
        out2 = _run(single_buffer=True)
    except Exception:
        # TODO(synk): this JAX/Mosaic build rejects pl.Buffered(1) on the grid
        #             pipeline; fall back to default double-buffered blocks.
        out2 = _run(single_buffer=False)

    return out2.reshape(B, S, E)


def attention_layer_reference(x, params, n_heads, attn_mask=None,
                              undo_residual_mask=None):
    """Pure-JAX reference mirroring the PyTorch AttentionLayer forward."""
    B, S, E = x.shape
    H = n_heads
    d = E // H
    q = x @ params["wq"]
    k = x @ params["wk"]
    v = x @ params["wv"]

    def heads(t):
        return t.reshape(B, S, H, d).transpose(0, 2, 1, 3)

    qh, kh, vh = heads(q), heads(k), heads(v)
    s = jnp.einsum('bhqd,bhkd->bhqk', qh, kh) * (float(d) ** -0.5)
    if attn_mask is not None:
        keep = attn_mask[None, None] if attn_mask.ndim == 2 else attn_mask[:, None]
        s = jnp.where(keep, s, -jnp.inf)
    p = jax.nn.softmax(s, axis=-1)
    o = jnp.einsum('bhqk,bhkd->bhqd', p, vh).transpose(0, 2, 1, 3).reshape(B, S, E)

    def ln(t, g, b):
        mu = t.mean(-1, keepdims=True)
        var = ((t - mu) ** 2).mean(-1, keepdims=True)
        return (t - mu) * jax.lax.rsqrt(var + LN_EPS) * g.reshape(-1) + b.reshape(-1)

    h1 = ln(x + o, params["g1"], params["be1"])
    m_hid = jnp.maximum(h1 @ params["w1"] + params["b1"].reshape(-1), 0.0)
    h2 = ln(h1 + m_hid @ params["w2"] + params["b2"].reshape(-1),
            params["g2"], params["be2"])
    if undo_residual_mask is not None:
        h2 = jnp.where(undo_residual_mask[..., None], x, h2)
    return h2


if __name__ == "__main__":
    B, S, E = 2, 8, 32
    N_HEADS = 4
    MLP_HID = 64

    key = jax.random.PRNGKey(0)
    kx, kp = jax.random.split(key)
    x = jax.random.normal(kx, (B, S, E), jnp.float32)
    params = make_params(kp, E, N_HEADS, MLP_HID)

    # causal mask (True = attend), and reset the first token of each sequence
    attn_mask = jnp.tril(jnp.ones((S, S), dtype=bool))
    undo_mask = jnp.zeros((B, S), dtype=bool).at[:, 0].set(True)

    # f32 parity path: validate the kernel against a pure-JAX reference.
    out_f32 = attention_layer(x, params, N_HEADS, attn_mask=attn_mask,
                              undo_residual_mask=undo_mask,
                              compute_dtype=jnp.float32)
    ref = attention_layer_reference(x, params, N_HEADS, attn_mask=attn_mask,
                                    undo_residual_mask=undo_mask)
    jax.block_until_ready(out_f32)
    assert out_f32.shape == (B, S, E)
    assert bool(jnp.allclose(out_f32, ref, atol=2e-2, rtol=2e-2))

    # default bf16 performance path.
    out_bf16 = attention_layer(x, params, N_HEADS, attn_mask=attn_mask,
                               undo_residual_mask=undo_mask)
    jax.block_until_ready(out_bf16)
    assert out_bf16.shape == (B, S, E)
    assert bool(jnp.all(jnp.isfinite(out_bf16)))

    print("KERNEL_OK")
</pallas_src>

<mosaic_0001>
module attributes {stable_mosaic.version = 11 : i64} {
  func.func @_attention_layer_kernel(%arg0: i32, %arg1: memref<16x32xf32, #tpu.memory_space<vmem>>, %arg2: memref<8x8xbf16, #tpu.memory_space<vmem>>, %arg3: memref<1x2x8xf32, #tpu.memory_space<vmem>>, %arg4: memref<32x96xf32, #tpu.memory_space<vmem>>, %arg5: memref<32x64xf32, #tpu.memory_space<vmem>>, %arg6: memref<1x64xf32, #tpu.memory_space<vmem>>, %arg7: memref<64x32xf32, #tpu.memory_space<vmem>>, %arg8: memref<1x32xf32, #tpu.memory_space<vmem>>, %arg9: memref<1x32xf32, #tpu.memory_space<vmem>>, %arg10: memref<1x32xf32, #tpu.memory_space<vmem>>, %arg11: memref<1x32xf32, #tpu.memory_space<vmem>>, %arg12: memref<1x32xf32, #tpu.memory_space<vmem>>, %arg13: memref<16x32xf32, #tpu.memory_space<vmem>>, %arg14: memref<16x32xf32, #tpu.memory_space<vmem>>) attributes {dimension_semantics = [#tpu.dimension_semantics<parallel>], iteration_bounds = array<i64: 1>, scalar_prefetch = 0 : i64, scratch_operands = 1 : i64, tpu.core_type = #tpu.core_type<tc>, window_params = [{transform_indices = @transform_0, window_bounds = array<i64: 16, 32>}, {pipeline_mode = #tpu.pipeline_mode<synchronous>, transform_indices = @transform_1, window_bounds = array<i64: 8, 8>}, {transform_indices = @transform_2, window_bounds = array<i64: 1, 2, 8>}, {pipeline_mode = #tpu.pipeline_mode<synchronous>, transform_indices = @transform_3, window_bounds = array<i64: 32, 96>}, {pipeline_mode = #tpu.pipeline_mode<synchronous>, transform_indices = @transform_4, window_bounds = array<i64: 32, 64>}, {pipeline_mode = #tpu.pipeline_mode<synchronous>, transform_indices = @transform_5, window_bounds = array<i64: 1, 64>}, {pipeline_mode = #tpu.pipeline_mode<synchronous>, transform_indices = @transform_6, window_bounds = array<i64: 64, 32>}, {pipeline_mode = #tpu.pipeline_mode<synchronous>, transform_indices = @transform_7, window_bounds = array<i64: 1, 32>}, {pipeline_mode = #tpu.pipeline_mode<synchronous>, transform_indices = @transform_8, window_bounds = array<i64: 1, 32>}, {pipeline_mode = #tpu.pipeline_mode<synchronous>, transform_indices = @transform_9, window_bounds = array<i64: 1, 32>}, {pipeline_mode = #tpu.pipeline_mode<synchronous>, transform_indices = @transform_10, window_bounds = array<i64: 1, 32>}, {pipeline_mode = #tpu.pipeline_mode<synchronous>, transform_indices = @transform_11, window_bounds = array<i64: 1, 32>}, {transform_indices = @transform_12, window_bounds = array<i64: 16, 32>}]} {
    %c0 = arith.constant 0 : index
    %c0_0 = arith.constant 0 : index
    %0 = vector.load %arg1[%c0, %c0_0] : memref<16x32xf32, #tpu.memory_space<vmem>>, vector<16x32xf32>
    %c0_1 = arith.constant 0 : index
    %c0_2 = arith.constant 0 : index
    %1 = vector.load %arg4[%c0_1, %c0_2] : memref<32x96xf32, #tpu.memory_space<vmem>>, vector<32x96xf32>
    %cst = arith.constant dense<0.000000e+00> : vector<16x96xf32>
    %2 = tpu.matmul %0, %1, %cst {dimension_numbers = #tpu.dot_dimension_numbers<[1], [0], [0], [1], [0, 0, 1, 1], [], []>} : vector<16x32xf32>, vector<32x96xf32>, vector<16x96xf32> -> vector<16x96xf32>
    %3 = vector.extract_strided_slice %2 {offsets = [0, 0], sizes = [16, 32], strides = [1, 1]} : vector<16x96xf32> to vector<16x32xf32>
    %4 = vector.extract_strided_slice %2 {offsets = [0, 32], sizes = [16, 32], strides = [1, 1]} : vector<16x96xf32> to vector<16x32xf32>
    %5 = vector.extract_strided_slice %2 {offsets = [0, 64], sizes = [16, 32], strides = [1, 1]} : vector<16x96xf32> to vector<16x32xf32>
    %c0_3 = arith.constant 0 : index
    %c0_4 = arith.constant 0 : index
    %6 = vector.load %arg2[%c0_3, %c0_4] : memref<8x8xbf16, #tpu.memory_space<vmem>>, vector<8x8xbf16>
    %cst_5 = arith.constant 5.000000e-01 : bf16
    %7 = vector.broadcast %cst_5 : bf16 to vector<8x8xbf16>
    %8 = arith.cmpf ogt, %6, %7 : vector<8x8xbf16>
    %9 = vector.shape_cast %8 : vector<8x8xi1> to vector<1x8x8xi1>
    %10 = vector.extract_strided_slice %3 {offsets = [0, 0], sizes = [16, 8], strides = [1, 1]} : vector<16x32xf32> to vector<16x8xf32>
    %11 = vector.shape_cast %10 : vector<16x8xf32> to vector<2x8x8xf32>
    %12 = vector.extract_strided_slice %4 {offsets = [0, 0], sizes = [16, 8], strides = [1, 1]} : vector<16x32xf32> to vector<16x8xf32>
    %13 = vector.shape_cast %12 : vector<16x8xf32> to vector<2x8x8xf32>
    %14 = vector.extract_strided_slice %5 {offsets = [0, 0], sizes = [16, 8], strides = [1, 1]} : vector<16x32xf32> to vector<16x8xf32>
    %15 = vector.shape_cast %14 : vector<16x8xf32> to vector<2x8x8xf32>
    "tpu.trace_start"() <{level = 10 : i32, message = "bqd,bkd->bqk"}> : () -> ()
    %cst_6 = arith.constant dense<0.000000e+00> : vector<2x8x8xf32>
    %16 = tpu.matmul %11, %13, %cst_6 {dimension_numbers = #tpu.dot_dimension_numbers<[2], [2], [1], [1], [0, 0, 0, 1, 1, 1], [0], [0]>} : vector<2x8x8xf32>, vector<2x8x8xf32>, vector<2x8x8xf32> -> vector<2x8x8xf32>
    "tpu.trace_stop"() : () -> ()
    %cst_7 = arith.constant 0.353553385 : f32
    %17 = vector.broadcast %cst_7 : f32 to vector<2x8x8xf32>
    %18 = arith.mulf %16, %17 : vector<2x8x8xf32>
    %cst_8 = arith.constant -1.000000e+30 : f32
    %19 = vector.shape_cast %9 : vector<1x8x8xi1> to vector<1x8x8xi1>
    %20 = vector.broadcast %19 : vector<1x8x8xi1> to vector<2x8x8xi1>
    %21 = vector.broadcast %cst_8 : f32 to vector<2x8x8xf32>
    %22 = arith.select %20, %18, %21 : vector<2x8x8xi1>, vector<2x8x8xf32>
    %cst_9 = arith.constant dense<0xFF800000> : vector<2x8xf32>
    %23 = vector.multi_reduction <maximumf>, %22, %cst_9 [2] : vector<2x8x8xf32> to vector<2x8xf32>
    %24 = vector.shape_cast %23 : vector<2x8xf32> to vector<2x8x1xf32>
    %25 = vector.broadcast %24 : vector<2x8x1xf32> to vector<2x8x8xf32>
    %26 = arith.subf %22, %25 : vector<2x8x8xf32>
    %27 = math.exp %26 : vector<2x8x8xf32>
    %cst_10 = arith.constant dense<0.000000e+00> : vector<2x8xf32>
    %28 = vector.multi_reduction <add>, %27, %cst_10 [2] : vector<2x8x8xf32> to vector<2x8xf32>
    %29 = vector.shape_cast %28 : vector<2x8xf32> to vector<2x8x1xf32>
    %30 = vector.broadcast %29 : vector<2x8x1xf32> to vector<2x8x8xf32>
    %31 = arith.divf %27, %30 : vector<2x8x8xf32>
    "tpu.trace_start"() <{level = 10 : i32, message = "bqk,bkd->bqd"}> : () -> ()
    %cst_11 = arith.constant dense<0.000000e+00> : vector<2x8x8xf32>
    %32 = tpu.matmul %31, %15, %cst_11 {dimension_numbers = #tpu.dot_dimension_numbers<[2], [1], [1], [2], [0, 0, 0, 1, 1, 2], [0], [0]>} : vector<2x8x8xf32>, vector<2x8x8xf32>, vector<2x8x8xf32> -> vector<2x8x8xf32>
    "tpu.trace_stop"() : () -> ()
    %33 = vector.shape_cast %32 : vector<2x8x8xf32> to vector<16x8xf32>
    %c0_12 = arith.constant 0 : index
    %c0_13 = arith.constant 0 : index
    %34 = vector.load %arg14[%c0_12, %c0_13] : memref<16x32xf32, #tpu.memory_space<vmem>>, vector<16x8xf32>
    tpu.vector_store %arg14[%c0_12, %c0_13], %33 {strides = array<i32>} : memref<16x32xf32, #tpu.memory_space<vmem>>, vector<16x8xf32>,
    %35 = vector.extract_strided_slice %3 {offsets = [0, 8], sizes = [16, 8], strides = [1, 1]} : vector<16x32xf32> to vector<16x8xf32>
    %36 = vector.shape_cast %35 : vector<16x8xf32> to vector<2x8x8xf32>
    %37 = vector.extract_strided_slice %4 {offsets = [0, 8], sizes = [16, 8], strides = [1, 1]} : vector<16x32xf32> to vector<16x8xf32>
    %38 = vector.shape_cast %37 : vector<16x8xf32> to vector<2x8x8xf32>
    %39 = vector.extract_strided_slice %5 {offsets = [0, 8], sizes = [16, 8], strides = [1, 1]} : vector<16x32xf32> to vector<16x8xf32>
    %40 = vector.shape_cast %39 : vector<16x8xf32> to vector<2x8x8xf32>
    "tpu.trace_start"() <{level = 10 : i32, message = "bqd,bkd->bqk"}> : () -> ()
    %cst_14 = arith.constant dense<0.000000e+00> : vector<2x8x8xf32>
    %41 = tpu.matmul %36, %38, %cst_14 {dimension_numbers = #tpu.dot_dimension_numbers<[2], [2], [1], [1], [0, 0, 0, 1, 1, 1], [0], [0]>} : vector<2x8x8xf32>, vector<2x8x8xf32>, vector<2x8x8xf32> -> vector<2x8x8xf32>
    "tpu.trace_stop"() : () -> ()
    %cst_15 = arith.constant 0.353553385 : f32
    %42 = vector.broadcast %cst_15 : f32 to vector<2x8x8xf32>
    %43 = arith.mulf %41, %42 : vector<2x8x8xf32>
    %cst_16 = arith.constant -1.000000e+30 : f32
    %44 = vector.shape_cast %9 : vector<1x8x8xi1> to vector<1x8x8xi1>
    %45 = vector.broadcast %44 : vector<1x8x8xi1> to vector<2x8x8xi1>
    %46 = vector.broadcast %cst_16 : f32 to vector<2x8x8xf32>
    %47 = arith.select %45, %43, %46 : vector<2x8x8xi1>, vector<2x8x8xf32>
    %cst_17 = arith.constant dense<0xFF800000> : vector<2x8xf32>
    %48 = vector.multi_reduction <maximumf>, %47, %cst_17 [2] : vector<2x8x8xf32> to vector<2x8xf32>
    %49 = vector.shape_cast %48 : vector<2x8xf32> to vector<2x8x1xf32>
    %50 = vector.broadcast %49 : vector<2x8x1xf32> to vector<2x8x8xf32>
    %51 = arith.subf %47, %50 : vector<2x8x8xf32>
    %52 = math.exp %51 : vector<2x8x8xf32>
    %cst_18 = arith.constant dense<0.000000e+00> : vector<2x8xf32>
    %53 = vector.multi_reduction <add>, %52, %cst_18 [2] : vector<2x8x8xf32> to vector<2x8xf32>
    %54 = vector.shape_cast %53 : vector<2x8xf32> to vector<2x8x1xf32>
    %55 = vector.broadcast %54 : vector<2x8x1xf32> to vector<2x8x8xf32>
    %56 = arith.divf %52, %55 : vector<2x8x8xf32>
    "tpu.trace_start"() <{level = 10 : i32, message = "bqk,bkd->bqd"}> : () -> ()
    %cst_19 = arith.constant dense<0.000000e+00> : vector<2x8x8xf32>
    %57 = tpu.matmul %56, %40, %cst_19 {dimension_numbers = #tpu.dot_dimension_numbers<[2], [1], [1], [2], [0, 0, 0, 1, 1, 2], [0], [0]>} : vector<2x8x8xf32>, vector<2x8x8xf32>, vector<2x8x8xf32> -> vector<2x8x8xf32>
    "tpu.trace_stop"() : () -> ()
    %58 = vector.shape_cast %57 : vector<2x8x8xf32> to vector<16x8xf32>
    %c0_20 = arith.constant 0 : index
    %c8 = arith.constant 8 : index
    %59 = vector.load %arg14[%c0_20, %c8] : memref<16x32xf32, #tpu.memory_space<vmem>>, vector<16x8xf32>
    tpu.vector_store %arg14[%c0_20, %c8], %58 {strides = array<i32>} : memref<16x32xf32, #tpu.memory_space<vmem>>, vector<16x8xf32>,
    %60 = vector.extract_strided_slice %3 {offsets = [0, 16], sizes = [16, 8], strides = [1, 1]} : vector<16x32xf32> to vector<16x8xf32>
    %61 = vector.shape_cast %60 : vector<16x8xf32> to vector<2x8x8xf32>
    %62 = vector.extract_strided_slice %4 {offsets = [0, 16], sizes = [16, 8], strides = [1, 1]} : vector<16x32xf32> to vector<16x8xf32>
    %63 = vector.shape_cast %62 : vector<16x8xf32> to vector<2x8x8xf32>
    %64 = vector.extract_strided_slice %5 {offsets = [0, 16], sizes = [16, 8], strides = [1, 1]} : vector<16x32xf32> to vector<16x8xf32>
    %65 = vector.shape_cast %64 : vector<16x8xf32> to vector<2x8x8xf32>
    "tpu.trace_start"() <{level = 10 : i32, message = "bqd,bkd->bqk"}> : () -> ()
    %cst_21 = arith.constant dense<0.000000e+00> : vector<2x8x8xf32>
    %66 = tpu.matmul %61, %63, %cst_21 {dimension_numbers = #tpu.dot_dimension_numbers<[2], [2], [1], [1], [0, 0, 0, 1, 1, 1], [0], [0]>} : vector<2x8x8xf32>, vector<2x8x8xf32>, vector<2x8x8xf32> -> vector<2x8x8xf32>
    "tpu.trace_stop"() : () -> ()
    %cst_22 = arith.constant 0.353553385 : f32
    %67 = vector.broadcast %cst_22 : f32 to vector<2x8x8xf32>
    %68 = arith.mulf %66, %67 : vector<2x8x8xf32>
    %cst_23 = arith.constant -1.000000e+30 : f32
    %69 = vector.shape_cast %9 : vector<1x8x8xi1> to vector<1x8x8xi1>
    %70 = vector.broadcast %69 : vector<1x8x8xi1> to vector<2x8x8xi1>
    %71 = vector.broadcast %cst_23 : f32 to vector<2x8x8xf32>
    %72 = arith.select %70, %68, %71 : vector<2x8x8xi1>, vector<2x8x8xf32>
    %cst_24 = arith.constant dense<0xFF800000> : vector<2x8xf32>
    %73 = vector.multi_reduction <maximumf>, %72, %cst_24 [2] : vector<2x8x8xf32> to vector<2x8xf32>
    %74 = vector.shape_cast %73 : vector<2x8xf32> to vector<2x8x1xf32>
    %75 = vector.broadcast %74 : vector<2x8x1xf32> to vector<2x8x8xf32>
    %76 = arith.subf %72, %75 : vector<2x8x8xf32>
    %77 = math.exp %76 : vector<2x8x8xf32>
    %cst_25 = arith.constant dense<0.000000e+00> : vector<2x8xf32>
    %78 = vector.multi_reduction <add>, %77, %cst_25 [2] : vector<2x8x8xf32> to vector<2x8xf32>
    %79 = vector.shape_cast %78 : vector<2x8xf32> to vector<2x8x1xf32>
    %80 = vector.broadcast %79 : vector<2x8x1xf32> to vector<2x8x8xf32>
    %81 = arith.divf %77, %80 : vector<2x8x8xf32>
    "tpu.trace_start"() <{level = 10 : i32, message = "bqk,bkd->bqd"}> : () -> ()
    %cst_26 = arith.constant dense<0.000000e+00> : vector<2x8x8xf32>
    %82 = tpu.matmul %81, %65, %cst_26 {dimension_numbers = #tpu.dot_dimension_numbers<[2], [1], [1], [2], [0, 0, 0, 1, 1, 2], [0], [0]>} : vector<2x8x8xf32>, vector<2x8x8xf32>, vector<2x8x8xf32> -> vector<2x8x8xf32>
    "tpu.trace_stop"() : () -> ()
    %83 = vector.shape_cast %82 : vector<2x8x8xf32> to vector<16x8xf32>
    %c0_27 = arith.constant 0 : index
    %c16 = arith.constant 16 : index
    %84 = vector.load %arg14[%c0_27, %c16] : memref<16x32xf32, #tpu.memory_space<vmem>>, vector<16x8xf32>
    tpu.vector_store %arg14[%c0_27, %c16], %83 {strides = array<i32>} : memref<16x32xf32, #tpu.memory_space<vmem>>, vector<16x8xf32>,
    %85 = vector.extract_strided_slice %3 {offsets = [0, 24], sizes = [16, 8], strides = [1, 1]} : vector<16x32xf32> to vector<16x8xf32>
    %86 = vector.shape_cast %85 : vector<16x8xf32> to vector<2x8x8xf32>
    %87 = vector.extract_strided_slice %4 {offsets = [0, 24], sizes = [16, 8], strides = [1, 1]} : vector<16x32xf32> to vector<16x8xf32>
    %88 = vector.shape_cast %87 : vector<16x8xf32> to vector<2x8x8xf32>
    %89 = vector.extract_strided_slice %5 {offsets = [0, 24], sizes = [16, 8], strides = [1, 1]} : vector<16x32xf32> to vector<16x8xf32>
    %90 = vector.shape_cast %89 : vector<16x8xf32> to vector<2x8x8xf32>
    "tpu.trace_start"() <{level = 10 : i32, message = "bqd,bkd->bqk"}> : () -> ()
    %cst_28 = arith.constant dense<0.000000e+00> : vector<2x8x8xf32>
    %91 = tpu.matmul %86, %88, %cst_28 {dimension_numbers = #tpu.dot_dimension_numbers<[2], [2], [1], [1], [0, 0, 0, 1, 1, 1], [0], [0]>} : vector<2x8x8xf32>, vector<2x8x8xf32>, vector<2x8x8xf32> -> vector<2x8x8xf32>
    "tpu.trace_stop"() : () -> ()
    %cst_29 = arith.constant 0.353553385 : f32
    %92 = vector.broadcast %cst_29 : f32 to vector<2x8x8xf32>
    %93 = arith.mulf %91, %92 : vector<2x8x8xf32>
    %cst_30 = arith.constant -1.000000e+30 : f32
    %94 = vector.shape_cast %9 : vector<1x8x8xi1> to vector<1x8x8xi1>
    %95 = vector.broadcast %94 : vector<1x8x8xi1> to vector<2x8x8xi1>
    %96 = vector.broadcast %cst_30 : f32 to vector<2x8x8xf32>
    %97 = arith.select %95, %93, %96 : vector<2x8x8xi1>, vector<2x8x8xf32>
    %cst_31 = arith.constant dense<0xFF800000> : vector<2x8xf32>
    %98 = vector.multi_reduction <maximumf>, %97, %cst_31 [2] : vector<2x8x8xf32> to vector<2x8xf32>
    %99 = vector.shape_cast %98 : vector<2x8xf32> to vector<2x8x1xf32>
    %100 = vector.broadcast %99 : vector<2x8x1xf32> to vector<2x8x8xf32>
    %101 = arith.subf %97, %100 : vector<2x8x8xf32>
    %102 = math.exp %101 : vector<2x8x8xf32>
    %cst_32 = arith.constant dense<0.000000e+00> : vector<2x8xf32>
    %103 = vector.multi_reduction <add>, %102, %cst_32 [2] : vector<2x8x8xf32> to vector<2x8xf32>
    %104 = vector.shape_cast %103 : vector<2x8xf32> to vector<2x8x1xf32>
    %105 = vector.broadcast %104 : vector<2x8x1xf32> to vector<2x8x8xf32>
    %106 = arith.divf %102, %105 : vector<2x8x8xf32>
    "tpu.trace_start"() <{level = 10 : i32, message = "bqk,bkd->bqd"}> : () -> ()
    %cst_33 = arith.constant dense<0.000000e+00> : vector<2x8x8xf32>
    %107 = tpu.matmul %106, %90, %cst_33 {dimension_numbers = #tpu.dot_dimension_numbers<[2], [1], [1], [2], [0, 0, 0, 1, 1, 2], [0], [0]>} : vector<2x8x8xf32>, vector<2x8x8xf32>, vector<2x8x8xf32> -> vector<2x8x8xf32>
    "tpu.trace_stop"() : () -> ()
    %108 = vector.shape_cast %107 : vector<2x8x8xf32> to vector<16x8xf32>
    %c0_34 = arith.constant 0 : index
    %c24 = arith.constant 24 : index
    %109 = vector.load %arg14[%c0_34, %c24] : memref<16x32xf32, #tpu.memory_space<vmem>>, vector<16x8xf32>
    tpu.vector_store %arg14[%c0_34, %c24], %108 {strides = array<i32>} : memref<16x32xf32, #tpu.memory_space<vmem>>, vector<16x8xf32>,
    %c0_35 = arith.constant 0 : index
    %c0_36 = arith.constant 0 : index
    %110 = vector.load %arg14[%c0_35, %c0_36] : memref<16x32xf32, #tpu.memory_space<vmem>>, vector<16x32xf32>
    %111 = arith.addf %0, %110 : vector<16x32xf32>
    %cst_37 = arith.constant dense<0.000000e+00> : vector<16xf32>
    %112 = vector.multi_reduction <add>, %111, %cst_37 [1] : vector<16x32xf32> to vector<16xf32>
    %113 = vector.shape_cast %112 : vector<16xf32> to vector<16x1xf32>
    %cst_38 = arith.constant 3.200000e+01 : f32
    %114 = vector.broadcast %cst_38 : f32 to vector<16x1xf32>
    %115 = arith.divf %113, %114 : vector<16x1xf32>
    %116 = vector.broadcast %115 : vector<16x1xf32> to vector<16x32xf32>
    %117 = arith.subf %111, %116 : vector<16x32xf32>
    %118 = arith.mulf %117, %117 : vector<16x32xf32>
    %cst_39 = arith.constant dense<0.000000e+00> : vector<16xf32>
    %119 = vector.multi_reduction <add>, %118, %cst_39 [1] : vector<16x32xf32> to vector<16xf32>
    %120 = vector.shape_cast %119 : vector<16xf32> to vector<16x1xf32>
    %cst_40 = arith.constant 3.200000e+01 : f32
    %121 = vector.broadcast %cst_40 : f32 to vector<16x1xf32>
    %122 = arith.divf %120, %121 : vector<16x1xf32>
    %cst_41 = arith.constant 9.99999974E-6 : f32
    %123 = vector.broadcast %cst_41 : f32 to vector<16x1xf32>
    %124 = arith.addf %122, %123 : vector<16x1xf32>
    %125 = math.rsqrt %124 : vector<16x1xf32>
    %126 = vector.broadcast %125 : vector<16x1xf32> to vector<16x32xf32>
    %127 = arith.mulf %117, %126 : vector<16x32xf32>
    %c0_42 = arith.constant 0 : index
    %c0_43 = arith.constant 0 : index
    %128 = vector.load %arg9[%c0_42, %c0_43] : memref<1x32xf32, #tpu.memory_space<vmem>>, vector<1x32xf32>
    %129 = vector.broadcast %128 : vector<1x32xf32> to vector<16x32xf32>
    %130 = arith.mulf %127, %129 : vector<16x32xf32>
    %c0_44 = arith.constant 0 : index
    %c0_45 = arith.constant 0 : index
    %131 = vector.load %arg10[%c0_44, %c0_45] : memref<1x32xf32, #tpu.memory_space<vmem>>, vector<1x32xf32>
    %132 = vector.broadcast %131 : vector<1x32xf32> to vector<16x32xf32>
    %133 = arith.addf %130, %132 : vector<16x32xf32>
    %c0_46 = arith.constant 0 : index
    %c0_47 = arith.constant 0 : index
    %134 = vector.load %arg5[%c0_46, %c0_47] : memref<32x64xf32, #tpu.memory_space<vmem>>, vector<32x64xf32>
    %cst_48 = arith.constant dense<0.000000e+00> : vector<16x64xf32>
    %135 = tpu.matmul %133, %134, %cst_48 {dimension_numbers = #tpu.dot_dimension_numbers<[1], [0], [0], [1], [0, 0, 1, 1], [], []>} : vector<16x32xf32>, vector<32x64xf32>, vector<16x64xf32> -> vector<16x64xf32>
    %c0_49 = arith.constant 0 : index
    %c0_50 = arith.constant 0 : index
    %136 = vector.load %arg6[%c0_49, %c0_50] : memref<1x64xf32, #tpu.memory_space<vmem>>, vector<1x64xf32>
    %137 = vector.broadcast %136 : vector<1x64xf32> to vector<16x64xf32>
    %138 = arith.addf %135, %137 : vector<16x64xf32>
    %cst_51 = arith.constant 0.000000e+00 : f32
    %139 = vector.broadcast %cst_51 : f32 to vector<16x64xf32>
    %140 = arith.maximumf %138, %139 : vector<16x64xf32>
    %c0_52 = arith.constant 0 : index
    %c0_53 = arith.constant 0 : index
    %141 = vector.load %arg7[%c0_52, %c0_53] : memref<64x32xf32, #tpu.memory_space<vmem>>, vector<64x32xf32>
    %cst_54 = arith.constant dense<0.000000e+00> : vector<16x32xf32>
    %142 = tpu.matmul %140, %141, %cst_54 {dimension_numbers = #tpu.dot_dimension_numbers<[1], [0], [0], [1], [0, 0, 1, 1], [], []>} : vector<16x64xf32>, vector<64x32xf32>, vector<16x32xf32> -> vector<16x32xf32>
    %c0_55 = arith.constant 0 : index
    %c0_56 = arith.constant 0 : index
    %143 = vector.load %arg8[%c0_55, %c0_56] : memref<1x32xf32, #tpu.memory_space<vmem>>, vector<1x32xf32>
    %144 = vector.broadcast %143 : vector<1x32xf32> to vector<16x32xf32>
    %145 = arith.addf %142, %144 : vector<16x32xf32>
    %146 = arith.addf %133, %145 : vector<16x32xf32>
    %cst_57 = arith.constant dense<0.000000e+00> : vector<16xf32>
    %147 = vector.multi_reduction <add>, %146, %cst_57 [1] : vector<16x32xf32> to vector<16xf32>
    %148 = vector.shape_cast %147 : vector<16xf32> to vector<16x1xf32>
    %cst_58 = arith.constant 3.200000e+01 : f32
    %149 = vector.broadcast %cst_58 : f32 to vector<16x1xf32>
    %150 = arith.divf %148, %149 : vector<16x1xf32>
    %151 = vector.broadcast %150 : vector<16x1xf32> to vector<16x32xf32>
    %152 = arith.subf %146, %151 : vector<16x32xf32>
    %153 = arith.mulf %152, %152 : vector<16x32xf32>
    %cst_59 = arith.constant dense<0.000000e+00> : vector<16xf32>
    %154 = vector.multi_reduction <add>, %153, %cst_59 [1] : vector<16x32xf32> to vector<16xf32>
    %155 = vector.shape_cast %154 : vector<16xf32> to vector<16x1xf32>
    %cst_60 = arith.constant 3.200000e+01 : f32
    %156 = vector.broadcast %cst_60 : f32 to vector<16x1xf32>
    %157 = arith.divf %155, %156 : vector<16x1xf32>
    %cst_61 = arith.constant 9.99999974E-6 : f32
    %158 = vector.broadcast %cst_61 : f32 to vector<16x1xf32>
    %159 = arith.addf %157, %158 : vector<16x1xf32>
    %160 = math.rsqrt %159 : vector<16x1xf32>
    %161 = vector.broadcast %160 : vector<16x1xf32> to vector<16x32xf32>
    %162 = arith.mulf %152, %161 : vector<16x32xf32>
    %c0_62 = arith.constant 0 : index
    %c0_63 = arith.constant 0 : index
    %163 = vector.load %arg11[%c0_62, %c0_63] : memref<1x32xf32, #tpu.memory_space<vmem>>, vector<1x32xf32>
    %164 = vector.broadcast %163 : vector<1x32xf32> to vector<16x32xf32>
    %165 = arith.mulf %162, %164 : vector<16x32xf32>
    %c0_64 = arith.constant 0 : index
    %c0_65 = arith.constant 0 : index
    %166 = vector.load %arg12[%c0_64, %c0_65] : memref<1x32xf32, #tpu.memory_space<vmem>>, vector<1x32xf32>
    %167 = vector.broadcast %166 : vector<1x32xf32> to vector<16x32xf32>
    %168 = arith.addf %165, %167 : vector<16x32xf32>
    %c0_66 = arith.constant 0 : index
    %c0_67 = arith.constant 0 : index
    %c0_68 = arith.constant 0 : index
    %169 = vector.load %arg3[%c0_66, %c0_67, %c0_68] : memref<1x2x8xf32, #tpu.memory_space<vmem>>, vector<1x2x8xf32>
    %170 = vector.shape_cast %169 : vector<1x2x8xf32> to vector<2x8xf32>
    %171 = vector.shape_cast %170 : vector<2x8xf32> to vector<2x8x1xf32>
    %cst_69 = arith.constant 5.000000e-01 : f32
    %172 = vector.broadcast %cst_69 : f32 to vector<2x8x1xf32>
    %173 = arith.cmpf ogt, %171, %172 : vector<2x8x1xf32>
    %174 = vector.shape_cast %0 : vector<16x32xf32> to vector<2x8x32xf32>
    %175 = vector.shape_cast %168 : vector<16x32xf32> to vector<2x8x32xf32>
    %176 = vector.shape_cast %173 : vector<2x8x1xi1> to vector<2x8x1xi1>
    %177 = vector.broadcast %176 : vector<2x8x1xi1> to vector<2x8x32xi1>
    %178 = arith.select %177, %174, %175 : vector<2x8x32xi1>, vector<2x8x32xf32>
    %179 = vector.shape_cast %178 : vector<2x8x32xf32> to vector<16x32xf32>
    %c0_70 = arith.constant 0 : index
    %c0_71 = arith.constant 0 : index
    %180 = vector.load %arg13[%c0_70, %c0_71] : memref<16x32xf32, #tpu.memory_space<vmem>>, vector<16x32xf32>
    tpu.vector_store %arg13[%c0_70, %c0_71], %179 {strides = array<i32>} : memref<16x32xf32, #tpu.memory_space<vmem>>, vector<16x32xf32>,
    return
  }
  func.func @transform_0(%arg0: i32) -> (i32, i32) {
    %c0_i32 = arith.constant 0 : i32
    %c0_i32_0 = arith.constant 0 : i32
    return %arg0, %c0_i32 : i32, i32
  }
  func.func @transform_1(%arg0: i32) -> (i32, i32) {
    %c0_i32 = arith.constant 0 : i32
    %c0_i32_0 = arith.constant 0 : i32
    %c0_i32_1 = arith.constant 0 : i32
    return %c0_i32, %c0_i32_0 : i32, i32
  }
  func.func @transform_2(%arg0: i32) -> (i32, i32, i32) {
    %c0_i32 = arith.constant 0 : i32
    %c0_i32_0 = arith.constant 0 : i32
    %c0_i32_1 = arith.constant 0 : i32
    return %arg0, %c0_i32, %c0_i32_0 : i32, i32, i32
  }
  func.func @transform_3(%arg0: i32) -> (i32, i32) {
    %c0_i32 = arith.constant 0 : i32
    %c0_i32_0 = arith.constant 0 : i32
    %c0_i32_1 = arith.constant 0 : i32
    return %c0_i32, %c0_i32_0 : i32, i32
  }
  func.func @transform_4(%arg0: i32) -> (i32, i32) {
    %c0_i32 = arith.constant 0 : i32
    %c0_i32_0 = arith.constant 0 : i32
    %c0_i32_1 = arith.constant 0 : i32
    return %c0_i32, %c0_i32_0 : i32, i32
  }
  func.func @transform_5(%arg0: i32) -> (i32, i32) {
    %c0_i32 = arith.constant 0 : i32
    %c0_i32_0 = arith.constant 0 : i32
    %c0_i32_1 = arith.constant 0 : i32
    return %c0_i32, %c0_i32_0 : i32, i32
  }
  func.func @transform_6(%arg0: i32) -> (i32, i32) {
    %c0_i32 = arith.constant 0 : i32
    %c0_i32_0 = arith.constant 0 : i32
    %c0_i32_1 = arith.constant 0 : i32
    return %c0_i32, %c0_i32_0 : i32, i32
  }
  func.func @transform_7(%arg0: i32) -> (i32, i32) {
    %c0_i32 = arith.constant 0 : i32
    %c0_i32_0 = arith.constant 0 : i32
    %c0_i32_1 = arith.constant 0 : i32
    return %c0_i32, %c0_i32_0 : i32, i32
  }
  func.func @transform_8(%arg0: i32) -> (i32, i32) {
    %c0_i32 = arith.constant 0 : i32
    %c0_i32_0 = arith.constant 0 : i32
    %c0_i32_1 = arith.constant 0 : i32
    return %c0_i32, %c0_i32_0 : i32, i32
  }
  func.func @transform_9(%arg0: i32) -> (i32, i32) {
    %c0_i32 = arith.constant 0 : i32
    %c0_i32_0 = arith.constant 0 : i32
    %c0_i32_1 = arith.constant 0 : i32
    return %c0_i32, %c0_i32_0 : i32, i32
  }
  func.func @transform_10(%arg0: i32) -> (i32, i32) {
    %c0_i32 = arith.constant 0 : i32
    %c0_i32_0 = arith.constant 0 : i32
    %c0_i32_1 = arith.constant 0 : i32
    return %c0_i32, %c0_i32_0 : i32, i32
  }
  func.func @transform_11(%arg0: i32) -> (i32, i32) {
    %c0_i32 = arith.constant 0 : i32
    %c0_i32_0 = arith.constant 0 : i32
    %c0_i32_1 = arith.constant 0 : i32
    return %c0_i32, %c0_i32_0 : i32, i32
  }
  func.func @transform_12(%arg0: i32) -> (i32, i32) {
    %c0_i32 = arith.constant 0 : i32
    %c0_i32_0 = arith.constant 0 : i32
    return %arg0, %c0_i32 : i32, i32
  }
}

module attributes {stable_mosaic.version = 11 : i64} {
  func.func @_attention_layer_kernel(%arg0: i32, %arg1: memref<16x32xf32, #tpu.memory_space<vmem>>, %arg2: memref<8x8xbf16, #tpu.memory_space<vmem>>, %arg3: memref<1x2x8xf32, #tpu.memory_space<vmem>>, %arg4: memref<32x96xf32, #tpu.memory_space<vmem>>, %arg5: memref<32x64xf32, #tpu.memory_space<vmem>>, %arg6: memref<1x64xf32, #tpu.memory_space<vmem>>, %arg7: memref<64x32xf32, #tpu.memory_space<vmem>>, %arg8: memref<1x32xf32, #tpu.memory_space<vmem>>, %arg9: memref<1x32xf32, #tpu.memory_space<vmem>>, %arg10: memref<1x32xf32, #tpu.memory_space<vmem>>, %arg11: memref<1x32xf32, #tpu.memory_space<vmem>>, %arg12: memref<1x32xf32, #tpu.memory_space<vmem>>, %arg13: memref<16x32xf32, #tpu.memory_space<vmem>>, %arg14: memref<16x32xf32, #tpu.memory_space<vmem>>) attributes {dimension_semantics = [#tpu.dimension_semantics<parallel>], iteration_bounds = array<i64: 1>, scalar_prefetch = 0 : i64, scratch_operands = 1 : i64, tpu.core_type = #tpu.core_type<tc>, window_params = [{transform_indices = @transform_0, window_bounds = array<i64: 16, 32>}, {pipeline_mode = #tpu.pipeline_mode<synchronous>, transform_indices = @transform_1, window_bounds = array<i64: 8, 8>}, {transform_indices = @transform_2, window_bounds = array<i64: 1, 2, 8>}, {pipeline_mode = #tpu.pipeline_mode<synchronous>, transform_indices = @transform_3, window_bounds = array<i64: 32, 96>}, {pipeline_mode = #tpu.pipeline_mode<synchronous>, transform_indices = @transform_4, window_bounds = array<i64: 32, 64>}, {pipeline_mode = #tpu.pipeline_mode<synchronous>, transform_indices = @transform_5, window_bounds = array<i64: 1, 64>}, {pipeline_mode = #tpu.pipeline_mode<synchronous>, transform_indices = @transform_6, window_bounds = array<i64: 64, 32>}, {pipeline_mode = #tpu.pipeline_mode<synchronous>, transform_indices = @transform_7, window_bounds = array<i64: 1, 32>}, {pipeline_mode = #tpu.pipeline_mode<synchronous>, transform_indices = @transform_8, window_bounds = array<i64: 1, 32>}, {pipeline_mode = #tpu.pipeline_mode<synchronous>, transform_indices = @transform_9, window_bounds = array<i64: 1, 32>}, {pipeline_mode = #tpu.pipeline_mode<synchronous>, transform_indices = @transform_10, window_bounds = array<i64: 1, 32>}, {pipeline_mode = #tpu.pipeline_mode<synchronous>, transform_indices = @transform_11, window_bounds = array<i64: 1, 32>}, {transform_indices = @transform_12, window_bounds = array<i64: 16, 32>}]} {
    %c0 = arith.constant 0 : index
    %c0_0 = arith.constant 0 : index
    %0 = vector.load %arg1[%c0, %c0_0] : memref<16x32xf32, #tpu.memory_space<vmem>>, vector<16x32xf32>
    %c0_1 = arith.constant 0 : index
    %c0_2 = arith.constant 0 : index
    %1 = vector.load %arg4[%c0_1, %c0_2] : memref<32x96xf32, #tpu.memory_space<vmem>>, vector<32x96xf32>
    %cst = arith.constant dense<0.000000e+00> : vector<16x96xf32>
    %2 = tpu.matmul %0, %1, %cst {dimension_numbers = #tpu.dot_dimension_numbers<[1], [0], [0], [1], [0, 0, 1, 1], [], []>} : vector<16x32xf32>, vector<32x96xf32>, vector<16x96xf32> -> vector<16x96xf32>
    %3 = vector.extract_strided_slice %2 {offsets = [0, 0], sizes = [16, 32], strides = [1, 1]} : vector<16x96xf32> to vector<16x32xf32>
    %4 = vector.extract_strided_slice %2 {offsets = [0, 32], sizes = [16, 32], strides = [1, 1]} : vector<16x96xf32> to vector<16x32xf32>
    %5 = vector.extract_strided_slice %2 {offsets = [0, 64], sizes = [16, 32], strides = [1, 1]} : vector<16x96xf32> to vector<16x32xf32>
    %c0_3 = arith.constant 0 : index
    %c0_4 = arith.constant 0 : index
    %6 = vector.load %arg2[%c0_3, %c0_4] : memref<8x8xbf16, #tpu.memory_space<vmem>>, vector<8x8xbf16>
    %cst_5 = arith.constant 5.000000e-01 : bf16
    %7 = vector.broadcast %cst_5 : bf16 to vector<8x8xbf16>
    %8 = arith.cmpf ogt, %6, %7 : vector<8x8xbf16>
    %9 = vector.shape_cast %8 : vector<8x8xi1> to vector<1x8x8xi1>
    %10 = vector.extract_strided_slice %3 {offsets = [0, 0], sizes = [16, 8], strides = [1, 1]} : vector<16x32xf32> to vector<16x8xf32>
    %11 = vector.shape_cast %10 : vector<16x8xf32> to vector<2x8x8xf32>
    %12 = vector.extract_strided_slice %4 {offsets = [0, 0], sizes = [16, 8], strides = [1, 1]} : vector<16x32xf32> to vector<16x8xf32>
    %13 = vector.shape_cast %12 : vector<16x8xf32> to vector<2x8x8xf32>
    %14 = vector.extract_strided_slice %5 {offsets = [0, 0], sizes = [16, 8], strides = [1, 1]} : vector<16x32xf32> to vector<16x8xf32>
    %15 = vector.shape_cast %14 : vector<16x8xf32> to vector<2x8x8xf32>
    "tpu.trace_start"() <{level = 10 : i32, message = "bqd,bkd->bqk"}> : () -> ()
    %cst_6 = arith.constant dense<0.000000e+00> : vector<2x8x8xf32>
    %16 = tpu.matmul %11, %13, %cst_6 {dimension_numbers = #tpu.dot_dimension_numbers<[2], [2], [1], [1], [0, 0, 0, 1, 1, 1], [0], [0]>} : vector<2x8x8xf32>, vector<2x8x8xf32>, vector<2x8x8xf32> -> vector<2x8x8xf32>
    "tpu.trace_stop"() : () -> ()
    %cst_7 = arith.constant 0.353553385 : f32
    %17 = vector.broadcast %cst_7 : f32 to vector<2x8x8xf32>
    %18 = arith.mulf %16, %17 : vector<2x8x8xf32>
    %cst_8 = arith.constant -1.000000e+30 : f32
    %19 = vector.shape_cast %9 : vector<1x8x8xi1> to vector<1x8x8xi1>
    %20 = vector.broadcast %19 : vector<1x8x8xi1> to vector<2x8x8xi1>
    %21 = vector.broadcast %cst_8 : f32 to vector<2x8x8xf32>
    %22 = arith.select %20, %18, %21 : vector<2x8x8xi1>, vector<2x8x8xf32>
    %cst_9 = arith.constant dense<0xFF800000> : vector<2x8xf32>
    %23 = vector.multi_reduction <maximumf>, %22, %cst_9 [2] : vector<2x8x8xf32> to vector<2x8xf32>
    %24 = vector.shape_cast %23 : vector<2x8xf32> to vector<2x8x1xf32>
    %25 = vector.broadcast %24 : vector<2x8x1xf32> to vector<2x8x8xf32>
    %26 = arith.subf %22, %25 : vector<2x8x8xf32>
    %27 = math.exp %26 : vector<2x8x8xf32>
    %cst_10 = arith.constant dense<0.000000e+00> : vector<2x8xf32>
    %28 = vector.multi_reduction <add>, %27, %cst_10 [2] : vector<2x8x8xf32> to vector<2x8xf32>
    %29 = vector.shape_cast %28 : vector<2x8xf32> to vector<2x8x1xf32>
    %30 = vector.broadcast %29 : vector<2x8x1xf32> to vector<2x8x8xf32>
    %31 = arith.divf %27, %30 : vector<2x8x8xf32>
    "tpu.trace_start"() <{level = 10 : i32, message = "bqk,bkd->bqd"}> : () -> ()
    %cst_11 = arith.constant dense<0.000000e+00> : vector<2x8x8xf32>
    %32 = tpu.matmul %31, %15, %cst_11 {dimension_numbers = #tpu.dot_dimension_numbers<[2], [1], [1], [2], [0, 0, 0, 1, 1, 2], [0], [0]>} : vector<2x8x8xf32>, vector<2x8x8xf32>, vector<2x8x8xf32> -> vector<2x8x8xf32>
    "tpu.trace_stop"() : () -> ()
    %33 = vector.shape_cast %32 : vector<2x8x8xf32> to vector<16x8xf32>
    %c0_12 = arith.constant 0 : index
    %c0_13 = arith.constant 0 : index
    %34 = vector.load %arg14[%c0_12, %c0_13] : memref<16x32xf32, #tpu.memory_space<vmem>>, vector<16x8xf32>
    tpu.vector_store %arg14[%c0_12, %c0_13], %33 {strides = array<i32>} : memref<16x32xf32, #tpu.memory_space<vmem>>, vector<16x8xf32>,
    %35 = vector.extract_strided_slice %3 {offsets = [0, 8], sizes = [16, 8], strides = [1, 1]} : vector<16x32xf32> to vector<16x8xf32>
    %36 = vector.shape_cast %35 : vector<16x8xf32> to vector<2x8x8xf32>
    %37 = vector.extract_strided_slice %4 {offsets = [0, 8], sizes = [16, 8], strides = [1, 1]} : vector<16x32xf32> to vector<16x8xf32>
    %38 = vector.shape_cast %37 : vector<16x8xf32> to vector<2x8x8xf32>
    %39 = vector.extract_strided_slice %5 {offsets = [0, 8], sizes = [16, 8], strides = [1, 1]} : vector<16x32xf32> to vector<16x8xf32>
    %40 = vector.shape_cast %39 : vector<16x8xf32> to vector<2x8x8xf32>
    "tpu.trace_start"() <{level = 10 : i32, message = "bqd,bkd->bqk"}> : () -> ()
    %cst_14 = arith.constant dense<0.000000e+00> : vector<2x8x8xf32>
    %41 = tpu.matmul %36, %38, %cst_14 {dimension_numbers = #tpu.dot_dimension_numbers<[2], [2], [1], [1], [0, 0, 0, 1, 1, 1], [0], [0]>} : vector<2x8x8xf32>, vector<2x8x8xf32>, vector<2x8x8xf32> -> vector<2x8x8xf32>
    "tpu.trace_stop"() : () -> ()
    %cst_15 = arith.constant 0.353553385 : f32
    %42 = vector.broadcast %cst_15 : f32 to vector<2x8x8xf32>
    %43 = arith.mulf %41, %42 : vector<2x8x8xf32>
    %cst_16 = arith.constant -1.000000e+30 : f32
    %44 = vector.shape_cast %9 : vector<1x8x8xi1> to vector<1x8x8xi1>
    %45 = vector.broadcast %44 : vector<1x8x8xi1> to vector<2x8x8xi1>
    %46 = vector.broadcast %cst_16 : f32 to vector<2x8x8xf32>
    %47 = arith.select %45, %43, %46 : vector<2x8x8xi1>, vector<2x8x8xf32>
    %cst_17 = arith.constant dense<0xFF800000> : vector<2x8xf32>
    %48 = vector.multi_reduction <maximumf>, %47, %cst_17 [2] : vector<2x8x8xf32> to vector<2x8xf32>
    %49 = vector.shape_cast %48 : vector<2x8xf32> to vector<2x8x1xf32>
    %50 = vector.broadcast %49 : vector<2x8x1xf32> to vector<2x8x8xf32>
    %51 = arith.subf %47, %50 : vector<2x8x8xf32>
    %52 = math.exp %51 : vector<2x8x8xf32>
    %cst_18 = arith.constant dense<0.000000e+00> : vector<2x8xf32>
    %53 = vector.multi_reduction <add>, %52, %cst_18 [2] : vector<2x8x8xf32> to vector<2x8xf32>
    %54 = vector.shape_cast %53 : vector<2x8xf32> to vector<2x8x1xf32>
    %55 = vector.broadcast %54 : vector<2x8x1xf32> to vector<2x8x8xf32>
    %56 = arith.divf %52, %55 : vector<2x8x8xf32>
    "tpu.trace_start"() <{level = 10 : i32, message = "bqk,bkd->bqd"}> : () -> ()
    %cst_19 = arith.constant dense<0.000000e+00> : vector<2x8x8xf32>
    %57 = tpu.matmul %56, %40, %cst_19 {dimension_numbers = #tpu.dot_dimension_numbers<[2], [1], [1], [2], [0, 0, 0, 1, 1, 2], [0], [0]>} : vector<2x8x8xf32>, vector<2x8x8xf32>, vector<2x8x8xf32> -> vector<2x8x8xf32>
    "tpu.trace_stop"() : () -> ()
    %58 = vector.shape_cast %57 : vector<2x8x8xf32> to vector<16x8xf32>
    %c0_20 = arith.constant 0 : index
    %c8 = arith.constant 8 : index
    %59 = vector.load %arg14[%c0_20, %c8] : memref<16x32xf32, #tpu.memory_space<vmem>>, vector<16x8xf32>
    tpu.vector_store %arg14[%c0_20, %c8], %58 {strides = array<i32>} : memref<16x32xf32, #tpu.memory_space<vmem>>, vector<16x8xf32>,
    %60 = vector.extract_strided_slice %3 {offsets = [0, 16], sizes = [16, 8], strides = [1, 1]} : vector<16x32xf32> to vector<16x8xf32>
    %61 = vector.shape_cast %60 : vector<16x8xf32> to vector<2x8x8xf32>
    %62 = vector.extract_strided_slice %4 {offsets = [0, 16], sizes = [16, 8], strides = [1, 1]} : vector<16x32xf32> to vector<16x8xf32>
    %63 = vector.shape_cast %62 : vector<16x8xf32> to vector<2x8x8xf32>
    %64 = vector.extract_strided_slice %5 {offsets = [0, 16], sizes = [16, 8], strides = [1, 1]} : vector<16x32xf32> to vector<16x8xf32>
    %65 = vector.shape_cast %64 : vector<16x8xf32> to vector<2x8x8xf32>
    "tpu.trace_start"() <{level = 10 : i32, message = "bqd,bkd->bqk"}> : () -> ()
    %cst_21 = arith.constant dense<0.000000e+00> : vector<2x8x8xf32>
    %66 = tpu.matmul %61, %63, %cst_21 {dimension_numbers = #tpu.dot_dimension_numbers<[2], [2], [1], [1], [0, 0, 0, 1, 1, 1], [0], [0]>} : vector<2x8x8xf32>, vector<2x8x8xf32>, vector<2x8x8xf32> -> vector<2x8x8xf32>
    "tpu.trace_stop"() : () -> ()
    %cst_22 = arith.constant 0.353553385 : f32
    %67 = vector.broadcast %cst_22 : f32 to vector<2x8x8xf32>
    %68 = arith.mulf %66, %67 : vector<2x8x8xf32>
    %cst_23 = arith.constant -1.000000e+30 : f32
    %69 = vector.shape_cast %9 : vector<1x8x8xi1> to vector<1x8x8xi1>
    %70 = vector.broadcast %69 : vector<1x8x8xi1> to vector<2x8x8xi1>
    %71 = vector.broadcast %cst_23 : f32 to vector<2x8x8xf32>
    %72 = arith.select %70, %68, %71 : vector<2x8x8xi1>, vector<2x8x8xf32>
    %cst_24 = arith.constant dense<0xFF800000> : vector<2x8xf32>
    %73 = vector.multi_reduction <maximumf>, %72, %cst_24 [2] : vector<2x8x8xf32> to vector<2x8xf32>
    %74 = vector.shape_cast %73 : vector<2x8xf32> to vector<2x8x1xf32>
    %75 = vector.broadcast %74 : vector<2x8x1xf32> to vector<2x8x8xf32>
    %76 = arith.subf %72, %75 : vector<2x8x8xf32>
    %77 = math.exp %76 : vector<2x8x8xf32>
    %cst_25 = arith.constant dense<0.000000e+00> : vector<2x8xf32>
    %78 = vector.multi_reduction <add>, %77, %cst_25 [2] : vector<2x8x8xf32> to vector<2x8xf32>
    %79 = vector.shape_cast %78 : vector<2x8xf32> to vector<2x8x1xf32>
    %80 = vector.broadcast %79 : vector<2x8x1xf32> to vector<2x8x8xf32>
    %81 = arith.divf %77, %80 : vector<2x8x8xf32>
    "tpu.trace_start"() <{level = 10 : i32, message = "bqk,bkd->bqd"}> : () -> ()
    %cst_26 = arith.constant dense<0.000000e+00> : vector<2x8x8xf32>
    %82 = tpu.matmul %81, %65, %cst_26 {dimension_numbers = #tpu.dot_dimension_numbers<[2], [1], [1], [2], [0, 0, 0, 1, 1, 2], [0], [0]>} : vector<2x8x8xf32>, vector<2x8x8xf32>, vector<2x8x8xf32> -> vector<2x8x8xf32>
    "tpu.trace_stop"() : () -> ()
    %83 = vector.shape_cast %82 : vector<2x8x8xf32> to vector<16x8xf32>
    %c0_27 = arith.constant 0 : index
    %c16 = arith.constant 16 : index
    %84 = vector.load %arg14[%c0_27, %c16] : memref<16x32xf32, #tpu.memory_space<vmem>>, vector<16x8xf32>
    tpu.vector_store %arg14[%c0_27, %c16], %83 {strides = array<i32>} : memref<16x32xf32, #tpu.memory_space<vmem>>, vector<16x8xf32>,
    %85 = vector.extract_strided_slice %3 {offsets = [0, 24], sizes = [16, 8], strides = [1, 1]} : vector<16x32xf32> to vector<16x8xf32>
    %86 = vector.shape_cast %85 : vector<16x8xf32> to vector<2x8x8xf32>
    %87 = vector.extract_strided_slice %4 {offsets = [0, 24], sizes = [16, 8], strides = [1, 1]} : vector<16x32xf32> to vector<16x8xf32>
    %88 = vector.shape_cast %87 : vector<16x8xf32> to vector<2x8x8xf32>
    %89 = vector.extract_strided_slice %5 {offsets = [0, 24], sizes = [16, 8], strides = [1, 1]} : vector<16x32xf32> to vector<16x8xf32>
    %90 = vector.shape_cast %89 : vector<16x8xf32> to vector<2x8x8xf32>
    "tpu.trace_start"() <{level = 10 : i32, message = "bqd,bkd->bqk"}> : () -> ()
    %cst_28 = arith.constant dense<0.000000e+00> : vector<2x8x8xf32>
    %91 = tpu.matmul %86, %88, %cst_28 {dimension_numbers = #tpu.dot_dimension_numbers<[2], [2], [1], [1], [0, 0, 0, 1, 1, 1], [0], [0]>} : vector<2x8x8xf32>, vector<2x8x8xf32>, vector<2x8x8xf32> -> vector<2x8x8xf32>
    "tpu.trace_stop"() : () -> ()
    %cst_29 = arith.constant 0.353553385 : f32
    %92 = vector.broadcast %cst_29 : f32 to vector<2x8x8xf32>
    %93 = arith.mulf %91, %92 : vector<2x8x8xf32>
    %cst_30 = arith.constant -1.000000e+30 : f32
    %94 = vector.shape_cast %9 : vector<1x8x8xi1> to vector<1x8x8xi1>
    %95 = vector.broadcast %94 : vector<1x8x8xi1> to vector<2x8x8xi1>
    %96 = vector.broadcast %cst_30 : f32 to vector<2x8x8xf32>
    %97 = arith.select %95, %93, %96 : vector<2x8x8xi1>, vector<2x8x8xf32>
    %cst_31 = arith.constant dense<0xFF800000> : vector<2x8xf32>
    %98 = vector.multi_reduction <maximumf>, %97, %cst_31 [2] : vector<2x8x8xf32> to vector<2x8xf32>
    %99 = vector.shape_cast %98 : vector<2x8xf32> to vector<2x8x1xf32>
    %100 = vector.broadcast %99 : vector<2x8x1xf32> to vector<2x8x8xf32>
    %101 = arith.subf %97, %100 : vector<2x8x8xf32>
    %102 = math.exp %101 : vector<2x8x8xf32>
    %cst_32 = arith.constant dense<0.000000e+00> : vector<2x8xf32>
    %103 = vector.multi_reduction <add>, %102, %cst_32 [2] : vector<2x8x8xf32> to vector<2x8xf32>
    %104 = vector.shape_cast %103 : vector<2x8xf32> to vector<2x8x1xf32>
    %105 = vector.broadcast %104 : vector<2x8x1xf32> to vector<2x8x8xf32>
    %106 = arith.divf %102, %105 : vector<2x8x8xf32>
    "tpu.trace_start"() <{level = 10 : i32, message = "bqk,bkd->bqd"}> : () -> ()
    %cst_33 = arith.constant dense<0.000000e+00> : vector<2x8x8xf32>
    %107 = tpu.matmul %106, %90, %cst_33 {dimension_numbers = #tpu.dot_dimension_numbers<[2], [1], [1], [2], [0, 0, 0, 1, 1, 2], [0], [0]>} : vector<2x8x8xf32>, vector<2x8x8xf32>, vector<2x8x8xf32> -> vector<2x8x8xf32>
    "tpu.trace_stop"() : () -> ()
    %108 = vector.shape_cast %107 : vector<2x8x8xf32> to vector<16x8xf32>
    %c0_34 = arith.constant 0 : index
    %c24 = arith.constant 24 : index
    %109 = vector.load %arg14[%c0_34, %c24] : memref<16x32xf32, #tpu.memory_space<vmem>>, vector<16x8xf32>
    tpu.vector_store %arg14[%c0_34, %c24], %108 {strides = array<i32>} : memref<16x32xf32, #tpu.memory_space<vmem>>, vector<16x8xf32>,
    %c0_35 = arith.constant 0 : index
    %c0_36 = arith.constant 0 : index
    %110 = vector.load %arg14[%c0_35, %c0_36] : memref<16x32xf32, #tpu.memory_space<vmem>>, vector<16x32xf32>
    %111 = arith.addf %0, %110 : vector<16x32xf32>
    %cst_37 = arith.constant dense<0.000000e+00> : vector<16xf32>
    %112 = vector.multi_reduction <add>, %111, %cst_37 [1] : vector<16x32xf32> to vector<16xf32>
    %113 = vector.shape_cast %112 : vector<16xf32> to vector<16x1xf32>
    %cst_38 = arith.constant 3.200000e+01 : f32
    %114 = vector.broadcast %cst_38 : f32 to vector<16x1xf32>
    %115 = arith.divf %113, %114 : vector<16x1xf32>
    %116 = vector.broadcast %115 : vector<16x1xf32> to vector<16x32xf32>
    %117 = arith.subf %111, %116 : vector<16x32xf32>
    %118 = arith.mulf %117, %117 : vector<16x32xf32>
    %cst_39 = arith.constant dense<0.000000e+00> : vector<16xf32>
    %119 = vector.multi_reduction <add>, %118, %cst_39 [1] : vector<16x32xf32> to vector<16xf32>
    %120 = vector.shape_cast %119 : vector<16xf32> to vector<16x1xf32>
    %cst_40 = arith.constant 3.200000e+01 : f32
    %121 = vector.broadcast %cst_40 : f32 to vector<16x1xf32>
    %122 = arith.divf %120, %121 : vector<16x1xf32>
    %cst_41 = arith.constant 9.99999974E-6 : f32
    %123 = vector.broadcast %cst_41 : f32 to vector<16x1xf32>
    %124 = arith.addf %122, %123 : vector<16x1xf32>
    %125 = math.rsqrt %124 : vector<16x1xf32>
    %126 = vector.broadcast %125 : vector<16x1xf32> to vector<16x32xf32>
    %127 = arith.mulf %117, %126 : vector<16x32xf32>
    %c0_42 = arith.constant 0 : index
    %c0_43 = arith.constant 0 : index
    %128 = vector.load %arg9[%c0_42, %c0_43] : memref<1x32xf32, #tpu.memory_space<vmem>>, vector<1x32xf32>
    %129 = vector.broadcast %128 : vector<1x32xf32> to vector<16x32xf32>
    %130 = arith.mulf %127, %129 : vector<16x32xf32>
    %c0_44 = arith.constant 0 : index
    %c0_45 = arith.constant 0 : index
    %131 = vector.load %arg10[%c0_44, %c0_45] : memref<1x32xf32, #tpu.memory_space<vmem>>, vector<1x32xf32>
    %132 = vector.broadcast %131 : vector<1x32xf32> to vector<16x32xf32>
    %133 = arith.addf %130, %132 : vector<16x32xf32>
    %c0_46 = arith.constant 0 : index
    %c0_47 = arith.constant 0 : index
    %134 = vector.load %arg5[%c0_46, %c0_47] : memref<32x64xf32, #tpu.memory_space<vmem>>, vector<32x64xf32>
    %cst_48 = arith.constant dense<0.000000e+00> : vector<16x64xf32>
    %135 = tpu.matmul %133, %134, %cst_48 {dimension_numbers = #tpu.dot_dimension_numbers<[1], [0], [0], [1], [0, 0, 1, 1], [], []>} : vector<16x32xf32>, vector<32x64xf32>, vector<16x64xf32> -> vector<16x64xf32>
    %c0_49 = arith.constant 0 : index
    %c0_50 = arith.constant 0 : index
    %136 = vector.load %arg6[%c0_49, %c0_50] : memref<1x64xf32, #tpu.memory_space<vmem>>, vector<1x64xf32>
    %137 = vector.broadcast %136 : vector<1x64xf32> to vector<16x64xf32>
    %138 = arith.addf %135, %137 : vector<16x64xf32>
    %cst_51 = arith.constant 0.000000e+00 : f32
    %139 = vector.broadcast %cst_51 : f32 to vector<16x64xf32>
    %140 = arith.maximumf %138, %139 : vector<16x64xf32>
    %c0_52 = arith.constant 0 : index
    %c0_53 = arith.constant 0 : index
    %141 = vector.load %arg7[%c0_52, %c0_53] : memref<64x32xf32, #tpu.memory_space<vmem>>, vector<64x32xf32>
    %cst_54 = arith.constant dense<0.000000e+00> : vector<16x32xf32>
    %142 = tpu.matmul %140, %141, %cst_54 {dimension_numbers = #tpu.dot_dimension_numbers<[1], [0], [0], [1], [0, 0, 1, 1], [], []>} : vector<16x64xf32>, vector<64x32xf32>, vector<16x32xf32> -> vector<16x32xf32>
    %c0_55 = arith.constant 0 : index
    %c0_56 = arith.constant 0 : index
    %143 = vector.load %arg8[%c0_55, %c0_56] : memref<1x32xf32, #tpu.memory_space<vmem>>, vector<1x32xf32>
    %144 = vector.broadcast %143 : vector<1x32xf32> to vector<16x32xf32>
    %145 = arith.addf %142, %144 : vector<16x32xf32>
    %146 = arith.addf %133, %145 : vector<16x32xf32>
    %cst_57 = arith.constant dense<0.000000e+00> : vector<16xf32>
    %147 = vector.multi_reduction <add>, %146, %cst_57 [1] : vector<16x32xf32> to vector<16xf32>
    %148 = vector.shape_cast %147 : vector<16xf32> to vector<16x1xf32>
    %cst_58 = arith.constant 3.200000e+01 : f32
    %149 = vector.broadcast %cst_58 : f32 to vector<16x1xf32>
    %150 = arith.divf %148, %149 : vector<16x1xf32>
    %151 = vector.broadcast %150 : vector<16x1xf32> to vector<16x32xf32>
    %152 = arith.subf %146, %151 : vector<16x32xf32>
    %153 = arith.mulf %152, %152 : vector<16x32xf32>
    %cst_59 = arith.constant dense<0.000000e+00> : vector<16xf32>
    %154 = vector.multi_reduction <add>, %153, %cst_59 [1] : vector<16x32xf32> to vector<16xf32>
    %155 = vector.shape_cast %154 : vector<16xf32> to vector<16x1xf32>
    %cst_60 = arith.constant 3.200000e+01 : f32
    %156 = vector.broadcast %cst_60 : f32 to vector<16x1xf32>
    %157 = arith.divf %155, %156 : vector<16x1xf32>
    %cst_61 = arith.constant 9.99999974E-6 : f32
    %158 = vector.broadcast %cst_61 : f32 to vector<16x1xf32>
    %159 = arith.addf %157, %158 : vector<16x1xf32>
    %160 = math.rsqrt %159 : vector<16x1xf32>
    %161 = vector.broadcast %160 : vector<16x1xf32> to vector<16x32xf32>
    %162 = arith.mulf %152, %161 : vector<16x32xf32>
    %c0_62 = arith.constant 0 : index
    %c0_63 = arith.constant 0 : index
    %163 = vector.load %arg11[%c0_62, %c0_63] : memref<1x32xf32, #tpu.memory_space<vmem>>, vector<1x32xf32>
    %164 = vector.broadcast %163 : vector<1x32xf32> to vector<16x32xf32>
    %165 = arith.mulf %162, %164 : vector<16x32xf32>
    %c0_64 = arith.constant 0 : index
    %c0_65 = arith.constant 0 : index
    %166 = vector.load %arg12[%c0_64, %c0_65] : memref<1x32xf32, #tpu.memory_space<vmem>>, vector<1x32xf32>
    %167 = vector.broadcast %166 : vector<1x32xf32> to vector<16x32xf32>
    %168 = arith.addf %165, %167 : vector<16x32xf32>
    %c0_66 = arith.constant 0 : index
    %c0_67 = arith.constant 0 : index
    %c0_68 = arith.constant 0 : index
    %169 = vector.load %arg3[%c0_66, %c0_67, %c0_68] : memref<1x2x8xf32, #tpu.memory_space<vmem>>, vector<1x2x8xf32>
    %170 = vector.shape_cast %169 : vector<1x2x8xf32> to vector<2x8xf32>
    %171 = vector.shape_cast %170 : vector<2x8xf32> to vector<2x8x1xf32>
    %cst_69 = arith.constant 5.000000e-01 : f32
    %172 = vector.broadcast %cst_69 : f32 to vector<2x8x1xf32>
    %173 = arith.cmpf ogt, %171, %172 : vector<2x8x1xf32>
    %174 = vector.shape_cast %0 : vector<16x32xf32> to vector<2x8x32xf32>
    %175 = vector.shape_cast %168 : vector<16x32xf32> to vector<2x8x32xf32>
    %176 = vector.shape_cast %173 : vector<2x8x1xi1> to vector<2x8x1xi1>
    %177 = vector.broadcast %176 : vector<2x8x1xi1> to vector<2x8x32xi1>
    %178 = arith.select %177, %174, %175 : vector<2x8x32xi1>, vector<2x8x32xf32>
    %179 = vector.shape_cast %178 : vector<2x8x32xf32> to vector<16x32xf32>
    %c0_70 = arith.constant 0 : index
    %c0_71 = arith.constant 0 : index
    %180 = vector.load %arg13[%c0_70, %c0_71] : memref<16x32xf32, #tpu.memory_space<vmem>>, vector<16x32xf32>
    tpu.vector_store %arg13[%c0_70, %c0_71], %179 {strides = array<i32>} : memref<16x32xf32, #tpu.memory_space<vmem>>, vector<16x32xf32>,
    return
  }
  func.func @transform_0(%arg0: i32) -> (i32, i32) {
    %c0_i32 = arith.constant 0 : i32
    %c0_i32_0 = arith.constant 0 : i32
    return %arg0, %c0_i32 : i32, i32
  }
  func.func @transform_1(%arg0: i32) -> (i32, i32) {
    %c0_i32 = arith.constant 0 : i32
    %c0_i32_0 = arith.constant 0 : i32
    %c0_i32_1 = arith.constant 0 : i32
    return %c0_i32, %c0_i32_0 : i32, i32
  }
  func.func @transform_2(%arg0: i32) -> (i32, i32, i32) {
    %c0_i32 = arith.constant 0 : i32
    %c0_i32_0 = arith.constant 0 : i32
    %c0_i32_1 = arith.constant 0 : i32
    return %arg0, %c0_i32, %c0_i32_0 : i32, i32, i32
  }
  func.func @transform_3(%arg0: i32) -> (i32, i32) {
    %c0_i32 = arith.constant 0 : i32
    %c0_i32_0 = arith.constant 0 : i32
    %c0_i32_1 = arith.constant 0 : i32
    return %c0_i32, %c0_i32_0 : i32, i32
  }
  func.func @transform_4(%arg0: i32) -> (i32, i32) {
    %c0_i32 = arith.constant 0 : i32
    %c0_i32_0 = arith.constant 0 : i32
    %c0_i32_1 = arith.constant 0 : i32
    return %c0_i32, %c0_i32_0 : i32, i32
  }
  func.func @transform_5(%arg0: i32) -> (i32, i32) {
    %c0_i32 = arith.constant 0 : i32
    %c0_i32_0 = arith.constant 0 : i32
    %c0_i32_1 = arith.constant 0 : i32
    return %c0_i32, %c0_i32_0 : i32, i32
  }
  func.func @transform_6(%arg0: i32) -> (i32, i32) {
    %c0_i32 = arith.constant 0 : i32
    %c0_i32_0 = arith.constant 0 : i32
    %c0_i32_1 = arith.constant 0 : i32
    return %c0_i32, %c0_i32_0 : i32, i32
  }
  func.func @transform_7(%arg0: i32) -> (i32, i32) {
    %c0_i32 = arith.constant 0 : i32
    %c0_i32_0 = arith.constant 0 : i32
    %c0_i32_1 = arith.constant 0 : i32
    return %c0_i32, %c0_i32_0 : i32, i32
  }
  func.func @transform_8(%arg0: i32) -> (i32, i32) {
    %c0_i32 = arith.constant 0 : i32
    %c0_i32_0 = arith.constant 0 : i32
    %c0_i32_1 = arith.constant 0 : i32
    return %c0_i32, %c0_i32_0 : i32, i32
  }
  func.func @transform_9(%arg0: i32) -> (i32, i32) {
    %c0_i32 = arith.constant 0 : i32
    %c0_i32_0 = arith.constant 0 : i32
    %c0_i32_1 = arith.constant 0 : i32
    return %c0_i32, %c0_i32_0 : i32, i32
  }
  func.func @transform_10(%arg0: i32) -> (i32, i32) {
    %c0_i32 = arith.constant 0 : i32
    %c0_i32_0 = arith.constant 0 : i32
    %c0_i32_1 = arith.constant 0 : i32
    return %c0_i32, %c0_i32_0 : i32, i32
  }
  func.func @transform_11(%arg0: i32) -> (i32, i32) {
    %c0_i32 = arith.constant 0 : i32
    %c0_i32_0 = arith.constant 0 : i32
    %c0_i32_1 = arith.constant 0 : i32
    return %c0_i32, %c0_i32_0 : i32, i32
  }
  func.func @transform_12(%arg0: i32) -> (i32, i32) {
    %c0_i32 = arith.constant 0 : i32
    %c0_i32_0 = arith.constant 0 : i32
    return %arg0, %c0_i32 : i32, i32
  }
}

</mosaic_0001>

<llo_original>
// kernel: tpu_custom_call.1
$region0: #{tpu_custom_call.1}
  #allocation0 [shape = 'u32[]', space=smem, size = 0x4, offset = 0x4, fixed_abs, tag = 'smem constant byte address 0x4 - core index']
  #allocation1 [shape = 'u32[144,128]{1,0:T(1,128)}', space=vmem, size = 0x12000, scoped, tag = 'internal scratch']
  #allocation2 [shape = 'f32[16,32]{1,0:T(8,128)}', space=vmem, size = 0x2000, scoped, tag = 'scratch operand']
  %s0 = inlined_call_operand.vmem [shape: f32[16,32], index: 0, kind: input, shape index: {}]
  %s1 = inlined_call_operand.vmem [shape: bf16[8,8], index: 1, kind: input, shape index: {}]
  %s2 = inlined_call_operand.vmem [shape: f32[1,2,8], index: 2, kind: input, shape index: {}]
  %s3 = inlined_call_operand.vmem [shape: f32[32,96], index: 3, kind: input, shape index: {}]
  %s4 = inlined_call_operand.vmem [shape: f32[32,64], index: 4, kind: input, shape index: {}]
  %s5 = inlined_call_operand.vmem [shape: f32[1,64], index: 5, kind: input, shape index: {}]
  %s6 = inlined_call_operand.vmem [shape: f32[64,32], index: 6, kind: input, shape index: {}]
  %s7 = inlined_call_operand.vmem [shape: f32[1,32], index: 7, kind: input, shape index: {}]
  %s8 = inlined_call_operand.vmem [shape: f32[1,32], index: 8, kind: input, shape index: {}]
  %s9 = inlined_call_operand.vmem [shape: f32[1,32], index: 9, kind: input, shape index: {}]
  %s10 = inlined_call_operand.vmem [shape: f32[1,32], index: 10, kind: input, shape index: {}]
  %s11 = inlined_call_operand.vmem [shape: f32[1,32], index: 11, kind: input, shape index: {}]
  %s12 = inlined_call_operand.hbm [shape: f32[16,32], index: 12, kind: output, shape index: {}]
  %s13 = sld [smem:[#allocation0]]
  $region58: #{tpu_custom_call.1} parent=0
    _
  %s15 = ssub.s32 1, %s13
  %s16 = scalar_select 0, %s15, %s13
  $region1: #{tpu_custom_call.1} parent=0
    #allocation3 [shape = 'u8[8192]{0}', space=vmem, size = 0x2000, scoped, tag = 'output window, operand 0, single buffered']
    #allocation4 [shape = 's32[1]{0}', space=sflag, size = 0x4, scoped, tag = 'scoped memory for tpu_custom_call.1']
    %17 = vsyncpa [#allocation4], 0
    // Predicated region
    $region2: #{tpu_custom_call.1} parent=1 // pred_check
      _
    $region3: #{tpu_custom_call.1} parent=1 // pred_check_branch
      %19 = sbr.rel (0) target = $region5
    $region4: #{tpu_custom_call.1} parent=1 // pred_region
      _
    $region5: #{tpu_custom_call.1} parent=1 // pred_fallthru
      _
    // Predicated region
    $region6: #{tpu_custom_call.1} parent=1 // pred_check
      _
    $region7: #{tpu_custom_call.1} parent=1 // pred_check_branch
      %21 = sbr.rel (0) target = $region9
    $region8: #{tpu_custom_call.1} parent=1 // pred_region
      _
    $region9: #{tpu_custom_call.1} parent=1 // pred_fallthru
      _
    // Predicated region
    $region10: #{tpu_custom_call.1} parent=1 // pred_check
      _
    $region11: #{tpu_custom_call.1} parent=1 // pred_check_branch
      %23 = sbr.rel (0) target = $region13
    $region12: #{tpu_custom_call.1} parent=1 // pred_region
      _
    $region13: #{tpu_custom_call.1} parent=1 // pred_fallthru
      _
    // Predicated region
    $region14: #{tpu_custom_call.1} parent=1 // pred_check
      _
    $region15: #{tpu_custom_call.1} parent=1 // pred_check_branch
      %25 = sbr.rel (0) target = $region17
    $region16: #{tpu_custom_call.1} parent=1 // pred_region
      _
    $region17: #{tpu_custom_call.1} parent=1 // pred_fallthru
      _
    // Predicated region
    $region18: #{tpu_custom_call.1} parent=1 // pred_check
      _
    $region19: #{tpu_custom_call.1} parent=1 // pred_check_branch
      %27 = sbr.rel (0) target = $region21
    $region20: #{tpu_custom_call.1} parent=1 // pred_region
      _
    $region21: #{tpu_custom_call.1} parent=1 // pred_fallthru
      _
    // Predicated region
    $region22: #{tpu_custom_call.1} parent=1 // pred_check
      _
    $region23: #{tpu_custom_call.1} parent=1 // pred_check_branch
      %29 = sbr.rel (0) target = $region25
    $region24: #{tpu_custom_call.1} parent=1 // pred_region
      _
    $region25: #{tpu_custom_call.1} parent=1 // pred_fallthru
      _
    // Predicated region
    $region26: #{tpu_custom_call.1} parent=1 // pred_check
      _
    $region27: #{tpu_custom_call.1} parent=1 // pred_check_branch
      %31 = sbr.rel (0) target = $region29
    $region28: #{tpu_custom_call.1} parent=1 // pred_region
      _
    $region29: #{tpu_custom_call.1} parent=1 // pred_fallthru
      _
    // Predicated region
    $region30: #{tpu_custom_call.1} parent=1 // pred_check
      _
    $region31: #{tpu_custom_call.1} parent=1 // pred_check_branch
      %33 = sbr.rel (0) target = $region33
    $region32: #{tpu_custom_call.1} parent=1 // pred_region
      _
    $region33: #{tpu_custom_call.1} parent=1 // pred_fallthru
      _
    // Predicated region
    $region34: #{tpu_custom_call.1} parent=1 // pred_check
      _
    $region35: #{tpu_custom_call.1} parent=1 // pred_check_branch
      %35 = sbr.rel (0) target = $region37
    $region36: #{tpu_custom_call.1} parent=1 // pred_region
      _
    $region37: #{tpu_custom_call.1} parent=1 // pred_fallthru
      _
    // Predicated region
    $region38: #{tpu_custom_call.1} parent=1 // pred_check
      _
    $region39: #{tpu_custom_call.1} parent=1 // pred_check_branch
      %37 = sbr.rel (0) target = $region41
    $region40: #{tpu_custom_call.1} parent=1 // pred_region
      _
    $region41: #{tpu_custom_call.1} parent=1 // pred_fallthru
      _
    // Predicated region
    $region42: #{tpu_custom_call.1} parent=1 // pred_check
      _
    $region43: #{tpu_custom_call.1} parent=1 // pred_check_branch
      %39 = sbr.rel (0) target = $region45
    $region44: #{tpu_custom_call.1} parent=1 // pred_region
      _
    $region45: #{tpu_custom_call.1} parent=1 // pred_fallthru
      _
    // Predicated region
    $region46: #{tpu_custom_call.1} parent=1 // pred_check
      _
    $region47: #{tpu_custom_call.1} parent=1 // pred_check_branch
      %41 = sbr.rel (0) target = $region49
    $region48: #{tpu_custom_call.1} parent=1 // pred_region
      _
    $region49: #{tpu_custom_call.1} parent=1 // pred_fallthru
      _
    %v45 = vld [vmem:[%s0] sm:$0xff]
    %v46 = vld [vmem:[%s0 + $0x8] sm:$0xff]
    %v47 = vld [vmem:[%s3] sm:$0xff]
    %v48 = vld [vmem:[%s3 + $0x8] sm:$0xff]
    %v49 = vld [vmem:[%s3 + $0x10] sm:$0xff]
    %v50 = vld [vmem:[%s3 + $0x18] sm:$0xff]
    %vm51 = vcmask 261120
    %v53 = vsel %vm51, %v45, 0
    %v56 = vsel %vm51, %v46, 0
    %58 = vmatprep.subr.mxu0 0.0
    %59 = vmatpush1.msra.mxu0 0.0
    %60 = vmatprep.subr.mxu0 0.0
    %61 = vmatpush1.msra.mxu0 0.0
    %62 = vmatprep.subr.mxu0 0.0
    %63 = vmatpush1.msra.mxu0 0.0
    %64 = vmatprep.subr.mxu0 0.0
    %65 = vmatpush1.msra.mxu0 0.0
    %66 = vmatprep.subr.mxu0 0.0
    %67 = vmatpush1.msra.mxu0 0.0
    %68 = vmatprep.subr.mxu0 0.0
    %69 = vmatpush1.msra.mxu0 0.0
    %70 = vmatprep.subr.mxu0 0.0
    %71 = vmatpush1.msra.mxu0 0.0
    %72 = vmatprep.subr.mxu0 0.0
    %73 = vmatpush1.msra.mxu0 0.0
    %74 = vmatprep.subr.mxu0 0.0
    %75 = vmatpush1.msra.mxu0 0.0
    %76 = vmatprep.subr.mxu0 0.0
    %77 = vmatpush1.msra.mxu0 0.0
    %78 = vmatprep.subr.mxu0 0.0
    %79 = vmatpush1.msra.mxu0 0.0
    %80 = vmatprep.subr.mxu0 0.0
    %81 = vmatpush1.msra.mxu0 0.0
    %82 = vmatprep.subr.mxu0 0.0
    %83 = vmatpush1.msra.mxu0 %v50
    %84 = vmatprep.subr.mxu0 0.0
    %85 = vmatpush1.msra.mxu0 %v49
    %86 = vmatprep.subr.mxu0 0.0
    %87 = vmatpush1.msra.mxu0 %v48
    %88 = vmatprep.subr.mxu0 0.0
    %89 = vmatpush1.msra.mxu0 %v47
    %90 = vmatprep.subr.mxu0 0.0
    %91 = vmatpush2.msra.mxu0 0.0
    %92 = vmatprep.subr.mxu0 0.0
    %93 = vmatpush2.msra.mxu0 0.0
    %94 = vmatprep.subr.mxu0 0.0
    %95 = vmatpush2.msra.mxu0 0.0
    %96 = vmatprep.subr.mxu0 0.0
    %97 = vmatpush2.msra.mxu0 0.0
    %98 = vmatprep.subr.mxu0 0.0
    %99 = vmatpush2.msra.mxu0 0.0
    %100 = vmatprep.subr.mxu0 0.0
    %101 = vmatpush2.msra.mxu0 0.0
    %102 = vmatprep.subr.mxu0 0.0
    %103 = vmatpush2.msra.mxu0 0.0
    %104 = vmatprep.subr.mxu0 0.0
    %105 = vmatpush2.msra.mxu0 0.0
    %106 = vmatprep.subr.mxu0 0.0
    %107 = vmatpush2.msra.mxu0 0.0
    %108 = vmatprep.subr.mxu0 0.0
    %109 = vmatpush2.msra.mxu0 0.0
    %110 = vmatprep.subr.mxu0 0.0
    %111 = vmatpush2.msra.mxu0 0.0
    %112 = vmatprep.subr.mxu0 0.0
    %113 = vmatpush2.msra.mxu0 0.0
    %114 = vmatprep.subr.mxu0 0.0
    %115 = vmatpush2.msra.mxu0 0.0
    %116 = vmatprep.subr.mxu0 0.0
    %117 = vmatpush2.msra.mxu0 0.0
    %118 = vmatprep.subr.mxu0 0.0
    %119 = vmatpush2.msra.mxu0 0.0
    %120 = vmatprep.subr.mxu0 0.0
    %121 = vmatpush2.msra.mxu0 0.0
    %122 = vmatprep.mubr.f32.mxu0 0.0
    %123 = vmatmul.mubr.f32.gmra.mxu0 %v53
    %v124 = vpop.f32.mrf.mxu0
    %v125 = vadd.f32 0.0, %v124
    %v126 = vpop.f32.mrf.mxu0
    %127 = vmatprep.mubr.f32.mxu0 0.0
    %128 = vmatmul.mubr.f32.gmra.mxu0 %v56
    %v129 = vpop.f32.mrf.mxu0
    %v130 = vadd.f32 0.0, %v129
    %v131 = vpop.f32.mrf.mxu0
    %132 = vdwg.mxu0
    %v133 = vld [vmem:[%s1] sm:$0xf]
    %vm134 = vcmp.gt.bf16.partialorder %v133, 1056980736
    %136 = vrot.lane.b32.xlu0 %v125, 96
    %v137 = vpop.permute.xlu0 %136
    %vm138 = vcmask 64512
    %v139 = vsel %vm138, %v125, 0
    %v141 = vsel %vm138, %v137, 0
    %143 = vmatprep.subr.mxu0 0.0
    %144 = vmatpush1.xpose.msra.mxu0 0.0
    %145 = vmatprep.subr.mxu0 0.0
    %146 = vmatpush1.xpose.msra.mxu0 0.0
    %147 = vmatprep.subr.mxu0 0.0
    %148 = vmatpush1.xpose.msra.mxu0 0.0
    %149 = vmatprep.subr.mxu0 0.0
    %150 = vmatpush1.xpose.msra.mxu0 0.0
    %151 = vmatprep.subr.mxu0 0.0
    %152 = vmatpush1.xpose.msra.mxu0 0.0
    %153 = vmatprep.subr.mxu0 0.0
    %154 = vmatpush1.xpose.msra.mxu0 0.0
    %155 = vmatprep.subr.mxu0 0.0
    %156 = vmatpush1.xpose.msra.mxu0 0.0
    %157 = vmatprep.subr.mxu0 0.0
    %158 = vmatpush1.xpose.msra.mxu0 0.0
    %159 = vmatprep.subr.mxu0 0.0
    %160 = vmatpush1.xpose.msra.mxu0 0.0
    %161 = vmatprep.subr.mxu0 0.0
    %162 = vmatpush1.xpose.msra.mxu0 0.0
    %163 = vmatprep.subr.mxu0 0.0
    %164 = vmatpush1.xpose.msra.mxu0 0.0
    %165 = vmatprep.subr.mxu0 0.0
    %166 = vmatpush1.xpose.msra.mxu0 0.0
    %167 = vmatprep.subr.mxu0 0.0
    %168 = vmatpush1.xpose.msra.mxu0 0.0
    %169 = vmatprep.subr.mxu0 0.0
    %170 = vmatpush1.xpose.msra.mxu0 0.0
    %171 = vmatprep.subr.mxu0 0.0
    %172 = vmatpush1.xpose.msra.mxu0 0.0
    %173 = vmatprep.subr.mxu0 0.0
    %174 = vmatpush1.xpose.msra.mxu0 %v141
    %175 = vmatprep.subr.mxu0 0.0
    %176 = vmatpush2.xpose.msra.mxu0 0.0
    %177 = vmatprep.subr.mxu0 0.0
    %178 = vmatpush2.xpose.msra.mxu0 0.0
    %179 = vmatprep.subr.mxu0 0.0
    %180 = vmatpush2.xpose.msra.mxu0 0.0
    %181 = vmatprep.subr.mxu0 0.0
    %182 = vmatpush2.xpose.msra.mxu0 0.0
    %183 = vmatprep.subr.mxu0 0.0
    %184 = vmatpush2.xpose.msra.mxu0 0.0
    %185 = vmatprep.subr.mxu0 0.0
    %186 = vmatpush2.xpose.msra.mxu0 0.0
    %187 = vmatprep.subr.mxu0 0.0
    %188 = vmatpush2.xpose.msra.mxu0 0.0
    %189 = vmatprep.subr.mxu0 0.0
    %190 = vmatpush2.xpose.msra.mxu0 0.0
    %191 = vmatprep.subr.mxu0 0.0
    %192 = vmatpush2.xpose.msra.mxu0 0.0
    %193 = vmatprep.subr.mxu0 0.0
    %194 = vmatpush2.xpose.msra.mxu0 0.0
    %195 = vmatprep.subr.mxu0 0.0
    %196 = vmatpush2.xpose.msra.mxu0 0.0
    %197 = vmatprep.subr.mxu0 0.0
    %198 = vmatpush2.xpose.msra.mxu0 0.0
    %199 = vmatprep.subr.mxu0 0.0
    %200 = vmatpush2.xpose.msra.mxu0 0.0
    %201 = vmatprep.subr.mxu0 0.0
    %202 = vmatpush2.xpose.msra.mxu0 0.0
    %203 = vmatprep.subr.mxu0 0.0
    %204 = vmatpush2.xpose.msra.mxu0 0.0
    %205 = vmatprep.subr.mxu0 0.0
    %206 = vmatpush2.xpose.msra.mxu0 0.0
    %207 = vmatprep.mubr.f32.mxu0 0.0
    %208 = vmatmul.mubr.f32.gmra.mxu0 %v139
    %v209 = vpop.f32.mrf.mxu0
    %v210 = vadd.f32 0.0, %v209
    %v211 = vpop.f32.mrf.mxu0
    %212 = vdwg.mxu0
    %214 = vrot.lane.b32.xlu0 %v130, 96
    %v215 = vpop.permute.xlu0 %214
    %v216 = vsel %vm138, %v130, 0
    %v218 = vsel %vm138, %v215, 0
    %220 = vmatprep.subr.mxu0 0.0
    %221 = vmatpush1.xpose.msra.mxu0 0.0
    %222 = vmatprep.subr.mxu0 0.0
    %223 = vmatpush1.xpose.msra.mxu0 0.0
    %224 = vmatprep.subr.mxu0 0.0
    %225 = vmatpush1.xpose.msra.mxu0 0.0
    %226 = vmatprep.subr.mxu0 0.0
    %227 = vmatpush1.xpose.msra.mxu0 0.0
    %228 = vmatprep.subr.mxu0 0.0
    %229 = vmatpush1.xpose.msra.mxu0 0.0
    %230 = vmatprep.subr.mxu0 0.0
    %231 = vmatpush1.xpose.msra.mxu0 0.0
    %232 = vmatprep.subr.mxu0 0.0
    %233 = vmatpush1.xpose.msra.mxu0 0.0
    %234 = vmatprep.subr.mxu0 0.0
    %235 = vmatpush1.xpose.msra.mxu0 0.0
    %236 = vmatprep.subr.mxu0 0.0
    %237 = vmatpush1.xpose.msra.mxu0 0.0
    %238 = vmatprep.subr.mxu0 0.0
    %239 = vmatpush1.xpose.msra.mxu0 0.0
    %240 = vmatprep.subr.mxu0 0.0
    %241 = vmatpush1.xpose.msra.mxu0 0.0
    %242 = vmatprep.subr.mxu0 0.0
    %243 = vmatpush1.xpose.msra.mxu0 0.0
    %244 = vmatprep.subr.mxu0 0.0
    %245 = vmatpush1.xpose.msra.mxu0 0.0
    %246 = vmatprep.subr.mxu0 0.0
    %247 = vmatpush1.xpose.msra.mxu0 0.0
    %248 = vmatprep.subr.mxu0 0.0
    %249 = vmatpush1.xpose.msra.mxu0 0.0
    %250 = vmatprep.subr.mxu0 0.0
    %251 = vmatpush1.xpose.msra.mxu0 %v218
    %252 = vmatprep.subr.mxu0 0.0
    %253 = vmatpush2.xpose.msra.mxu0 0.0
    %254 = vmatprep.subr.mxu0 0.0
    %255 = vmatpush2.xpose.msra.mxu0 0.0
    %256 = vmatprep.subr.mxu0 0.0
    %257 = vmatpush2.xpose.msra.mxu0 0.0
    %258 = vmatprep.subr.mxu0 0.0
    %259 = vmatpush2.xpose.msra.mxu0 0.0
    %260 = vmatprep.subr.mxu0 0.0
    %261 = vmatpush2.xpose.msra.mxu0 0.0
    %262 = vmatprep.subr.mxu0 0.0
    %263 = vmatpush2.xpose.msra.mxu0 0.0
    %264 = vmatprep.subr.mxu0 0.0
    %265 = vmatpush2.xpose.msra.mxu0 0.0
    %266 = vmatprep.subr.mxu0 0.0
    %267 = vmatpush2.xpose.msra.mxu0 0.0
    %268 = vmatprep.subr.mxu0 0.0
    %269 = vmatpush2.xpose.msra.mxu0 0.0
    %270 = vmatprep.subr.mxu0 0.0
    %271 = vmatpush2.xpose.msra.mxu0 0.0
    %272 = vmatprep.subr.mxu0 0.0
    %273 = vmatpush2.xpose.msra.mxu0 0.0
    %274 = vmatprep.subr.mxu0 0.0
    %275 = vmatpush2.xpose.msra.mxu0 0.0
    %276 = vmatprep.subr.mxu0 0.0
    %277 = vmatpush2.xpose.msra.mxu0 0.0
    %278 = vmatprep.subr.mxu0 0.0
    %279 = vmatpush2.xpose.msra.mxu0 0.0
    %280 = vmatprep.subr.mxu0 0.0
    %281 = vmatpush2.xpose.msra.mxu0 0.0
    %282 = vmatprep.subr.mxu0 0.0
    %283 = vmatpush2.xpose.msra.mxu0 0.0
    %284 = vmatprep.mubr.f32.mxu0 0.0
    %285 = vmatmul.mubr.f32.gmra.mxu0 %v216
    %v286 = vpop.f32.mrf.mxu0
    %v287 = vadd.f32 0.0, %v286
    %v288 = vpop.f32.mrf.mxu0
    %289 = vdwg.mxu0
    %v290 = vmul.f32 %v210, 0.35355338
    %v291 = vmul.f32 %v287, 0.35355338
    %v292 = vsel %vm134, 65537, 0
    %v293 = vunpack.c.l.b16 %v292
    %vm294 = vcmp.ne.s32.totalorder %v293, 0
    %v295 = vsel %vm294, 1, 0
    %vm296 = vcmp.eq.s32.totalorder %v295, 1
    %v297 = vsel %vm296, %v290, -1e+30
    %v298 = vsel %vm296, %v291, -1e+30
    %v299 = vsel %vm138, %v297, -inf
    %300 = vmax.xlane.f32.xlu0 %v299
    %v301 = vpop.xlane.xlu0 %300
    %v302 = vsel %vm138, %v298, -inf
    %303 = vmax.xlane.f32.xlu0 %v302
    %v304 = vpop.xlane.xlu0 %303
    %v305 = vsub.f32 %v297, %v301
    %v306 = vsub.f32 %v298, %v304
    %v307 = vmul.f32 %v305, 1.442695
    %v308 = vpow.pop %v307
    %v309 = vmul.f32 %v306, 1.442695
    %v310 = vpow.pop %v309
    %v311 = vsel %vm138, %v308, 0.0
    %312 = vadd.xlane.f32.xlu0 %v311
    %v313 = vpop.xlane.xlu0 %312
    %v314 = vsel %vm138, %v310, 0.0
    %315 = vadd.xlane.f32.xlu0 %v314
    %v316 = vpop.xlane.xlu0 %315
    %v317 = vrcp.pop %v313
    %v318 = vmul.f32 %v308, %v317
    %v319 = vrcp.pop %v316
    %v320 = vmul.f32 %v310, %v319
    %321 = vrot.lane.b32.xlu0 %v125, 64
    %v322 = vpop.permute.xlu0 %321
    %v325 = vsel %vm138, %v318, 0
    %327 = vmatprep.subr.mxu0 0.0
    %328 = vmatpush1.msra.mxu0 0.0
    %329 = vmatprep.subr.mxu0 0.0
    %330 = vmatpush1.msra.mxu0 0.0
    %331 = vmatprep.subr.mxu0 0.0
    %332 = vmatpush1.msra.mxu0 0.0
    %333 = vmatprep.subr.mxu0 0.0
    %334 = vmatpush1.msra.mxu0 0.0
    %335 = vmatprep.subr.mxu0 0.0
    %336 = vmatpush1.msra.mxu0 0.0
    %337 = vmatprep.subr.mxu0 0.0
    %338 = vmatpush1.msra.mxu0 0.0
    %339 = vmatprep.subr.mxu0 0.0
    %340 = vmatpush1.msra.mxu0 0.0
    %341 = vmatprep.subr.mxu0 0.0
    %342 = vmatpush1.msra.mxu0 0.0
    %343 = vmatprep.subr.mxu0 0.0
    %344 = vmatpush1.msra.mxu0 0.0
    %345 = vmatprep.subr.mxu0 0.0
    %346 = vmatpush1.msra.mxu0 0.0
    %347 = vmatprep.subr.mxu0 0.0
    %348 = vmatpush1.msra.mxu0 0.0
    %349 = vmatprep.subr.mxu0 0.0
    %350 = vmatpush1.msra.mxu0 0.0
    %351 = vmatprep.subr.mxu0 0.0
    %352 = vmatpush1.msra.mxu0 0.0
    %353 = vmatprep.subr.mxu0 0.0
    %354 = vmatpush1.msra.mxu0 0.0
    %355 = vmatprep.subr.mxu0 0.0
    %356 = vmatpush1.msra.mxu0 0.0
    %357 = vmatprep.subr.mxu0 0.0
    %358 = vmatpush1.msra.mxu0 %v322
    %359 = vmatprep.subr.mxu0 0.0
    %360 = vmatpush2.msra.mxu0 0.0
    %361 = vmatprep.subr.mxu0 0.0
    %362 = vmatpush2.msra.mxu0 0.0
    %363 = vmatprep.subr.mxu0 0.0
    %364 = vmatpush2.msra.mxu0 0.0
    %365 = vmatprep.subr.mxu0 0.0
    %366 = vmatpush2.msra.mxu0 0.0
    %367 = vmatprep.subr.mxu0 0.0
    %368 = vmatpush2.msra.mxu0 0.0
    %369 = vmatprep.subr.mxu0 0.0
    %370 = vmatpush2.msra.mxu0 0.0
    %371 = vmatprep.subr.mxu0 0.0
    %372 = vmatpush2.msra.mxu0 0.0
    %373 = vmatprep.subr.mxu0 0.0
    %374 = vmatpush2.msra.mxu0 0.0
    %375 = vmatprep.subr.mxu0 0.0
    %376 = vmatpush2.msra.mxu0 0.0
    %377 = vmatprep.subr.mxu0 0.0
    %378 = vmatpush2.msra.mxu0 0.0
    %379 = vmatprep.subr.mxu0 0.0
    %380 = vmatpush2.msra.mxu0 0.0
    %381 = vmatprep.subr.mxu0 0.0
    %382 = vmatpush2.msra.mxu0 0.0
    %383 = vmatprep.subr.mxu0 0.0
    %384 = vmatpush2.msra.mxu0 0.0
    %385 = vmatprep.subr.mxu0 0.0
    %386 = vmatpush2.msra.mxu0 0.0
    %387 = vmatprep.subr.mxu0 0.0
    %388 = vmatpush2.msra.mxu0 0.0
    %389 = vmatprep.subr.mxu0 0.0
    %390 = vmatpush2.msra.mxu0 0.0
    %391 = vmatprep.mubr.f32.mxu0 0.0
    %392 = vmatmul.mubr.f32.gmra.mxu0 %v325
    %v393 = vpop.f32.mrf.mxu0
    %v394 = vadd.f32 0.0, %v393
    %v395 = vpop.f32.mrf.mxu0
    %396 = vdwg.mxu0
    %397 = vrot.lane.b32.xlu0 %v130, 64
    %v398 = vpop.permute.xlu0 %397
    %v401 = vsel %vm138, %v320, 0
    %403 = vmatprep.subr.mxu0 0.0
    %404 = vmatpush1.msra.mxu0 0.0
    %405 = vmatprep.subr.mxu0 0.0
    %406 = vmatpush1.msra.mxu0 0.0
    %407 = vmatprep.subr.mxu0 0.0
    %408 = vmatpush1.msra.mxu0 0.0
    %409 = vmatprep.subr.mxu0 0.0
    %410 = vmatpush1.msra.mxu0 0.0
    %411 = vmatprep.subr.mxu0 0.0
    %412 = vmatpush1.msra.mxu0 0.0
    %413 = vmatprep.subr.mxu0 0.0
    %414 = vmatpush1.msra.mxu0 0.0
    %415 = vmatprep.subr.mxu0 0.0
    %416 = vmatpush1.msra.mxu0 0.0
    %417 = vmatprep.subr.mxu0 0.0
    %418 = vmatpush1.msra.mxu0 0.0
    %419 = vmatprep.subr.mxu0 0.0
    %420 = vmatpush1.msra.mxu0 0.0
    %421 = vmatprep.subr.mxu0 0.0
    %422 = vmatpush1.msra.mxu0 0.0
    %423 = vmatprep.subr.mxu0 0.0
    %424 = vmatpush1.msra.mxu0 0.0
    %425 = vmatprep.subr.mxu0 0.0
    %426 = vmatpush1.msra.mxu0 0.0
    %427 = vmatprep.subr.mxu0 0.0
    %428 = vmatpush1.msra.mxu0 0.0
    %429 = vmatprep.subr.mxu0 0.0
    %430 = vmatpush1.msra.mxu0 0.0
    %431 = vmatprep.subr.mxu0 0.0
    %432 = vmatpush1.msra.mxu0 0.0
    %433 = vmatprep.subr.mxu0 0.0
    %434 = vmatpush1.msra.mxu0 %v398
    %435 = vmatprep.subr.mxu0 0.0
    %436 = vmatpush2.msra.mxu0 0.0
    %437 = vmatprep.subr.mxu0 0.0
    %438 = vmatpush2.msra.mxu0 0.0
    %439 = vmatprep.subr.mxu0 0.0
    %440 = vmatpush2.msra.mxu0 0.0
    %441 = vmatprep.subr.mxu0 0.0
    %442 = vmatpush2.msra.mxu0 0.0
    %443 = vmatprep.subr.mxu0 0.0
    %444 = vmatpush2.msra.mxu0 0.0
    %445 = vmatprep.subr.mxu0 0.0
    %446 = vmatpush2.msra.mxu0 0.0
    %447 = vmatprep.subr.mxu0 0.0
    %448 = vmatpush2.msra.mxu0 0.0
    %449 = vmatprep.subr.mxu0 0.0
    %450 = vmatpush2.msra.mxu0 0.0
    %451 = vmatprep.subr.mxu0 0.0
    %452 = vmatpush2.msra.mxu0 0.0
    %453 = vmatprep.subr.mxu0 0.0
    %454 = vmatpush2.msra.mxu0 0.0
    %455 = vmatprep.subr.mxu0 0.0
    %456 = vmatpush2.msra.mxu0 0.0
    %457 = vmatprep.subr.mxu0 0.0
    %458 = vmatpush2.msra.mxu0 0.0
    %459 = vmatprep.subr.mxu0 0.0
    %460 = vmatpush2.msra.mxu0 0.0
    %461 = vmatprep.subr.mxu0 0.0
    %462 = vmatpush2.msra.mxu0 0.0
    %463 = vmatprep.subr.mxu0 0.0
    %464 = vmatpush2.msra.mxu0 0.0
    %465 = vmatprep.subr.mxu0 0.0
    %466 = vmatpush2.msra.mxu0 0.0
    %467 = vmatprep.mubr.f32.mxu0 0.0
    %468 = vmatmul.mubr.f32.gmra.mxu0 %v401
    %v469 = vpop.f32.mrf.mxu0
    %v470 = vadd.f32 0.0, %v469
    %v471 = vpop.f32.mrf.mxu0
    %472 = vdwg.mxu0
    %473 = vst.msk [vmem:[#allocation2] sm:$0xff] %vm138, %v394
    %474 = vst.msk [vmem:[#allocation2 + $0x8] sm:$0xff] %vm138, %v470
    %475 = vrot.lane.b32.xlu0 %v125, 120
    %v476 = vpop.permute.xlu0 %475
    %477 = vrot.lane.b32.xlu0 %v125, 88
    %v478 = vpop.permute.xlu0 %477
    %v479 = vsel %vm138, %v476, 0
    %v481 = vsel %vm138, %v478, 0
    %483 = vmatprep.subr.mxu0 0.0
    %484 = vmatpush1.xpose.msra.mxu0 0.0
    %485 = vmatprep.subr.mxu0 0.0
    %486 = vmatpush1.xpose.msra.mxu0 0.0
    %487 = vmatprep.subr.mxu0 0.0
    %488 = vmatpush1.xpose.msra.mxu0 0.0
    %489 = vmatprep.subr.mxu0 0.0
    %490 = vmatpush1.xpose.msra.mxu0 0.0
    %491 = vmatprep.subr.mxu0 0.0
    %492 = vmatpush1.xpose.msra.mxu0 0.0
    %493 = vmatprep.subr.mxu0 0.0
    %494 = vmatpush1.xpose.msra.mxu0 0.0
    %495 = vmatprep.subr.mxu0 0.0
    %496 = vmatpush1.xpose.msra.mxu0 0.0
    %497 = vmatprep.subr.mxu0 0.0
    %498 = vmatpush1.xpose.msra.mxu0 0.0
    %499 = vmatprep.subr.mxu0 0.0
    %500 = vmatpush1.xpose.msra.mxu0 0.0
    %501 = vmatprep.subr.mxu0 0.0
    %502 = vmatpush1.xpose.msra.mxu0 0.0
    %503 = vmatprep.subr.mxu0 0.0
    %504 = vmatpush1.xpose.msra.mxu0 0.0
    %505 = vmatprep.subr.mxu0 0.0
    %506 = vmatpush1.xpose.msra.mxu0 0.0
    %507 = vmatprep.subr.mxu0 0.0
    %508 = vmatpush1.xpose.msra.mxu0 0.0
    %509 = vmatprep.subr.mxu0 0.0
    %510 = vmatpush1.xpose.msra.mxu0 0.0
    %511 = vmatprep.subr.mxu0 0.0
    %512 = vmatpush1.xpose.msra.mxu0 0.0
    %513 = vmatprep.subr.mxu0 0.0
    %514 = vmatpush1.xpose.msra.mxu0 %v481
    %515 = vmatprep.subr.mxu0 0.0
    %516 = vmatpush2.xpose.msra.mxu0 0.0
    %517 = vmatprep.subr.mxu0 0.0
    %518 = vmatpush2.xpose.msra.mxu0 0.0
    %519 = vmatprep.subr.mxu0 0.0
    %520 = vmatpush2.xpose.msra.mxu0 0.0
    %521 = vmatprep.subr.mxu0 0.0
    %522 = vmatpush2.xpose.msra.mxu0 0.0
    %523 = vmatprep.subr.mxu0 0.0
    %524 = vmatpush2.xpose.msra.mxu0 0.0
    %525 = vmatprep.subr.mxu0 0.0
    %526 = vmatpush2.xpose.msra.mxu0 0.0
    %527 = vmatprep.subr.mxu0 0.0
    %528 = vmatpush2.xpose.msra.mxu0 0.0
    %529 = vmatprep.subr.mxu0 0.0
    %530 = vmatpush2.xpose.msra.mxu0 0.0
    %531 = vmatprep.subr.mxu0 0.0
    %532 = vmatpush2.xpose.msra.mxu0 0.0
    %533 = vmatprep.subr.mxu0 0.0
    %534 = vmatpush2.xpose.msra.mxu0 0.0
    %535 = vmatprep.subr.mxu0 0.0
    %536 = vmatpush2.xpose.msra.mxu0 0.0
    %537 = vmatprep.subr.mxu0 0.0
    %538 = vmatpush2.xpose.msra.mxu0 0.0
    %539 = vmatprep.subr.mxu0 0.0
    %540 = vmatpush2.xpose.msra.mxu0 0.0
    %541 = vmatprep.subr.mxu0 0.0
    %542 = vmatpush2.xpose.msra.mxu0 0.0
    %543 = vmatprep.subr.mxu0 0.0
    %544 = vmatpush2.xpose.msra.mxu0 0.0
    %545 = vmatprep.subr.mxu0 0.0
    %546 = vmatpush2.xpose.msra.mxu0 0.0
    %547 = vmatprep.mubr.f32.mxu0 0.0
    %548 = vmatmul.mubr.f32.gmra.mxu0 %v479
    %v549 = vpop.f32.mrf.mxu0
    %v550 = vadd.f32 0.0, %v549
    %v551 = vpop.f32.mrf.mxu0
    %552 = vdwg.mxu0
    %553 = vrot.lane.b32.xlu0 %v130, 120
    %v554 = vpop.permute.xlu0 %553
    %555 = vrot.lane.b32.xlu0 %v130, 88
    %v556 = vpop.permute.xlu0 %555
    %v557 = vsel %vm138, %v554, 0
    %v559 = vsel %vm138, %v556, 0
    %561 = vmatprep.subr.mxu0 0.0
    %562 = vmatpush1.xpose.msra.mxu0 0.0
    %563 = vmatprep.subr.mxu0 0.0
    %564 = vmatpush1.xpose.msra.mxu0 0.0
    %565 = vmatprep.subr.mxu0 0.0
    %566 = vmatpush1.xpose.msra.mxu0 0.0
    %567 = vmatprep.subr.mxu0 0.0
    %568 = vmatpush1.xpose.msra.mxu0 0.0
    %569 = vmatprep.subr.mxu0 0.0
    %570 = vmatpush1.xpose.msra.mxu0 0.0
    %571 = vmatprep.subr.mxu0 0.0
    %572 = vmatpush1.xpose.msra.mxu0 0.0
    %573 = vmatprep.subr.mxu0 0.0
    %574 = vmatpush1.xpose.msra.mxu0 0.0
    %575 = vmatprep.subr.mxu0 0.0
    %576 = vmatpush1.xpose.msra.mxu0 0.0
    %577 = vmatprep.subr.mxu0 0.0
    %578 = vmatpush1.xpose.msra.mxu0 0.0
    %579 = vmatprep.subr.mxu0 0.0
    %580 = vmatpush1.xpose.msra.mxu0 0.0
    %581 = vmatprep.subr.mxu0 0.0
    %582 = vmatpush1.xpose.msra.mxu0 0.0
    %583 = vmatprep.subr.mxu0 0.0
    %584 = vmatpush1.xpose.msra.mxu0 0.0
    %585 = vmatprep.subr.mxu0 0.0
    %586 = vmatpush1.xpose.msra.mxu0 0.0
    %587 = vmatprep.subr.mxu0 0.0
    %588 = vmatpush1.xpose.msra.mxu0 0.0
    %589 = vmatprep.subr.mxu0 0.0
    %590 = vmatpush1.xpose.msra.mxu0 0.0
    %591 = vmatprep.subr.mxu0 0.0
    %592 = vmatpush1.xpose.msra.mxu0 %v559
    %593 = vmatprep.subr.mxu0 0.0
    %594 = vmatpush2.xpose.msra.mxu0 0.0
    %595 = vmatprep.subr.mxu0 0.0
    %596 = vmatpush2.xpose.msra.mxu0 0.0
    %597 = vmatprep.subr.mxu0 0.0
    %598 = vmatpush2.xpose.msra.mxu0 0.0
    %599 = vmatprep.subr.mxu0 0.0
    %600 = vmatpush2.xpose.msra.mxu0 0.0
    %601 = vmatprep.subr.mxu0 0.0
    %602 = vmatpush2.xpose.msra.mxu0 0.0
    %603 = vmatprep.subr.mxu0 0.0
    %604 = vmatpush2.xpose.msra.mxu0 0.0
    %605 = vmatprep.subr.mxu0 0.0
    %606 = vmatpush2.xpose.msra.mxu0 0.0
    %607 = vmatprep.subr.mxu0 0.0
    %608 = vmatpush2.xpose.msra.mxu0 0.0
    %609 = vmatprep.subr.mxu0 0.0
    %610 = vmatpush2.xpose.msra.mxu0 0.0
    %611 = vmatprep.subr.mxu0 0.0
    %612 = vmatpush2.xpose.msra.mxu0 0.0
    %613 = vmatprep.subr.mxu0 0.0
    %614 = vmatpush2.xpose.msra.mxu0 0.0
    %615 = vmatprep.subr.mxu0 0.0
    %616 = vmatpush2.xpose.msra.mxu0 0.0
    %617 = vmatprep.subr.mxu0 0.0
    %618 = vmatpush2.xpose.msra.mxu0 0.0
    %619 = vmatprep.subr.mxu0 0.0
    %620 = vmatpush2.xpose.msra.mxu0 0.0
    %621 = vmatprep.subr.mxu0 0.0
    %622 = vmatpush2.xpose.msra.mxu0 0.0
    %623 = vmatprep.subr.mxu0 0.0
    %624 = vmatpush2.xpose.msra.mxu0 0.0
    %625 = vmatprep.mubr.f32.mxu0 0.0
    %626 = vmatmul.mubr.f32.gmra.mxu0 %v557
    %v627 = vpop.f32.mrf.mxu0
    %v628 = vadd.f32 0.0, %v627
    %v629 = vpop.f32.mrf.mxu0
    %630 = vdwg.mxu0
    %v631 = vmul.f32 %v550, 0.35355338
    %v632 = vmul.f32 %v628, 0.35355338
    %v633 = vsel %vm296, %v631, -1e+30
    %v634 = vsel %vm296, %v632, -1e+30
    %v635 = vsel %vm138, %v633, -inf
    %636 = vmax.xlane.f32.xlu0 %v635
    %v637 = vpop.xlane.xlu0 %636
    %v638 = vsel %vm138, %v634, -inf
    %639 = vmax.xlane.f32.xlu0 %v638
    %v640 = vpop.xlane.xlu0 %639
    %v641 = vsub.f32 %v633, %v637
    %v642 = vsub.f32 %v634, %v640
    %v643 = vmul.f32 %v641, 1.442695
    %v644 = vpow.pop %v643
    %v645 = vmul.f32 %v642, 1.442695
    %v646 = vpow.pop %v645
    %v647 = vsel %vm138, %v644, 0.0
    %648 = vadd.xlane.f32.xlu0 %v647
    %v649 = vpop.xlane.xlu0 %648
    %v650 = vsel %vm138, %v646, 0.0
    %651 = vadd.xlane.f32.xlu0 %v650
    %v652 = vpop.xlane.xlu0 %651
    %v653 = vrcp.pop %v649
    %v654 = vmul.f32 %v644, %v653
    %v655 = vrcp.pop %v652
    %v656 = vmul.f32 %v646, %v655
    %657 = vrot.lane.b32.xlu0 %v125, 56
    %v658 = vpop.permute.xlu0 %657
    %v661 = vsel %vm138, %v654, 0
    %663 = vmatprep.subr.mxu0 0.0
    %664 = vmatpush1.msra.mxu0 0.0
    %665 = vmatprep.subr.mxu0 0.0
    %666 = vmatpush1.msra.mxu0 0.0
    %667 = vmatprep.subr.mxu0 0.0
    %668 = vmatpush1.msra.mxu0 0.0
    %669 = vmatprep.subr.mxu0 0.0
    %670 = vmatpush1.msra.mxu0 0.0
    %671 = vmatprep.subr.mxu0 0.0
    %672 = vmatpush1.msra.mxu0 0.0
    %673 = vmatprep.subr.mxu0 0.0
    %674 = vmatpush1.msra.mxu0 0.0
    %675 = vmatprep.subr.mxu0 0.0
    %676 = vmatpush1.msra.mxu0 0.0
    %677 = vmatprep.subr.mxu0 0.0
    %678 = vmatpush1.msra.mxu0 0.0
    %679 = vmatprep.subr.mxu0 0.0
    %680 = vmatpush1.msra.mxu0 0.0
    %681 = vmatprep.subr.mxu0 0.0
    %682 = vmatpush1.msra.mxu0 0.0
    %683 = vmatprep.subr.mxu0 0.0
    %684 = vmatpush1.msra.mxu0 0.0
    %685 = vmatprep.subr.mxu0 0.0
    %686 = vmatpush1.msra.mxu0 0.0
    %687 = vmatprep.subr.mxu0 0.0
    %688 = vmatpush1.msra.mxu0 0.0
    %689 = vmatprep.subr.mxu0 0.0
    %690 = vmatpush1.msra.mxu0 0.0
    %691 = vmatprep.subr.mxu0 0.0
    %692 = vmatpush1.msra.mxu0 0.0
    %693 = vmatprep.subr.mxu0 0.0
    %694 = vmatpush1.msra.mxu0 %v658
    %695 = vmatprep.subr.mxu0 0.0
    %696 = vmatpush2.msra.mxu0 0.0
    %697 = vmatprep.subr.mxu0 0.0
    %698 = vmatpush2.msra.mxu0 0.0
    %699 = vmatprep.subr.mxu0 0.0
    %700 = vmatpush2.msra.mxu0 0.0
    %701 = vmatprep.subr.mxu0 0.0
    %702 = vmatpush2.msra.mxu0 0.0
    %703 = vmatprep.subr.mxu0 0.0
    %704 = vmatpush2.msra.mxu0 0.0
    %705 = vmatprep.subr.mxu0 0.0
    %706 = vmatpush2.msra.mxu0 0.0
    %707 = vmatprep.subr.mxu0 0.0
    %708 = vmatpush2.msra.mxu0 0.0
    %709 = vmatprep.subr.mxu0 0.0
    %710 = vmatpush2.msra.mxu0 0.0
    %711 = vmatprep.subr.mxu0 0.0
    %712 = vmatpush2.msra.mxu0 0.0
    %713 = vmatprep.subr.mxu0 0.0
    %714 = vmatpush2.msra.mxu0 0.0
    %715 = vmatprep.subr.mxu0 0.0
    %716 = vmatpush2.msra.mxu0 0.0
    %717 = vmatprep.subr.mxu0 0.0
    %718 = vmatpush2.msra.mxu0 0.0
    %719 = vmatprep.subr.mxu0 0.0
    %720 = vmatpush2.msra.mxu0 0.0
    %721 = vmatprep.subr.mxu0 0.0
    %722 = vmatpush2.msra.mxu0 0.0
    %723 = vmatprep.subr.mxu0 0.0
    %724 = vmatpush2.msra.mxu0 0.0
    %725 = vmatprep.subr.mxu0 0.0
    %726 = vmatpush2.msra.mxu0 0.0
    %727 = vmatprep.mubr.f32.mxu0 0.0
    %728 = vmatmul.mubr.f32.gmra.mxu0 %v661
    %v729 = vpop.f32.mrf.mxu0
    %v730 = vadd.f32 0.0, %v729
    %v731 = vpop.f32.mrf.mxu0
    %732 = vdwg.mxu0
    %733 = vrot.lane.b32.xlu0 %v130, 56
    %v734 = vpop.permute.xlu0 %733
    %v737 = vsel %vm138, %v656, 0
    %739 = vmatprep.subr.mxu0 0.0
    %740 = vmatpush1.msra.mxu0 0.0
    %741 = vmatprep.subr.mxu0 0.0
    %742 = vmatpush1.msra.mxu0 0.0
    %743 = vmatprep.subr.mxu0 0.0
    %744 = vmatpush1.msra.mxu0 0.0
    %745 = vmatprep.subr.mxu0 0.0
    %746 = vmatpush1.msra.mxu0 0.0
    %747 = vmatprep.subr.mxu0 0.0
    %748 = vmatpush1.msra.mxu0 0.0
    %749 = vmatprep.subr.mxu0 0.0
    %750 = vmatpush1.msra.mxu0 0.0
    %751 = vmatprep.subr.mxu0 0.0
    %752 = vmatpush1.msra.mxu0 0.0
    %753 = vmatprep.subr.mxu0 0.0
    %754 = vmatpush1.msra.mxu0 0.0
    %755 = vmatprep.subr.mxu0 0.0
    %756 = vmatpush1.msra.mxu0 0.0
    %757 = vmatprep.subr.mxu0 0.0
    %758 = vmatpush1.msra.mxu0 0.0
    %759 = vmatprep.subr.mxu0 0.0
    %760 = vmatpush1.msra.mxu0 0.0
    %761 = vmatprep.subr.mxu0 0.0
    %762 = vmatpush1.msra.mxu0 0.0
    %763 = vmatprep.subr.mxu0 0.0
    %764 = vmatpush1.msra.mxu0 0.0
    %765 = vmatprep.subr.mxu0 0.0
    %766 = vmatpush1.msra.mxu0 0.0
    %767 = vmatprep.subr.mxu0 0.0
    %768 = vmatpush1.msra.mxu0 0.0
    %769 = vmatprep.subr.mxu0 0.0
    %770 = vmatpush1.msra.mxu0 %v734
    %771 = vmatprep.subr.mxu0 0.0
    %772 = vmatpush2.msra.mxu0 0.0
    %773 = vmatprep.subr.mxu0 0.0
    %774 = vmatpush2.msra.mxu0 0.0
    %775 = vmatprep.subr.mxu0 0.0
    %776 = vmatpush2.msra.mxu0 0.0
    %777 = vmatprep.subr.mxu0 0.0
    %778 = vmatpush2.msra.mxu0 0.0
    %779 = vmatprep.subr.mxu0 0.0
    %780 = vmatpush2.msra.mxu0 0.0
    %781 = vmatprep.subr.mxu0 0.0
    %782 = vmatpush2.msra.mxu0 0.0
    %783 = vmatprep.subr.mxu0 0.0
    %784 = vmatpush2.msra.mxu0 0.0
    %785 = vmatprep.subr.mxu0 0.0
    %786 = vmatpush2.msra.mxu0 0.0
    %787 = vmatprep.subr.mxu0 0.0
    %788 = vmatpush2.msra.mxu0 0.0
    %789 = vmatprep.subr.mxu0 0.0
    %790 = vmatpush2.msra.mxu0 0.0
    %791 = vmatprep.subr.mxu0 0.0
    %792 = vmatpush2.msra.mxu0 0.0
    %793 = vmatprep.subr.mxu0 0.0
    %794 = vmatpush2.msra.mxu0 0.0
    %795 = vmatprep.subr.mxu0 0.0
    %796 = vmatpush2.msra.mxu0 0.0
    %797 = vmatprep.subr.mxu0 0.0
    %798 = vmatpush2.msra.mxu0 0.0
    %799 = vmatprep.subr.mxu0 0.0
    %800 = vmatpush2.msra.mxu0 0.0
    %801 = vmatprep.subr.mxu0 0.0
    %802 = vmatpush2.msra.mxu0 0.0
    %803 = vmatprep.mubr.f32.mxu0 0.0
    %804 = vmatmul.mubr.f32.gmra.mxu0 %v737
    %v805 = vpop.f32.mrf.mxu0
    %v806 = vadd.f32 0.0, %v805
    %v807 = vpop.f32.mrf.mxu0
    %808 = vdwg.mxu0
    %811 = vrot.lane.b32.xlu0 %v730, 8
    %v812 = vpop.permute.xlu0 %811
    %813 = vrot.lane.b32.xlu0 %v806, 8
    %v814 = vpop.permute.xlu0 %813
    %vm817 = vcmask 130112
    %818 = vst.msk [vmem:[#allocation2] sm:$0xff] %vm817, %v812
    %819 = vst.msk [vmem:[#allocation2 + $0x8] sm:$0xff] %vm817, %v814
    %820 = vrot.lane.b32.xlu0 %v125, 112
    %v821 = vpop.permute.xlu0 %820
    %822 = vrot.lane.b32.xlu0 %v125, 80
    %v823 = vpop.permute.xlu0 %822
    %v824 = vsel %vm138, %v821, 0
    %v826 = vsel %vm138, %v823, 0
    %828 = vmatprep.subr.mxu0 0.0
    %829 = vmatpush1.xpose.msra.mxu0 0.0
    %830 = vmatprep.subr.mxu0 0.0
    %831 = vmatpush1.xpose.msra.mxu0 0.0
    %832 = vmatprep.subr.mxu0 0.0
    %833 = vmatpush1.xpose.msra.mxu0 0.0
    %834 = vmatprep.subr.mxu0 0.0
    %835 = vmatpush1.xpose.msra.mxu0 0.0
    %836 = vmatprep.subr.mxu0 0.0
    %837 = vmatpush1.xpose.msra.mxu0 0.0
    %838 = vmatprep.subr.mxu0 0.0
    %839 = vmatpush1.xpose.msra.mxu0 0.0
    %840 = vmatprep.subr.mxu0 0.0
    %841 = vmatpush1.xpose.msra.mxu0 0.0
    %842 = vmatprep.subr.mxu0 0.0
    %843 = vmatpush1.xpose.msra.mxu0 0.0
    %844 = vmatprep.subr.mxu0 0.0
    %845 = vmatpush1.xpose.msra.mxu0 0.0
    %846 = vmatprep.subr.mxu0 0.0
    %847 = vmatpush1.xpose.msra.mxu0 0.0
    %848 = vmatprep.subr.mxu0 0.0
    %849 = vmatpush1.xpose.msra.mxu0 0.0
    %850 = vmatprep.subr.mxu0 0.0
    %851 = vmatpush1.xpose.msra.mxu0 0.0
    %852 = vmatprep.subr.mxu0 0.0
    %853 = vmatpush1.xpose.msra.mxu0 0.0
    %854 = vmatprep.subr.mxu0 0.0
    %855 = vmatpush1.xpose.msra.mxu0 0.0
    %856 = vmatprep.subr.mxu0 0.0
    %857 = vmatpush1.xpose.msra.mxu0 0.0
    %858 = vmatprep.subr.mxu0 0.0
    %859 = vmatpush1.xpose.msra.mxu0 %v826
    %860 = vmatprep.subr.mxu0 0.0
    %861 = vmatpush2.xpose.msra.mxu0 0.0
    %862 = vmatprep.subr.mxu0 0.0
    %863 = vmatpush2.xpose.msra.mxu0 0.0
    %864 = vmatprep.subr.mxu0 0.0
    %865 = vmatpush2.xpose.msra.mxu0 0.0
    %866 = vmatprep.subr.mxu0 0.0
    %867 = vmatpush2.xpose.msra.mxu0 0.0
    %868 = vmatprep.subr.mxu0 0.0
    %869 = vmatpush2.xpose.msra.mxu0 0.0
    %870 = vmatprep.subr.mxu0 0.0
    %871 = vmatpush2.xpose.msra.mxu0 0.0
    %872 = vmatprep.subr.mxu0 0.0
    %873 = vmatpush2.xpose.msra.mxu0 0.0
    %874 = vmatprep.subr.mxu0 0.0
    %875 = vmatpush2.xpose.msra.mxu0 0.0
    %876 = vmatprep.subr.mxu0 0.0
    %877 = vmatpush2.xpose.msra.mxu0 0.0
    %878 = vmatprep.subr.mxu0 0.0
    %879 = vmatpush2.xpose.msra.mxu0 0.0
    %880 = vmatprep.subr.mxu0 0.0
    %881 = vmatpush2.xpose.msra.mxu0 0.0
    %882 = vmatprep.subr.mxu0 0.0
    %883 = vmatpush2.xpose.msra.mxu0 0.0
    %884 = vmatprep.subr.mxu0 0.0
    %885 = vmatpush2.xpose.msra.mxu0 0.0
    %886 = vmatprep.subr.mxu0 0.0
    %887 = vmatpush2.xpose.msra.mxu0 0.0
    %888 = vmatprep.subr.mxu0 0.0
    %889 = vmatpush2.xpose.msra.mxu0 0.0
    %890 = vmatprep.subr.mxu0 0.0
    %891 = vmatpush2.xpose.msra.mxu0 0.0
    %892 = vmatprep.mubr.f32.mxu0 0.0
    %893 = vmatmul.mubr.f32.gmra.mxu0 %v824
    %v894 = vpop.f32.mrf.mxu0
    %v895 = vadd.f32 0.0, %v894
    %v896 = vpop.f32.mrf.mxu0
    %897 = vdwg.mxu0
    %898 = vrot.lane.b32.xlu0 %v130, 112
    %v899 = vpop.permute.xlu0 %898
    %900 = vrot.lane.b32.xlu0 %v130, 80
    %v901 = vpop.permute.xlu0 %900
    %v902 = vsel %vm138, %v899, 0
    %v904 = vsel %vm138, %v901, 0
    %906 = vmatprep.subr.mxu0 0.0
    %907 = vmatpush1.xpose.msra.mxu0 0.0
    %908 = vmatprep.subr.mxu0 0.0
    %909 = vmatpush1.xpose.msra.mxu0 0.0
    %910 = vmatprep.subr.mxu0 0.0
    %911 = vmatpush1.xpose.msra.mxu0 0.0
    %912 = vmatprep.subr.mxu0 0.0
    %913 = vmatpush1.xpose.msra.mxu0 0.0
    %914 = vmatprep.subr.mxu0 0.0
    %915 = vmatpush1.xpose.msra.mxu0 0.0
    %916 = vmatprep.subr.mxu0 0.0
    %917 = vmatpush1.xpose.msra.mxu0 0.0
    %918 = vmatprep.subr.mxu0 0.0
    %919 = vmatpush1.xpose.msra.mxu0 0.0
    %920 = vmatprep.subr.mxu0 0.0
    %921 = vmatpush1.xpose.msra.mxu0 0.0
    %922 = vmatprep.subr.mxu0 0.0
    %923 = vmatpush1.xpose.msra.mxu0 0.0
    %924 = vmatprep.subr.mxu0 0.0
    %925 = vmatpush1.xpose.msra.mxu0 0.0
    %926 = vmatprep.subr.mxu0 0.0
    %927 = vmatpush1.xpose.msra.mxu0 0.0
    %928 = vmatprep.subr.mxu0 0.0
    %929 = vmatpush1.xpose.msra.mxu0 0.0
    %930 = vmatprep.subr.mxu0 0.0
    %931 = vmatpush1.xpose.msra.mxu0 0.0
    %932 = vmatprep.subr.mxu0 0.0
    %933 = vmatpush1.xpose.msra.mxu0 0.0
    %934 = vmatprep.subr.mxu0 0.0
    %935 = vmatpush1.xpose.msra.mxu0 0.0
    %936 = vmatprep.subr.mxu0 0.0
    %937 = vmatpush1.xpose.msra.mxu0 %v904
    %938 = vmatprep.subr.mxu0 0.0
    %939 = vmatpush2.xpose.msra.mxu0 0.0
    %940 = vmatprep.subr.mxu0 0.0
    %941 = vmatpush2.xpose.msra.mxu0 0.0
    %942 = vmatprep.subr.mxu0 0.0
    %943 = vmatpush2.xpose.msra.mxu0 0.0
    %944 = vmatprep.subr.mxu0 0.0
    %945 = vmatpush2.xpose.msra.mxu0 0.0
    %946 = vmatprep.subr.mxu0 0.0
    %947 = vmatpush2.xpose.msra.mxu0 0.0
    %948 = vmatprep.subr.mxu0 0.0
    %949 = vmatpush2.xpose.msra.mxu0 0.0
    %950 = vmatprep.subr.mxu0 0.0
    %951 = vmatpush2.xpose.msra.mxu0 0.0
    %952 = vmatprep.subr.mxu0 0.0
    %953 = vmatpush2.xpose.msra.mxu0 0.0
    %954 = vmatprep.subr.mxu0 0.0
    %955 = vmatpush2.xpose.msra.mxu0 0.0
    %956 = vmatprep.subr.mxu0 0.0
    %957 = vmatpush2.xpose.msra.mxu0 0.0
    %958 = vmatprep.subr.mxu0 0.0
    %959 = vmatpush2.xpose.msra.mxu0 0.0
    %960 = vmatprep.subr.mxu0 0.0
    %961 = vmatpush2.xpose.msra.mxu0 0.0
    %962 = vmatprep.subr.mxu0 0.0
    %963 = vmatpush2.xpose.msra.mxu0 0.0
    %964 = vmatprep.subr.mxu0 0.0
    %965 = vmatpush2.xpose.msra.mxu0 0.0
    %966 = vmatprep.subr.mxu0 0.0
    %967 = vmatpush2.xpose.msra.mxu0 0.0
    %968 = vmatprep.subr.mxu0 0.0
    %969 = vmatpush2.xpose.msra.mxu0 0.0
    %970 = vmatprep.mubr.f32.mxu0 0.0
    %971 = vmatmul.mubr.f32.gmra.mxu0 %v902
    %v972 = vpop.f32.mrf.mxu0
    %v973 = vadd.f32 0.0, %v972
    %v974 = vpop.f32.mrf.mxu0
    %975 = vdwg.mxu0
    %v976 = vmul.f32 %v895, 0.35355338
    %v977 = vmul.f32 %v973, 0.35355338
    %v978 = vsel %vm296, %v976, -1e+30
    %v979 = vsel %vm296, %v977, -1e+30
    %v980 = vsel %vm138, %v978, -inf
    %981 = vmax.xlane.f32.xlu0 %v980
    %v982 = vpop.xlane.xlu0 %981
    %v983 = vsel %vm138, %v979, -inf
    %984 = vmax.xlane.f32.xlu0 %v983
    %v985 = vpop.xlane.xlu0 %984
    %v986 = vsub.f32 %v978, %v982
    %v987 = vsub.f32 %v979, %v985
    %v988 = vmul.f32 %v986, 1.442695
    %v989 = vpow.pop %v988
    %v990 = vmul.f32 %v987, 1.442695
    %v991 = vpow.pop %v990
    %v992 = vsel %vm138, %v989, 0.0
    %993 = vadd.xlane.f32.xlu0 %v992
    %v994 = vpop.xlane.xlu0 %993
    %v995 = vsel %vm138, %v991, 0.0
    %996 = vadd.xlane.f32.xlu0 %v995
    %v997 = vpop.xlane.xlu0 %996
    %v998 = vrcp.pop %v994
    %v999 = vmul.f32 %v989, %v998
    %v1000 = vrcp.pop %v997
    %v1001 = vmul.f32 %v991, %v1000
    %1002 = vrot.lane.b32.xlu0 %v125, 48
    %v1003 = vpop.permute.xlu0 %1002
    %v1006 = vsel %vm138, %v999, 0
    %1008 = vmatprep.subr.mxu0 0.0
    %1009 = vmatpush1.msra.mxu0 0.0
    %1010 = vmatprep.subr.mxu0 0.0
    %1011 = vmatpush1.msra.mxu0 0.0
    %1012 = vmatprep.subr.mxu0 0.0
    %1013 = vmatpush1.msra.mxu0 0.0
    %1014 = vmatprep.subr.mxu0 0.0
    %1015 = vmatpush1.msra.mxu0 0.0
    %1016 = vmatprep.subr.mxu0 0.0
    %1017 = vmatpush1.msra.mxu0 0.0
    %1018 = vmatprep.subr.mxu0 0.0
    %1019 = vmatpush1.msra.mxu0 0.0
    %1020 = vmatprep.subr.mxu0 0.0
    %1021 = vmatpush1.msra.mxu0 0.0
    %1022 = vmatprep.subr.mxu0 0.0
    %1023 = vmatpush1.msra.mxu0 0.0
    %1024 = vmatprep.subr.mxu0 0.0
    %1025 = vmatpush1.msra.mxu0 0.0
    %1026 = vmatprep.subr.mxu0 0.0
    %1027 = vmatpush1.msra.mxu0 0.0
    %1028 = vmatprep.subr.mxu0 0.0
    %1029 = vmatpush1.msra.mxu0 0.0
    %1030 = vmatprep.subr.mxu0 0.0
    %1031 = vmatpush1.msra.mxu0 0.0
    %1032 = vmatprep.subr.mxu0 0.0
    %1033 = vmatpush1.msra.mxu0 0.0
    %1034 = vmatprep.subr.mxu0 0.0
    %1035 = vmatpush1.msra.mxu0 0.0
    %1036 = vmatprep.subr.mxu0 0.0
    %1037 = vmatpush1.msra.mxu0 0.0
    %1038 = vmatprep.subr.mxu0 0.0
    %1039 = vmatpush1.msra.mxu0 %v1003
    %1040 = vmatprep.subr.mxu0 0.0
    %1041 = vmatpush2.msra.mxu0 0.0
    %1042 = vmatprep.subr.mxu0 0.0
    %1043 = vmatpush2.msra.mxu0 0.0
    %1044 = vmatprep.subr.mxu0 0.0
    %1045 = vmatpush2.msra.mxu0 0.0
    %1046 = vmatprep.subr.mxu0 0.0
    %1047 = vmatpush2.msra.mxu0 0.0
    %1048 = vmatprep.subr.mxu0 0.0
    %1049 = vmatpush2.msra.mxu0 0.0
    %1050 = vmatprep.subr.mxu0 0.0
    %1051 = vmatpush2.msra.mxu0 0.0
    %1052 = vmatprep.subr.mxu0 0.0
    %1053 = vmatpush2.msra.mxu0 0.0
    %1054 = vmatprep.subr.mxu0 0.0
    %1055 = vmatpush2.msra.mxu0 0.0
    %1056 = vmatprep.subr.mxu0 0.0
    %1057 = vmatpush2.msra.mxu0 0.0
    %1058 = vmatprep.subr.mxu0 0.0
    %1059 = vmatpush2.msra.mxu0 0.0
    %1060 = vmatprep.subr.mxu0 0.0
    %1061 = vmatpush2.msra.mxu0 0.0
    %1062 = vmatprep.subr.mxu0 0.0
    %1063 = vmatpush2.msra.mxu0 0.0
    %1064 = vmatprep.subr.mxu0 0.0
    %1065 = vmatpush2.msra.mxu0 0.0
    %1066 = vmatprep.subr.mxu0 0.0
    %1067 = vmatpush2.msra.mxu0 0.0
    %1068 = vmatprep.subr.mxu0 0.0
    %1069 = vmatpush2.msra.mxu0 0.0
    %1070 = vmatprep.subr.mxu0 0.0
    %1071 = vmatpush2.msra.mxu0 0.0
    %1072 = vmatprep.mubr.f32.mxu0 0.0
    %1073 = vmatmul.mubr.f32.gmra.mxu0 %v1006
    %v1074 = vpop.f32.mrf.mxu0
    %v1075 = vadd.f32 0.0, %v1074
    %v1076 = vpop.f32.mrf.mxu0
    %1077 = vdwg.mxu0
    %1078 = vrot.lane.b32.xlu0 %v130, 48
    %v1079 = vpop.permute.xlu0 %1078
    %v1082 = vsel %vm138, %v1001, 0
    %1084 = vmatprep.subr.mxu0 0.0
    %1085 = vmatpush1.msra.mxu0 0.0
    %1086 = vmatprep.subr.mxu0 0.0
    %1087 = vmatpush1.msra.mxu0 0.0
    %1088 = vmatprep.subr.mxu0 0.0
    %1089 = vmatpush1.msra.mxu0 0.0
    %1090 = vmatprep.subr.mxu0 0.0
    %1091 = vmatpush1.msra.mxu0 0.0
    %1092 = vmatprep.subr.mxu0 0.0
    %1093 = vmatpush1.msra.mxu0 0.0
    %1094 = vmatprep.subr.mxu0 0.0
    %1095 = vmatpush1.msra.mxu0 0.0
    %1096 = vmatprep.subr.mxu0 0.0
    %1097 = vmatpush1.msra.mxu0 0.0
    %1098 = vmatprep.subr.mxu0 0.0
    %1099 = vmatpush1.msra.mxu0 0.0
    %1100 = vmatprep.subr.mxu0 0.0
    %1101 = vmatpush1.msra.mxu0 0.0
    %1102 = vmatprep.subr.mxu0 0.0
    %1103 = vmatpush1.msra.mxu0 0.0
    %1104 = vmatprep.subr.mxu0 0.0
    %1105 = vmatpush1.msra.mxu0 0.0
    %1106 = vmatprep.subr.mxu0 0.0
    %1107 = vmatpush1.msra.mxu0 0.0
    %1108 = vmatprep.subr.mxu0 0.0
    %1109 = vmatpush1.msra.mxu0 0.0
    %1110 = vmatprep.subr.mxu0 0.0
    %1111 = vmatpush1.msra.mxu0 0.0
    %1112 = vmatprep.subr.mxu0 0.0
    %1113 = vmatpush1.msra.mxu0 0.0
    %1114 = vmatprep.subr.mxu0 0.0
    %1115 = vmatpush1.msra.mxu0 %v1079
    %1116 = vmatprep.subr.mxu0 0.0
    %1117 = vmatpush2.msra.mxu0 0.0
    %1118 = vmatprep.subr.mxu0 0.0
    %1119 = vmatpush2.msra.mxu0 0.0
    %1120 = vmatprep.subr.mxu0 0.0
    %1121 = vmatpush2.msra.mxu0 0.0
    %1122 = vmatprep.subr.mxu0 0.0
    %1123 = vmatpush2.msra.mxu0 0.0
    %1124 = vmatprep.subr.mxu0 0.0
    %1125 = vmatpush2.msra.mxu0 0.0
    %1126 = vmatprep.subr.mxu0 0.0
    %1127 = vmatpush2.msra.mxu0 0.0
    %1128 = vmatprep.subr.mxu0 0.0
    %1129 = vmatpush2.msra.mxu0 0.0
    %1130 = vmatprep.subr.mxu0 0.0
    %1131 = vmatpush2.msra.mxu0 0.0
    %1132 = vmatprep.subr.mxu0 0.0
    %1133 = vmatpush2.msra.mxu0 0.0
    %1134 = vmatprep.subr.mxu0 0.0
    %1135 = vmatpush2.msra.mxu0 0.0
    %1136 = vmatprep.subr.mxu0 0.0
    %1137 = vmatpush2.msra.mxu0 0.0
    %1138 = vmatprep.subr.mxu0 0.0
    %1139 = vmatpush2.msra.mxu0 0.0
    %1140 = vmatprep.subr.mxu0 0.0
    %1141 = vmatpush2.msra.mxu0 0.0
    %1142 = vmatprep.subr.mxu0 0.0
    %1143 = vmatpush2.msra.mxu0 0.0
    %1144 = vmatprep.subr.mxu0 0.0
    %1145 = vmatpush2.msra.mxu0 0.0
    %1146 = vmatprep.subr.mxu0 0.0
    %1147 = vmatpush2.msra.mxu0 0.0
    %1148 = vmatprep.mubr.f32.mxu0 0.0
    %1149 = vmatmul.mubr.f32.gmra.mxu0 %v1082
    %v1150 = vpop.f32.mrf.mxu0
    %v1151 = vadd.f32 0.0, %v1150
    %v1152 = vpop.f32.mrf.mxu0
    %1153 = vdwg.mxu0
    %1156 = vrot.lane.b32.xlu0 %v1075, 16
    %v1157 = vpop.permute.xlu0 %1156
    %1158 = vrot.lane.b32.xlu0 %v1151, 16
    %v1159 = vpop.permute.xlu0 %1158
    %vm1162 = vcmask 195712
    %1163 = vst.msk [vmem:[#allocation2] sm:$0xff] %vm1162, %v1157
    %1164 = vst.msk [vmem:[#allocation2 + $0x8] sm:$0xff] %vm1162, %v1159
    %1165 = vrot.lane.b32.xlu0 %v125, 104
    %v1166 = vpop.permute.xlu0 %1165
    %1167 = vrot.lane.b32.xlu0 %v125, 72
    %v1168 = vpop.permute.xlu0 %1167
    %v1169 = vsel %vm138, %v1166, 0
    %v1171 = vsel %vm138, %v1168, 0
    %1173 = vmatprep.subr.mxu0 0.0
    %1174 = vmatpush1.xpose.msra.mxu0 0.0
    %1175 = vmatprep.subr.mxu0 0.0
    %1176 = vmatpush1.xpose.msra.mxu0 0.0
    %1177 = vmatprep.subr.mxu0 0.0
    %1178 = vmatpush1.xpose.msra.mxu0 0.0
    %1179 = vmatprep.subr.mxu0 0.0
    %1180 = vmatpush1.xpose.msra.mxu0 0.0
    %1181 = vmatprep.subr.mxu0 0.0
    %1182 = vmatpush1.xpose.msra.mxu0 0.0
    %1183 = vmatprep.subr.mxu0 0.0
    %1184 = vmatpush1.xpose.msra.mxu0 0.0
    %1185 = vmatprep.subr.mxu0 0.0
    %1186 = vmatpush1.xpose.msra.mxu0 0.0
    %1187 = vmatprep.subr.mxu0 0.0
    %1188 = vmatpush1.xpose.msra.mxu0 0.0
    %1189 = vmatprep.subr.mxu0 0.0
    %1190 = vmatpush1.xpose.msra.mxu0 0.0
    %1191 = vmatprep.subr.mxu0 0.0
    %1192 = vmatpush1.xpose.msra.mxu0 0.0
    %1193 = vmatprep.subr.mxu0 0.0
    %1194 = vmatpush1.xpose.msra.mxu0 0.0
    %1195 = vmatprep.subr.mxu0 0.0
    %1196 = vmatpush1.xpose.msra.mxu0 0.0
    %1197 = vmatprep.subr.mxu0 0.0
    %1198 = vmatpush1.xpose.msra.mxu0 0.0
    %1199 = vmatprep.subr.mxu0 0.0
    %1200 = vmatpush1.xpose.msra.mxu0 0.0
    %1201 = vmatprep.subr.mxu0 0.0
    %1202 = vmatpush1.xpose.msra.mxu0 0.0
    %1203 = vmatprep.subr.mxu0 0.0
    %1204 = vmatpush1.xpose.msra.mxu0 %v1171
    %1205 = vmatprep.subr.mxu0 0.0
    %1206 = vmatpush2.xpose.msra.mxu0 0.0
    %1207 = vmatprep.subr.mxu0 0.0
    %1208 = vmatpush2.xpose.msra.mxu0 0.0
    %1209 = vmatprep.subr.mxu0 0.0
    %1210 = vmatpush2.xpose.msra.mxu0 0.0
    %1211 = vmatprep.subr.mxu0 0.0
    %1212 = vmatpush2.xpose.msra.mxu0 0.0
    %1213 = vmatprep.subr.mxu0 0.0
    %1214 = vmatpush2.xpose.msra.mxu0 0.0
    %1215 = vmatprep.subr.mxu0 0.0
    %1216 = vmatpush2.xpose.msra.mxu0 0.0
    %1217 = vmatprep.subr.mxu0 0.0
    %1218 = vmatpush2.xpose.msra.mxu0 0.0
    %1219 = vmatprep.subr.mxu0 0.0
    %1220 = vmatpush2.xpose.msra.mxu0 0.0
    %1221 = vmatprep.subr.mxu0 0.0
    %1222 = vmatpush2.xpose.msra.mxu0 0.0
    %1223 = vmatprep.subr.mxu0 0.0
    %1224 = vmatpush2.xpose.msra.mxu0 0.0
    %1225 = vmatprep.subr.mxu0 0.0
    %1226 = vmatpush2.xpose.msra.mxu0 0.0
    %1227 = vmatprep.subr.mxu0 0.0
    %1228 = vmatpush2.xpose.msra.mxu0 0.0
    %1229 = vmatprep.subr.mxu0 0.0
    %1230 = vmatpush2.xpose.msra.mxu0 0.0
    %1231 = vmatprep.subr.mxu0 0.0
    %1232 = vmatpush2.xpose.msra.mxu0 0.0
    %1233 = vmatprep.subr.mxu0 0.0
    %1234 = vmatpush2.xpose.msra.mxu0 0.0
    %1235 = vmatprep.subr.mxu0 0.0
    %1236 = vmatpush2.xpose.msra.mxu0 0.0
    %1237 = vmatprep.mubr.f32.mxu0 0.0
    %1238 = vmatmul.mubr.f32.gmra.mxu0 %v1169
    %v1239 = vpop.f32.mrf.mxu0
    %v1240 = vadd.f32 0.0, %v1239
    %v1241 = vpop.f32.mrf.mxu0
    %1242 = vdwg.mxu0
    %1243 = vrot.lane.b32.xlu0 %v130, 104
    %v1244 = vpop.permute.xlu0 %1243
    %1245 = vrot.lane.b32.xlu0 %v130, 72
    %v1246 = vpop.permute.xlu0 %1245
    %v1247 = vsel %vm138, %v1244, 0
    %v1249 = vsel %vm138, %v1246, 0
    %1251 = vmatprep.subr.mxu0 0.0
    %1252 = vmatpush1.xpose.msra.mxu0 0.0
    %1253 = vmatprep.subr.mxu0 0.0
    %1254 = vmatpush1.xpose.msra.mxu0 0.0
    %1255 = vmatprep.subr.mxu0 0.0
    %1256 = vmatpush1.xpose.msra.mxu0 0.0
    %1257 = vmatprep.subr.mxu0 0.0
    %1258 = vmatpush1.xpose.msra.mxu0 0.0
    %1259 = vmatprep.subr.mxu0 0.0
    %1260 = vmatpush1.xpose.msra.mxu0 0.0
    %1261 = vmatprep.subr.mxu0 0.0
    %1262 = vmatpush1.xpose.msra.mxu0 0.0
    %1263 = vmatprep.subr.mxu0 0.0
    %1264 = vmatpush1.xpose.msra.mxu0 0.0
    %1265 = vmatprep.subr.mxu0 0.0
    %1266 = vmatpush1.xpose.msra.mxu0 0.0
    %1267 = vmatprep.subr.mxu0 0.0
    %1268 = vmatpush1.xpose.msra.mxu0 0.0
    %1269 = vmatprep.subr.mxu0 0.0
    %1270 = vmatpush1.xpose.msra.mxu0 0.0
    %1271 = vmatprep.subr.mxu0 0.0
    %1272 = vmatpush1.xpose.msra.mxu0 0.0
    %1273 = vmatprep.subr.mxu0 0.0
    %1274 = vmatpush1.xpose.msra.mxu0 0.0
    %1275 = vmatprep.subr.mxu0 0.0
    %1276 = vmatpush1.xpose.msra.mxu0 0.0
    %1277 = vmatprep.subr.mxu0 0.0
    %1278 = vmatpush1.xpose.msra.mxu0 0.0
    %1279 = vmatprep.subr.mxu0 0.0
    %1280 = vmatpush1.xpose.msra.mxu0 0.0
    %1281 = vmatprep.subr.mxu0 0.0
    %1282 = vmatpush1.xpose.msra.mxu0 %v1249
    %1283 = vmatprep.subr.mxu0 0.0
    %1284 = vmatpush2.xpose.msra.mxu0 0.0
    %1285 = vmatprep.subr.mxu0 0.0
    %1286 = vmatpush2.xpose.msra.mxu0 0.0
    %1287 = vmatprep.subr.mxu0 0.0
    %1288 = vmatpush2.xpose.msra.mxu0 0.0
    %1289 = vmatprep.subr.mxu0 0.0
    %1290 = vmatpush2.xpose.msra.mxu0 0.0
    %1291 = vmatprep.subr.mxu0 0.0
    %1292 = vmatpush2.xpose.msra.mxu0 0.0
    %1293 = vmatprep.subr.mxu0 0.0
    %1294 = vmatpush2.xpose.msra.mxu0 0.0
    %1295 = vmatprep.subr.mxu0 0.0
    %1296 = vmatpush2.xpose.msra.mxu0 0.0
    %1297 = vmatprep.subr.mxu0 0.0
    %1298 = vmatpush2.xpose.msra.mxu0 0.0
    %1299 = vmatprep.subr.mxu0 0.0
    %1300 = vmatpush2.xpose.msra.mxu0 0.0
    %1301 = vmatprep.subr.mxu0 0.0
    %1302 = vmatpush2.xpose.msra.mxu0 0.0
    %1303 = vmatprep.subr.mxu0 0.0
    %1304 = vmatpush2.xpose.msra.mxu0 0.0
    %1305 = vmatprep.subr.mxu0 0.0
    %1306 = vmatpush2.xpose.msra.mxu0 0.0
    %1307 = vmatprep.subr.mxu0 0.0
    %1308 = vmatpush2.xpose.msra.mxu0 0.0
    %1309 = vmatprep.subr.mxu0 0.0
    %1310 = vmatpush2.xpose.msra.mxu0 0.0
    %1311 = vmatprep.subr.mxu0 0.0
    %1312 = vmatpush2.xpose.msra.mxu0 0.0
    %1313 = vmatprep.subr.mxu0 0.0
    %1314 = vmatpush2.xpose.msra.mxu0 0.0
    %1315 = vmatprep.mubr.f32.mxu0 0.0
    %1316 = vmatmul.mubr.f32.gmra.mxu0 %v1247
    %v1317 = vpop.f32.mrf.mxu0
    %v1318 = vadd.f32 0.0, %v1317
    %v1319 = vpop.f32.mrf.mxu0
    %1320 = vdwg.mxu0
    %v1321 = vmul.f32 %v1240, 0.35355338
    %v1322 = vmul.f32 %v1318, 0.35355338
    %v1323 = vsel %vm296, %v1321, -1e+30
    %v1324 = vsel %vm296, %v1322, -1e+30
    %v1325 = vsel %vm138, %v1323, -inf
    %1326 = vmax.xlane.f32.xlu0 %v1325
    %v1327 = vpop.xlane.xlu0 %1326
    %v1328 = vsel %vm138, %v1324, -inf
    %1329 = vmax.xlane.f32.xlu0 %v1328
    %v1330 = vpop.xlane.xlu0 %1329
    %v1331 = vsub.f32 %v1323, %v1327
    %v1332 = vsub.f32 %v1324, %v1330
    %v1333 = vmul.f32 %v1331, 1.442695
    %v1334 = vpow.pop %v1333
    %v1335 = vmul.f32 %v1332, 1.442695
    %v1336 = vpow.pop %v1335
    %v1337 = vsel %vm138, %v1334, 0.0
    %1338 = vadd.xlane.f32.xlu0 %v1337
    %v1339 = vpop.xlane.xlu0 %1338
    %v1340 = vsel %vm138, %v1336, 0.0
    %1341 = vadd.xlane.f32.xlu0 %v1340
    %v1342 = vpop.xlane.xlu0 %1341
    %v1343 = vrcp.pop %v1339
    %v1344 = vmul.f32 %v1334, %v1343
    %v1345 = vrcp.pop %v1342
    %v1346 = vmul.f32 %v1336, %v1345
    %1347 = vrot.lane.b32.xlu0 %v125, 40
    %v1348 = vpop.permute.xlu0 %1347
    %v1351 = vsel %vm138, %v1344, 0
    %1353 = vmatprep.subr.mxu0 0.0
    %1354 = vmatpush1.msra.mxu0 0.0
    %1355 = vmatprep.subr.mxu0 0.0
    %1356 = vmatpush1.msra.mxu0 0.0
    %1357 = vmatprep.subr.mxu0 0.0
    %1358 = vmatpush1.msra.mxu0 0.0
    %1359 = vmatprep.subr.mxu0 0.0
    %1360 = vmatpush1.msra.mxu0 0.0
    %1361 = vmatprep.subr.mxu0 0.0
    %1362 = vmatpush1.msra.mxu0 0.0
    %1363 = vmatprep.subr.mxu0 0.0
    %1364 = vmatpush1.msra.mxu0 0.0
    %1365 = vmatprep.subr.mxu0 0.0
    %1366 = vmatpush1.msra.mxu0 0.0
    %1367 = vmatprep.subr.mxu0 0.0
    %1368 = vmatpush1.msra.mxu0 0.0
    %1369 = vmatprep.subr.mxu0 0.0
    %1370 = vmatpush1.msra.mxu0 0.0
    %1371 = vmatprep.subr.mxu0 0.0
    %1372 = vmatpush1.msra.mxu0 0.0
    %1373 = vmatprep.subr.mxu0 0.0
    %1374 = vmatpush1.msra.mxu0 0.0
    %1375 = vmatprep.subr.mxu0 0.0
    %1376 = vmatpush1.msra.mxu0 0.0
    %1377 = vmatprep.subr.mxu0 0.0
    %1378 = vmatpush1.msra.mxu0 0.0
    %1379 = vmatprep.subr.mxu0 0.0
    %1380 = vmatpush1.msra.mxu0 0.0
    %1381 = vmatprep.subr.mxu0 0.0
    %1382 = vmatpush1.msra.mxu0 0.0
    %1383 = vmatprep.subr.mxu0 0.0
    %1384 = vmatpush1.msra.mxu0 %v1348
    %1385 = vmatprep.subr.mxu0 0.0
    %1386 = vmatpush2.msra.mxu0 0.0
    %1387 = vmatprep.subr.mxu0 0.0
    %1388 = vmatpush2.msra.mxu0 0.0
    %1389 = vmatprep.subr.mxu0 0.0
    %1390 = vmatpush2.msra.mxu0 0.0
    %1391 = vmatprep.subr.mxu0 0.0
    %1392 = vmatpush2.msra.mxu0 0.0
    %1393 = vmatprep.subr.mxu0 0.0
    %1394 = vmatpush2.msra.mxu0 0.0
    %1395 = vmatprep.subr.mxu0 0.0
    %1396 = vmatpush2.msra.mxu0 0.0
    %1397 = vmatprep.subr.mxu0 0.0
    %1398 = vmatpush2.msra.mxu0 0.0
    %1399 = vmatprep.subr.mxu0 0.0
    %1400 = vmatpush2.msra.mxu0 0.0
    %1401 = vmatprep.subr.mxu0 0.0
    %1402 = vmatpush2.msra.mxu0 0.0
    %1403 = vmatprep.subr.mxu0 0.0
    %1404 = vmatpush2.msra.mxu0 0.0
    %1405 = vmatprep.subr.mxu0 0.0
    %1406 = vmatpush2.msra.mxu0 0.0
    %1407 = vmatprep.subr.mxu0 0.0
    %1408 = vmatpush2.msra.mxu0 0.0
    %1409 = vmatprep.subr.mxu0 0.0
    %1410 = vmatpush2.msra.mxu0 0.0
    %1411 = vmatprep.subr.mxu0 0.0
    %1412 = vmatpush2.msra.mxu0 0.0
    %1413 = vmatprep.subr.mxu0 0.0
    %1414 = vmatpush2.msra.mxu0 0.0
    %1415 = vmatprep.subr.mxu0 0.0
    %1416 = vmatpush2.msra.mxu0 0.0
    %1417 = vmatprep.mubr.f32.mxu0 0.0
    %1418 = vmatmul.mubr.f32.gmra.mxu0 %v1351
    %v1419 = vpop.f32.mrf.mxu0
    %v1420 = vadd.f32 0.0, %v1419
    %v1421 = vpop.f32.mrf.mxu0
    %1422 = vdwg.mxu0
    %1423 = vrot.lane.b32.xlu0 %v130, 40
    %v1424 = vpop.permute.xlu0 %1423
    %v1427 = vsel %vm138, %v1346, 0
    %1429 = vmatprep.subr.mxu0 0.0
    %1430 = vmatpush1.msra.mxu0 0.0
    %1431 = vmatprep.subr.mxu0 0.0
    %1432 = vmatpush1.msra.mxu0 0.0
    %1433 = vmatprep.subr.mxu0 0.0
    %1434 = vmatpush1.msra.mxu0 0.0
    %1435 = vmatprep.subr.mxu0 0.0
    %1436 = vmatpush1.msra.mxu0 0.0
    %1437 = vmatprep.subr.mxu0 0.0
    %1438 = vmatpush1.msra.mxu0 0.0
    %1439 = vmatprep.subr.mxu0 0.0
    %1440 = vmatpush1.msra.mxu0 0.0
    %1441 = vmatprep.subr.mxu0 0.0
    %1442 = vmatpush1.msra.mxu0 0.0
    %1443 = vmatprep.subr.mxu0 0.0
    %1444 = vmatpush1.msra.mxu0 0.0
    %1445 = vmatprep.subr.mxu0 0.0
    %1446 = vmatpush1.msra.mxu0 0.0
    %1447 = vmatprep.subr.mxu0 0.0
    %1448 = vmatpush1.msra.mxu0 0.0
    %1449 = vmatprep.subr.mxu0 0.0
    %1450 = vmatpush1.msra.mxu0 0.0
    %1451 = vmatprep.subr.mxu0 0.0
    %1452 = vmatpush1.msra.mxu0 0.0
    %1453 = vmatprep.subr.mxu0 0.0
    %1454 = vmatpush1.msra.mxu0 0.0
    %1455 = vmatprep.subr.mxu0 0.0
    %1456 = vmatpush1.msra.mxu0 0.0
    %1457 = vmatprep.subr.mxu0 0.0
    %1458 = vmatpush1.msra.mxu0 0.0
    %1459 = vmatprep.subr.mxu0 0.0
    %1460 = vmatpush1.msra.mxu0 %v1424
    %1461 = vmatprep.subr.mxu0 0.0
    %1462 = vmatpush2.msra.mxu0 0.0
    %1463 = vmatprep.subr.mxu0 0.0
    %1464 = vmatpush2.msra.mxu0 0.0
    %1465 = vmatprep.subr.mxu0 0.0
    %1466 = vmatpush2.msra.mxu0 0.0
    %1467 = vmatprep.subr.mxu0 0.0
    %1468 = vmatpush2.msra.mxu0 0.0
    %1469 = vmatprep.subr.mxu0 0.0
    %1470 = vmatpush2.msra.mxu0 0.0
    %1471 = vmatprep.subr.mxu0 0.0
    %1472 = vmatpush2.msra.mxu0 0.0
    %1473 = vmatprep.subr.mxu0 0.0
    %1474 = vmatpush2.msra.mxu0 0.0
    %1475 = vmatprep.subr.mxu0 0.0
    %1476 = vmatpush2.msra.mxu0 0.0
    %1477 = vmatprep.subr.mxu0 0.0
    %1478 = vmatpush2.msra.mxu0 0.0
    %1479 = vmatprep.subr.mxu0 0.0
    %1480 = vmatpush2.msra.mxu0 0.0
    %1481 = vmatprep.subr.mxu0 0.0
    %1482 = vmatpush2.msra.mxu0 0.0
    %1483 = vmatprep.subr.mxu0 0.0
    %1484 = vmatpush2.msra.mxu0 0.0
    %1485 = vmatprep.subr.mxu0 0.0
    %1486 = vmatpush2.msra.mxu0 0.0
    %1487 = vmatprep.subr.mxu0 0.0
    %1488 = vmatpush2.msra.mxu0 0.0
    %1489 = vmatprep.subr.mxu0 0.0
    %1490 = vmatpush2.msra.mxu0 0.0
    %1491 = vmatprep.subr.mxu0 0.0
    %1492 = vmatpush2.msra.mxu0 0.0
    %1493 = vmatprep.mubr.f32.mxu0 0.0
    %1494 = vmatmul.mubr.f32.gmra.mxu0 %v1427
    %v1495 = vpop.f32.mrf.mxu0
    %v1496 = vadd.f32 0.0, %v1495
    %v1497 = vpop.f32.mrf.mxu0
    %1498 = vdwg.mxu0
    %1501 = vrot.lane.b32.xlu0 %v1420, 24
    %v1502 = vpop.permute.xlu0 %1501
    %1503 = vrot.lane.b32.xlu0 %v1496, 24
    %v1504 = vpop.permute.xlu0 %1503
    %vm1507 = vcmask 261312
    %1508 = vst.msk [vmem:[#allocation2] sm:$0xff] %vm1507, %v1502
    %1509 = vst.msk [vmem:[#allocation2 + $0x8] sm:$0xff] %vm1507, %v1504
    %v1510 = vld [vmem:[#allocation2] sm:$0xff]
    %v1511 = vld [vmem:[#allocation2 + $0x8] sm:$0xff]
    %v1512 = vadd.f32 %v45, %v1510
    %v1513 = vadd.f32 %v46, %v1511
    %v1514 = vsel %vm51, %v1512, 0.0
    %1515 = vadd.xlane.f32.xlu0 %v1514
    %v1516 = vpop.xlane.xlu0 %1515
    %v1517 = vsel %vm51, %v1513, 0.0
    %1518 = vadd.xlane.f32.xlu0 %v1517
    %v1519 = vpop.xlane.xlu0 %1518
    %v1520 = vrcp.pop 32.0
    %v1521 = vmul.f32 %v1516, %v1520
    %v1522 = vmul.f32 %v1519, %v1520
    %v1523 = vsub.f32 %v1512, %v1521
    %v1524 = vsub.f32 %v1513, %v1522
    %v1525 = vmul.f32 %v1523, %v1523
    %v1526 = vmul.f32 %v1524, %v1524
    %v1527 = vsel %vm51, %v1525, 0.0
    %1528 = vadd.xlane.f32.xlu0 %v1527
    %v1529 = vpop.xlane.xlu0 %1528
    %v1530 = vsel %vm51, %v1526, 0.0
    %1531 = vadd.xlane.f32.xlu0 %v1530
    %v1532 = vpop.xlane.xlu0 %1531
    %v1533 = vmul.f32 %v1529, %v1520
    %v1534 = vmul.f32 %v1532, %v1520
    %v1535 = vadd.f32 %v1533, 1e-05
    %v1536 = vadd.f32 %v1534, 1e-05
    %v1537 = vrsqrt.pop %v1535
    %v1538 = vrsqrt.pop %v1536
    %v1539 = vmul.f32 %v1523, %v1537
    %v1540 = vmul.f32 %v1524, %v1538
    %v1541 = vld [vmem:[%s8] sm:$0x1]
    %v1543 = vlaneseq
    %v1544 = vshrl.u32 %v1543, 7
    %v1545 = vsub.s32 0, %v1544
    %v1546 = vrot.slane %v1541, %v1545
    %v1548 = vmul.f32 %v1539, %v1546
    %v1549 = vmul.f32 %v1540, %v1546
    %v1550 = vld [vmem:[%s9] sm:$0x1]
    %v1552 = vlaneseq
    %v1553 = vshrl.u32 %v1552, 7
    %v1554 = vsub.s32 0, %v1553
    %v1555 = vrot.slane %v1550, %v1554
    %v1557 = vadd.f32 %v1548, %v1555
    %v1558 = vadd.f32 %v1549, %v1555
    %v1559 = vld [vmem:[%s4] sm:$0xff]
    %v1560 = vld [vmem:[%s4 + $0x8] sm:$0xff]
    %v1561 = vld [vmem:[%s4 + $0x10] sm:$0xff]
    %v1562 = vld [vmem:[%s4 + $0x18] sm:$0xff]
    %v1563 = vld [vmem:[%s5] sm:$0x1]
    %v1565 = vlaneseq
    %v1566 = vshrl.u32 %v1565, 7
    %v1567 = vsub.s32 0, %v1566
    %v1568 = vrot.slane %v1563, %v1567
    %v1571 = vsel %vm51, %v1557, 0
    %v1574 = vsel %vm51, %v1558, 0
    %1576 = vmatprep.subr.mxu0 0.0
    %1577 = vmatpush1.msra.mxu0 0.0
    %1578 = vmatprep.subr.mxu0 0.0
    %1579 = vmatpush1.msra.mxu0 0.0
    %1580 = vmatprep.subr.mxu0 0.0
    %1581 = vmatpush1.msra.mxu0 0.0
    %1582 = vmatprep.subr.mxu0 0.0
    %1583 = vmatpush1.msra.mxu0 0.0
    %1584 = vmatprep.subr.mxu0 0.0
    %1585 = vmatpush1.msra.mxu0 0.0
    %1586 = vmatprep.subr.mxu0 0.0
    %1587 = vmatpush1.msra.mxu0 0.0
    %1588 = vmatprep.subr.mxu0 0.0
    %1589 = vmatpush1.msra.mxu0 0.0
    %1590 = vmatprep.subr.mxu0 0.0
    %1591 = vmatpush1.msra.mxu0 0.0
    %1592 = vmatprep.subr.mxu0 0.0
    %1593 = vmatpush1.msra.mxu0 0.0
    %1594 = vmatprep.subr.mxu0 0.0
    %1595 = vmatpush1.msra.mxu0 0.0
    %1596 = vmatprep.subr.mxu0 0.0
    %1597 = vmatpush1.msra.mxu0 0.0
    %1598 = vmatprep.subr.mxu0 0.0
    %1599 = vmatpush1.msra.mxu0 0.0
    %1600 = vmatprep.subr.mxu0 0.0
    %1601 = vmatpush1.msra.mxu0 %v1562
    %1602 = vmatprep.subr.mxu0 0.0
    %1603 = vmatpush1.msra.mxu0 %v1561
    %1604 = vmatprep.subr.mxu0 0.0
    %1605 = vmatpush1.msra.mxu0 %v1560
    %1606 = vmatprep.subr.mxu0 0.0
    %1607 = vmatpush1.msra.mxu0 %v1559
    %1608 = vmatprep.subr.mxu0 0.0
    %1609 = vmatpush2.msra.mxu0 0.0
    %1610 = vmatprep.subr.mxu0 0.0
    %1611 = vmatpush2.msra.mxu0 0.0
    %1612 = vmatprep.subr.mxu0 0.0
    %1613 = vmatpush2.msra.mxu0 0.0
    %1614 = vmatprep.subr.mxu0 0.0
    %1615 = vmatpush2.msra.mxu0 0.0
    %1616 = vmatprep.subr.mxu0 0.0
    %1617 = vmatpush2.msra.mxu0 0.0
    %1618 = vmatprep.subr.mxu0 0.0
    %1619 = vmatpush2.msra.mxu0 0.0
    %1620 = vmatprep.subr.mxu0 0.0
    %1621 = vmatpush2.msra.mxu0 0.0
    %1622 = vmatprep.subr.mxu0 0.0
    %1623 = vmatpush2.msra.mxu0 0.0
    %1624 = vmatprep.subr.mxu0 0.0
    %1625 = vmatpush2.msra.mxu0 0.0
    %1626 = vmatprep.subr.mxu0 0.0
    %1627 = vmatpush2.msra.mxu0 0.0
    %1628 = vmatprep.subr.mxu0 0.0
    %1629 = vmatpush2.msra.mxu0 0.0
    %1630 = vmatprep.subr.mxu0 0.0
    %1631 = vmatpush2.msra.mxu0 0.0
    %1632 = vmatprep.subr.mxu0 0.0
    %1633 = vmatpush2.msra.mxu0 0.0
    %1634 = vmatprep.subr.mxu0 0.0
    %1635 = vmatpush2.msra.mxu0 0.0
    %1636 = vmatprep.subr.mxu0 0.0
    %1637 = vmatpush2.msra.mxu0 0.0
    %1638 = vmatprep.subr.mxu0 0.0
    %1639 = vmatpush2.msra.mxu0 0.0
    %1640 = vmatprep.mubr.f32.mxu0 0.0
    %1641 = vmatmul.mubr.f32.gmra.mxu0 %v1571
    %v1642 = vpop.f32.mrf.mxu0
    %v1643 = vadd.f32 %v1568, %v1642
    %v1644 = vpop.f32.mrf.mxu0
    %1645 = vmatprep.mubr.f32.mxu0 0.0
    %1646 = vmatmul.mubr.f32.gmra.mxu0 %v1574
    %v1647 = vpop.f32.mrf.mxu0
    %v1648 = vadd.f32 %v1568, %v1647
    %v1649 = vpop.f32.mrf.mxu0
    %1650 = vdwg.mxu0
    %v1651 = vmax.f32 %v1643, 0.0
    %v1652 = vmax.f32 %v1648, 0.0
    %v1653 = vld [vmem:[%s6] sm:$0xff]
    %v1654 = vld [vmem:[%s6 + $0x8] sm:$0xff]
    %v1655 = vld [vmem:[%s6 + $0x10] sm:$0xff]
    %v1656 = vld [vmem:[%s6 + $0x18] sm:$0xff]
    %v1657 = vld [vmem:[%s6 + $0x20] sm:$0xff]
    %v1658 = vld [vmem:[%s6 + $0x28] sm:$0xff]
    %v1659 = vld [vmem:[%s6 + $0x30] sm:$0xff]
    %v1660 = vld [vmem:[%s6 + $0x38] sm:$0xff]
    %v1661 = vld [vmem:[%s7] sm:$0x1]
    %v1663 = vlaneseq
    %v1664 = vshrl.u32 %v1663, 7
    %v1665 = vsub.s32 0, %v1664
    %v1666 = vrot.slane %v1661, %v1665
    %vm1668 = vcmask 523264
    %v1670 = vsel %vm1668, %v1651, 0
    %v1673 = vsel %vm1668, %v1652, 0
    %1675 = vmatprep.subr.mxu0 0.0
    %1676 = vmatpush1.msra.mxu0 0.0
    %1677 = vmatprep.subr.mxu0 0.0
    %1678 = vmatpush1.msra.mxu0 0.0
    %1679 = vmatprep.subr.mxu0 0.0
    %1680 = vmatpush1.msra.mxu0 0.0
    %1681 = vmatprep.subr.mxu0 0.0
    %1682 = vmatpush1.msra.mxu0 0.0
    %1683 = vmatprep.subr.mxu0 0.0
    %1684 = vmatpush1.msra.mxu0 0.0
    %1685 = vmatprep.subr.mxu0 0.0
    %1686 = vmatpush1.msra.mxu0 0.0
    %1687 = vmatprep.subr.mxu0 0.0
    %1688 = vmatpush1.msra.mxu0 0.0
    %1689 = vmatprep.subr.mxu0 0.0
    %1690 = vmatpush1.msra.mxu0 0.0
    %1691 = vmatprep.subr.mxu0 0.0
    %1692 = vmatpush1.msra.mxu0 %v1660
    %1693 = vmatprep.subr.mxu0 0.0
    %1694 = vmatpush1.msra.mxu0 %v1659
    %1695 = vmatprep.subr.mxu0 0.0
    %1696 = vmatpush1.msra.mxu0 %v1658
    %1697 = vmatprep.subr.mxu0 0.0
    %1698 = vmatpush1.msra.mxu0 %v1657
    %1699 = vmatprep.subr.mxu0 0.0
    %1700 = vmatpush1.msra.mxu0 %v1656
    %1701 = vmatprep.subr.mxu0 0.0
    %1702 = vmatpush1.msra.mxu0 %v1655
    %1703 = vmatprep.subr.mxu0 0.0
    %1704 = vmatpush1.msra.mxu0 %v1654
    %1705 = vmatprep.subr.mxu0 0.0
    %1706 = vmatpush1.msra.mxu0 %v1653
    %1707 = vmatprep.subr.mxu0 0.0
    %1708 = vmatpush2.msra.mxu0 0.0
    %1709 = vmatprep.subr.mxu0 0.0
    %1710 = vmatpush2.msra.mxu0 0.0
    %1711 = vmatprep.subr.mxu0 0.0
    %1712 = vmatpush2.msra.mxu0 0.0
    %1713 = vmatprep.subr.mxu0 0.0
    %1714 = vmatpush2.msra.mxu0 0.0
    %1715 = vmatprep.subr.mxu0 0.0
    %1716 = vmatpush2.msra.mxu0 0.0
    %1717 = vmatprep.subr.mxu0 0.0
    %1718 = vmatpush2.msra.mxu0 0.0
    %1719 = vmatprep.subr.mxu0 0.0
    %1720 = vmatpush2.msra.mxu0 0.0
    %1721 = vmatprep.subr.mxu0 0.0
    %1722 = vmatpush2.msra.mxu0 0.0
    %1723 = vmatprep.subr.mxu0 0.0
    %1724 = vmatpush2.msra.mxu0 0.0
    %1725 = vmatprep.subr.mxu0 0.0
    %1726 = vmatpush2.msra.mxu0 0.0
    %1727 = vmatprep.subr.mxu0 0.0
    %1728 = vmatpush2.msra.mxu0 0.0
    %1729 = vmatprep.subr.mxu0 0.0
    %1730 = vmatpush2.msra.mxu0 0.0
    %1731 = vmatprep.subr.mxu0 0.0
    %1732 = vmatpush2.msra.mxu0 0.0
    %1733 = vmatprep.subr.mxu0 0.0
    %1734 = vmatpush2.msra.mxu0 0.0
    %1735 = vmatprep.subr.mxu0 0.0
    %1736 = vmatpush2.msra.mxu0 0.0
    %1737 = vmatprep.subr.mxu0 0.0
    %1738 = vmatpush2.msra.mxu0 0.0
    %1739 = vmatprep.mubr.f32.mxu0 0.0
    %1740 = vmatmul.mubr.f32.gmra.mxu0 %v1670
    %v1741 = vpop.f32.mrf.mxu0
    %v1742 = vadd.f32 %v1666, %v1741
    %v1743 = vpop.f32.mrf.mxu0
    %1744 = vmatprep.mubr.f32.mxu0 0.0
    %1745 = vmatmul.mubr.f32.gmra.mxu0 %v1673
    %v1746 = vpop.f32.mrf.mxu0
    %v1747 = vadd.f32 %v1666, %v1746
    %v1748 = vpop.f32.mrf.mxu0
    %1749 = vdwg.mxu0
    %v1750 = vadd.f32 %v1557, %v1742
    %v1751 = vadd.f32 %v1558, %v1747
    %v1752 = vsel %vm51, %v1750, 0.0
    %1753 = vadd.xlane.f32.xlu0 %v1752
    %v1754 = vpop.xlane.xlu0 %1753
    %v1755 = vsel %vm51, %v1751, 0.0
    %1756 = vadd.xlane.f32.xlu0 %v1755
    %v1757 = vpop.xlane.xlu0 %1756
    %v1758 = vmul.f32 %v1754, %v1520
    %v1759 = vmul.f32 %v1757, %v1520
    %v1760 = vsub.f32 %v1750, %v1758
    %v1761 = vsub.f32 %v1751, %v1759
    %v1762 = vmul.f32 %v1760, %v1760
    %v1763 = vmul.f32 %v1761, %v1761
    %v1764 = vsel %vm51, %v1762, 0.0
    %1765 = vadd.xlane.f32.xlu0 %v1764
    %v1766 = vpop.xlane.xlu0 %1765
    %v1767 = vsel %vm51, %v1763, 0.0
    %1768 = vadd.xlane.f32.xlu0 %v1767
    %v1769 = vpop.xlane.xlu0 %1768
    %v1770 = vmul.f32 %v1766, %v1520
    %v1771 = vmul.f32 %v1769, %v1520
    %v1772 = vadd.f32 %v1770, 1e-05
    %v1773 = vadd.f32 %v1771, 1e-05
    %v1774 = vrsqrt.pop %v1772
    %v1775 = vrsqrt.pop %v1773
    %v1776 = vmul.f32 %v1760, %v1774
    %v1777 = vmul.f32 %v1761, %v1775
    %v1778 = vld [vmem:[%s10] sm:$0x1]
    %v1780 = vlaneseq
    %v1781 = vshrl.u32 %v1780, 7
    %v1782 = vsub.s32 0, %v1781
    %v1783 = vrot.slane %v1778, %v1782
    %v1785 = vmul.f32 %v1776, %v1783
    %v1786 = vmul.f32 %v1777, %v1783
    %v1787 = vld [vmem:[%s11] sm:$0x1]
    %v1789 = vlaneseq
    %v1790 = vshrl.u32 %v1789, 7
    %v1791 = vsub.s32 0, %v1790
    %v1792 = vrot.slane %v1787, %v1791
    %v1794 = vadd.f32 %v1785, %v1792
    %v1795 = vadd.f32 %v1786, %v1792
    %v1796 = vld [vmem:[%s2] sm:$0x3]
    %v1797 = vlaneseq
    %v1798 = vshrl.u32 %v1797, 7
    %v1799 = vsub.s32 0, %v1798
    %v1800 = vrot.slane %v1796, %v1799
    %1802 = vbcast.lane.b32.xlu0 %v1800, 256
    %v1803 = vpop.permute.xlu0 %1802
    %v1804 = vlaneseq
    %v1805 = vshrl.u32 %v1804, 7
    %v1806 = vsub.s32 1, %v1805
    %v1807 = vrot.slane %v1796, %v1806
    %1809 = vbcast.lane.b32.xlu0 %v1807, 256
    %v1810 = vpop.permute.xlu0 %1809
    %vm1811 = vcmp.gt.f32.partialorder %v1803, 0.5
    %vm1812 = vcmp.gt.f32.partialorder %v1810, 0.5
    %v1813 = vsel %vm1811, 1, 0
    %v1814 = vsel %vm1812, 1, 0
    %vm1815 = vcmp.eq.s32.totalorder %v1813, 1
    %vm1816 = vcmp.eq.s32.totalorder %v1814, 1
    %v1817 = vsel %vm1815, %v45, %v1794
    %v1818 = vsel %vm1816, %v46, %v1795
    %1819 = vst.msk [vmem:[#allocation3] sm:$0xff] %vm51, %v1817
    %1820 = vst.msk [vmem:[#allocation3 + $0x8] sm:$0xff] %vm51, %v1818
    // Predicated region
    $region50: #{tpu_custom_call.1} parent=1 // pred_check
      _
    $region51: #{tpu_custom_call.1} parent=1 // pred_check_branch
      %1822 = sbr.rel (0) target = $region53
    $region52: #{tpu_custom_call.1} parent=1 // pred_region
      %s1824 = ssub.s32 256, 256
      %1825 = vsyncadd [#allocation4], %s1824
      %s1826 = sshll.u32 [#allocation3], 4
      %s1827 = int_to_ptr.vmem [resolvable:$true] %s1826
      %1832 = dma.vmem_to_hbm [thread:$0]  %s1827, 256, %s12, [#allocation4], 128, 128, 8
    $region53: #{tpu_custom_call.1} parent=1 // pred_fallthru
      _
    // Predicated region
    $region54: #{tpu_custom_call.1} parent=1 // pred_check
      _
    $region55: #{tpu_custom_call.1} parent=1 // pred_check_branch
      %1834 = sbr.rel (0) target = $region57
    $region56: #{tpu_custom_call.1} parent=1 // pred_region
      %1835 = dma.done [#allocation4], 256
    $region57: #{tpu_custom_call.1} parent=1 // pred_fallthru
      _
    %1836 = vsyncpa [#allocation4], 1

// kernel: tpu_custom_call.1
$region0: #{tpu_custom_call.1}
  #allocation0 [shape = 'u32[]', space=smem, size = 0x4, offset = 0x4, fixed_abs, tag = 'smem constant byte address 0x4 - core index']
  #allocation1 [shape = 'u32[144,128]{1,0:T(1,128)}', space=vmem, size = 0x12000, scoped, tag = 'internal scratch']
  #allocation2 [shape = 'f32[16,32]{1,0:T(8,128)}', space=vmem, size = 0x2000, scoped, tag = 'scratch operand']
  %s0 = inlined_call_operand.vmem [shape: f32[16,32], index: 0, kind: input, shape index: {}]
  %s1 = inlined_call_operand.vmem [shape: bf16[8,8], index: 1, kind: input, shape index: {}]
  %s2 = inlined_call_operand.vmem [shape: f32[1,2,8], index: 2, kind: input, shape index: {}]
  %s3 = inlined_call_operand.vmem [shape: f32[32,96], index: 3, kind: input, shape index: {}]
  %s4 = inlined_call_operand.vmem [shape: f32[32,64], index: 4, kind: input, shape index: {}]
  %s5 = inlined_call_operand.vmem [shape: f32[1,64], index: 5, kind: input, shape index: {}]
  %s6 = inlined_call_operand.vmem [shape: f32[64,32], index: 6, kind: input, shape index: {}]
  %s7 = inlined_call_operand.vmem [shape: f32[1,32], index: 7, kind: input, shape index: {}]
  %s8 = inlined_call_operand.vmem [shape: f32[1,32], index: 8, kind: input, shape index: {}]
  %s9 = inlined_call_operand.vmem [shape: f32[1,32], index: 9, kind: input, shape index: {}]
  %s10 = inlined_call_operand.vmem [shape: f32[1,32], index: 10, kind: input, shape index: {}]
  %s11 = inlined_call_operand.vmem [shape: f32[1,32], index: 11, kind: input, shape index: {}]
  %s12 = inlined_call_operand.hbm [shape: f32[16,32], index: 12, kind: output, shape index: {}]
  %s13 = sld [smem:[#allocation0]]
  $region58: #{tpu_custom_call.1} parent=0
    _
  %s15 = ssub.s32 1, %s13
  %s16 = scalar_select 0, %s15, %s13
  $region1: #{tpu_custom_call.1} parent=0
    #allocation3 [shape = 'u8[8192]{0}', space=vmem, size = 0x2000, scoped, tag = 'output window, operand 0, single buffered']
    #allocation4 [shape = 's32[1]{0}', space=sflag, size = 0x4, scoped, tag = 'scoped memory for tpu_custom_call.1']
    %17 = vsyncpa [#allocation4], 0
    // Predicated region
    $region2: #{tpu_custom_call.1} parent=1 // pred_check
      _
    $region3: #{tpu_custom_call.1} parent=1 // pred_check_branch
      %19 = sbr.rel (0) target = $region5
    $region4: #{tpu_custom_call.1} parent=1 // pred_region
      _
    $region5: #{tpu_custom_call.1} parent=1 // pred_fallthru
      _
    // Predicated region
    $region6: #{tpu_custom_call.1} parent=1 // pred_check
      _
    $region7: #{tpu_custom_call.1} parent=1 // pred_check_branch
      %21 = sbr.rel (0) target = $region9
    $region8: #{tpu_custom_call.1} parent=1 // pred_region
      _
    $region9: #{tpu_custom_call.1} parent=1 // pred_fallthru
      _
    // Predicated region
    $region10: #{tpu_custom_call.1} parent=1 // pred_check
      _
    $region11: #{tpu_custom_call.1} parent=1 // pred_check_branch
      %23 = sbr.rel (0) target = $region13
    $region12: #{tpu_custom_call.1} parent=1 // pred_region
      _
    $region13: #{tpu_custom_call.1} parent=1 // pred_fallthru
      _
    // Predicated region
    $region14: #{tpu_custom_call.1} parent=1 // pred_check
      _
    $region15: #{tpu_custom_call.1} parent=1 // pred_check_branch
      %25 = sbr.rel (0) target = $region17
    $region16: #{tpu_custom_call.1} parent=1 // pred_region
      _
    $region17: #{tpu_custom_call.1} parent=1 // pred_fallthru
      _
    // Predicated region
    $region18: #{tpu_custom_call.1} parent=1 // pred_check
      _
    $region19: #{tpu_custom_call.1} parent=1 // pred_check_branch
      %27 = sbr.rel (0) target = $region21
    $region20: #{tpu_custom_call.1} parent=1 // pred_region
      _
    $region21: #{tpu_custom_call.1} parent=1 // pred_fallthru
      _
    // Predicated region
    $region22: #{tpu_custom_call.1} parent=1 // pred_check
      _
    $region23: #{tpu_custom_call.1} parent=1 // pred_check_branch
      %29 = sbr.rel (0) target = $region25
    $region24: #{tpu_custom_call.1} parent=1 // pred_region
      _
    $region25: #{tpu_custom_call.1} parent=1 // pred_fallthru
      _
    // Predicated region
    $region26: #{tpu_custom_call.1} parent=1 // pred_check
      _
    $region27: #{tpu_custom_call.1} parent=1 // pred_check_branch
      %31 = sbr.rel (0) target = $region29
    $region28: #{tpu_custom_call.1} parent=1 // pred_region
      _
    $region29: #{tpu_custom_call.1} parent=1 // pred_fallthru
      _
    // Predicated region
    $region30: #{tpu_custom_call.1} parent=1 // pred_check
      _
    $region31: #{tpu_custom_call.1} parent=1 // pred_check_branch
      %33 = sbr.rel (0) target = $region33
    $region32: #{tpu_custom_call.1} parent=1 // pred_region
      _
    $region33: #{tpu_custom_call.1} parent=1 // pred_fallthru
      _
    // Predicated region
    $region34: #{tpu_custom_call.1} parent=1 // pred_check
      _
    $region35: #{tpu_custom_call.1} parent=1 // pred_check_branch
      %35 = sbr.rel (0) target = $region37
    $region36: #{tpu_custom_call.1} parent=1 // pred_region
      _
    $region37: #{tpu_custom_call.1} parent=1 // pred_fallthru
      _
    // Predicated region
    $region38: #{tpu_custom_call.1} parent=1 // pred_check
      _
    $region39: #{tpu_custom_call.1} parent=1 // pred_check_branch
      %37 = sbr.rel (0) target = $region41
    $region40: #{tpu_custom_call.1} parent=1 // pred_region
      _
    $region41: #{tpu_custom_call.1} parent=1 // pred_fallthru
      _
    // Predicated region
    $region42: #{tpu_custom_call.1} parent=1 // pred_check
      _
    $region43: #{tpu_custom_call.1} parent=1 // pred_check_branch
      %39 = sbr.rel (0) target = $region45
    $region44: #{tpu_custom_call.1} parent=1 // pred_region
      _
    $region45: #{tpu_custom_call.1} parent=1 // pred_fallthru
      _
    // Predicated region
    $region46: #{tpu_custom_call.1} parent=1 // pred_check
      _
    $region47: #{tpu_custom_call.1} parent=1 // pred_check_branch
      %41 = sbr.rel (0) target = $region49
    $region48: #{tpu_custom_call.1} parent=1 // pred_region
      _
    $region49: #{tpu_custom_call.1} parent=1 // pred_fallthru
      _
    %v45 = vld [vmem:[%s0] sm:$0xff]
    %v46 = vld [vmem:[%s0 + $0x8] sm:$0xff]
    %v47 = vld [vmem:[%s3] sm:$0xff]
    %v48 = vld [vmem:[%s3 + $0x8] sm:$0xff]
    %v49 = vld [vmem:[%s3 + $0x10] sm:$0xff]
    %v50 = vld [vmem:[%s3 + $0x18] sm:$0xff]
    %vm51 = vcmask 261120
    %v53 = vsel %vm51, %v45, 0
    %v56 = vsel %vm51, %v46, 0
    %58 = vmatprep.subr.mxu0 0.0
    %59 = vmatpush1.msra.mxu0 0.0
    %60 = vmatprep.subr.mxu0 0.0
    %61 = vmatpush1.msra.mxu0 0.0
    %62 = vmatprep.subr.mxu0 0.0
    %63 = vmatpush1.msra.mxu0 0.0
    %64 = vmatprep.subr.mxu0 0.0
    %65 = vmatpush1.msra.mxu0 0.0
    %66 = vmatprep.subr.mxu0 0.0
    %67 = vmatpush1.msra.mxu0 0.0
    %68 = vmatprep.subr.mxu0 0.0
    %69 = vmatpush1.msra.mxu0 0.0
    %70 = vmatprep.subr.mxu0 0.0
    %71 = vmatpush1.msra.mxu0 0.0
    %72 = vmatprep.subr.mxu0 0.0
    %73 = vmatpush1.msra.mxu0 0.0
    %74 = vmatprep.subr.mxu0 0.0
    %75 = vmatpush1.msra.mxu0 0.0
    %76 = vmatprep.subr.mxu0 0.0
    %77 = vmatpush1.msra.mxu0 0.0
    %78 = vmatprep.subr.mxu0 0.0
    %79 = vmatpush1.msra.mxu0 0.0
    %80 = vmatprep.subr.mxu0 0.0
    %81 = vmatpush1.msra.mxu0 0.0
    %82 = vmatprep.subr.mxu0 0.0
    %83 = vmatpush1.msra.mxu0 %v50
    %84 = vmatprep.subr.mxu0 0.0
    %85 = vmatpush1.msra.mxu0 %v49
    %86 = vmatprep.subr.mxu0 0.0
    %87 = vmatpush1.msra.mxu0 %v48
    %88 = vmatprep.subr.mxu0 0.0
    %89 = vmatpush1.msra.mxu0 %v47
    %90 = vmatprep.subr.mxu0 0.0
    %91 = vmatpush2.msra.mxu0 0.0
    %92 = vmatprep.subr.mxu0 0.0
    %93 = vmatpush2.msra.mxu0 0.0
    %94 = vmatprep.subr.mxu0 0.0
    %95 = vmatpush2.msra.mxu0 0.0
    %96 = vmatprep.subr.mxu0 0.0
    %97 = vmatpush2.msra.mxu0 0.0
    %98 = vmatprep.subr.mxu0 0.0
    %99 = vmatpush2.msra.mxu0 0.0
    %100 = vmatprep.subr.mxu0 0.0
    %101 = vmatpush2.msra.mxu0 0.0
    %102 = vmatprep.subr.mxu0 0.0
    %103 = vmatpush2.msra.mxu0 0.0
    %104 = vmatprep.subr.mxu0 0.0
    %105 = vmatpush2.msra.mxu0 0.0
    %106 = vmatprep.subr.mxu0 0.0
    %107 = vmatpush2.msra.mxu0 0.0
    %108 = vmatprep.subr.mxu0 0.0
    %109 = vmatpush2.msra.mxu0 0.0
    %110 = vmatprep.subr.mxu0 0.0
    %111 = vmatpush2.msra.mxu0 0.0
    %112 = vmatprep.subr.mxu0 0.0
    %113 = vmatpush2.msra.mxu0 0.0
    %114 = vmatprep.subr.mxu0 0.0
    %115 = vmatpush2.msra.mxu0 0.0
    %116 = vmatprep.subr.mxu0 0.0
    %117 = vmatpush2.msra.mxu0 0.0
    %118 = vmatprep.subr.mxu0 0.0
    %119 = vmatpush2.msra.mxu0 0.0
    %120 = vmatprep.subr.mxu0 0.0
    %121 = vmatpush2.msra.mxu0 0.0
    %122 = vmatprep.mubr.f32.mxu0 0.0
    %123 = vmatmul.mubr.f32.gmra.mxu0 %v53
    %v124 = vpop.f32.mrf.mxu0
    %v125 = vadd.f32 0.0, %v124
    %v126 = vpop.f32.mrf.mxu0
    %127 = vmatprep.mubr.f32.mxu0 0.0
    %128 = vmatmul.mubr.f32.gmra.mxu0 %v56
    %v129 = vpop.f32.mrf.mxu0
    %v130 = vadd.f32 0.0, %v129
    %v131 = vpop.f32.mrf.mxu0
    %132 = vdwg.mxu0
    %v133 = vld [vmem:[%s1] sm:$0xf]
    %vm134 = vcmp.gt.bf16.partialorder %v133, 1056980736
    %136 = vrot.lane.b32.xlu0 %v125, 96
    %v137 = vpop.permute.xlu0 %136
    %vm138 = vcmask 64512
    %v139 = vsel %vm138, %v125, 0
    %v141 = vsel %vm138, %v137, 0
    %143 = vmatprep.subr.mxu0 0.0
    %144 = vmatpush1.xpose.msra.mxu0 0.0
    %145 = vmatprep.subr.mxu0 0.0
    %146 = vmatpush1.xpose.msra.mxu0 0.0
    %147 = vmatprep.subr.mxu0 0.0
    %148 = vmatpush1.xpose.msra.mxu0 0.0
    %149 = vmatprep.subr.mxu0 0.0
    %150 = vmatpush1.xpose.msra.mxu0 0.0
    %151 = vmatprep.subr.mxu0 0.0
    %152 = vmatpush1.xpose.msra.mxu0 0.0
    %153 = vmatprep.subr.mxu0 0.0
    %154 = vmatpush1.xpose.msra.mxu0 0.0
    %155 = vmatprep.subr.mxu0 0.0
    %156 = vmatpush1.xpose.msra.mxu0 0.0
    %157 = vmatprep.subr.mxu0 0.0
    %158 = vmatpush1.xpose.msra.mxu0 0.0
    %159 = vmatprep.subr.mxu0 0.0
    %160 = vmatpush1.xpose.msra.mxu0 0.0
    %161 = vmatprep.subr.mxu0 0.0
    %162 = vmatpush1.xpose.msra.mxu0 0.0
    %163 = vmatprep.subr.mxu0 0.0
    %164 = vmatpush1.xpose.msra.mxu0 0.0
    %165 = vmatprep.subr.mxu0 0.0
    %166 = vmatpush1.xpose.msra.mxu0 0.0
    %167 = vmatprep.subr.mxu0 0.0
    %168 = vmatpush1.xpose.msra.mxu0 0.0
    %169 = vmatprep.subr.mxu0 0.0
    %170 = vmatpush1.xpose.msra.mxu0 0.0
    %171 = vmatprep.subr.mxu0 0.0
    %172 = vmatpush1.xpose.msra.mxu0 0.0
    %173 = vmatprep.subr.mxu0 0.0
    %174 = vmatpush1.xpose.msra.mxu0 %v141
    %175 = vmatprep.subr.mxu0 0.0
    %176 = vmatpush2.xpose.msra.mxu0 0.0
    %177 = vmatprep.subr.mxu0 0.0
    %178 = vmatpush2.xpose.msra.mxu0 0.0
    %179 = vmatprep.subr.mxu0 0.0
    %180 = vmatpush2.xpose.msra.mxu0 0.0
    %181 = vmatprep.subr.mxu0 0.0
    %182 = vmatpush2.xpose.msra.mxu0 0.0
    %183 = vmatprep.subr.mxu0 0.0
    %184 = vmatpush2.xpose.msra.mxu0 0.0
    %185 = vmatprep.subr.mxu0 0.0
    %186 = vmatpush2.xpose.msra.mxu0 0.0
    %187 = vmatprep.subr.mxu0 0.0
    %188 = vmatpush2.xpose.msra.mxu0 0.0
    %189 = vmatprep.subr.mxu0 0.0
    %190 = vmatpush2.xpose.msra.mxu0 0.0
    %191 = vmatprep.subr.mxu0 0.0
    %192 = vmatpush2.xpose.msra.mxu0 0.0
    %193 = vmatprep.subr.mxu0 0.0
    %194 = vmatpush2.xpose.msra.mxu0 0.0
    %195 = vmatprep.subr.mxu0 0.0
    %196 = vmatpush2.xpose.msra.mxu0 0.0
    %197 = vmatprep.subr.mxu0 0.0
    %198 = vmatpush2.xpose.msra.mxu0 0.0
    %199 = vmatprep.subr.mxu0 0.0
    %200 = vmatpush2.xpose.msra.mxu0 0.0
    %201 = vmatprep.subr.mxu0 0.0
    %202 = vmatpush2.xpose.msra.mxu0 0.0
    %203 = vmatprep.subr.mxu0 0.0
    %204 = vmatpush2.xpose.msra.mxu0 0.0
    %205 = vmatprep.subr.mxu0 0.0
    %206 = vmatpush2.xpose.msra.mxu0 0.0
    %207 = vmatprep.mubr.f32.mxu0 0.0
    %208 = vmatmul.mubr.f32.gmra.mxu0 %v139
    %v209 = vpop.f32.mrf.mxu0
    %v210 = vadd.f32 0.0, %v209
    %v211 = vpop.f32.mrf.mxu0
    %212 = vdwg.mxu0
    %214 = vrot.lane.b32.xlu0 %v130, 96
    %v215 = vpop.permute.xlu0 %214
    %v216 = vsel %vm138, %v130, 0
    %v218 = vsel %vm138, %v215, 0
    %220 = vmatprep.subr.mxu0 0.0
    %221 = vmatpush1.xpose.msra.mxu0 0.0
    %222 = vmatprep.subr.mxu0 0.0
    %223 = vmatpush1.xpose.msra.mxu0 0.0
    %224 = vmatprep.subr.mxu0 0.0
    %225 = vmatpush1.xpose.msra.mxu0 0.0
    %226 = vmatprep.subr.mxu0 0.0
    %227 = vmatpush1.xpose.msra.mxu0 0.0
    %228 = vmatprep.subr.mxu0 0.0
    %229 = vmatpush1.xpose.msra.mxu0 0.0
    %230 = vmatprep.subr.mxu0 0.0
    %231 = vmatpush1.xpose.msra.mxu0 0.0
    %232 = vmatprep.subr.mxu0 0.0
    %233 = vmatpush1.xpose.msra.mxu0 0.0
    %234 = vmatprep.subr.mxu0 0.0
    %235 = vmatpush1.xpose.msra.mxu0 0.0
    %236 = vmatprep.subr.mxu0 0.0
    %237 = vmatpush1.xpose.msra.mxu0 0.0
    %238 = vmatprep.subr.mxu0 0.0
    %239 = vmatpush1.xpose.msra.mxu0 0.0
    %240 = vmatprep.subr.mxu0 0.0
    %241 = vmatpush1.xpose.msra.mxu0 0.0
    %242 = vmatprep.subr.mxu0 0.0
    %243 = vmatpush1.xpose.msra.mxu0 0.0
    %244 = vmatprep.subr.mxu0 0.0
    %245 = vmatpush1.xpose.msra.mxu0 0.0
    %246 = vmatprep.subr.mxu0 0.0
    %247 = vmatpush1.xpose.msra.mxu0 0.0
    %248 = vmatprep.subr.mxu0 0.0
    %249 = vmatpush1.xpose.msra.mxu0 0.0
    %250 = vmatprep.subr.mxu0 0.0
    %251 = vmatpush1.xpose.msra.mxu0 %v218
    %252 = vmatprep.subr.mxu0 0.0
    %253 = vmatpush2.xpose.msra.mxu0 0.0
    %254 = vmatprep.subr.mxu0 0.0
    %255 = vmatpush2.xpose.msra.mxu0 0.0
    %256 = vmatprep.subr.mxu0 0.0
    %257 = vmatpush2.xpose.msra.mxu0 0.0
    %258 = vmatprep.subr.mxu0 0.0
    %259 = vmatpush2.xpose.msra.mxu0 0.0
    %260 = vmatprep.subr.mxu0 0.0
    %261 = vmatpush2.xpose.msra.mxu0 0.0
    %262 = vmatprep.subr.mxu0 0.0
    %263 = vmatpush2.xpose.msra.mxu0 0.0
    %264 = vmatprep.subr.mxu0 0.0
    %265 = vmatpush2.xpose.msra.mxu0 0.0
    %266 = vmatprep.subr.mxu0 0.0
    %267 = vmatpush2.xpose.msra.mxu0 0.0
    %268 = vmatprep.subr.mxu0 0.0
    %269 = vmatpush2.xpose.msra.mxu0 0.0
    %270 = vmatprep.subr.mxu0 0.0
    %271 = vmatpush2.xpose.msra.mxu0 0.0
    %272 = vmatprep.subr.mxu0 0.0
    %273 = vmatpush2.xpose.msra.mxu0 0.0
    %274 = vmatprep.subr.mxu0 0.0
    %275 = vmatpush2.xpose.msra.mxu0 0.0
    %276 = vmatprep.subr.mxu0 0.0
    %277 = vmatpush2.xpose.msra.mxu0 0.0
    %278 = vmatprep.subr.mxu0 0.0
    %279 = vmatpush2.xpose.msra.mxu0 0.0
    %280 = vmatprep.subr.mxu0 0.0
    %281 = vmatpush2.xpose.msra.mxu0 0.0
    %282 = vmatprep.subr.mxu0 0.0
    %283 = vmatpush2.xpose.msra.mxu0 0.0
    %284 = vmatprep.mubr.f32.mxu0 0.0
    %285 = vmatmul.mubr.f32.gmra.mxu0 %v216
    %v286 = vpop.f32.mrf.mxu0
    %v287 = vadd.f32 0.0, %v286
    %v288 = vpop.f32.mrf.mxu0
    %289 = vdwg.mxu0
    %v290 = vmul.f32 %v210, 0.35355338
    %v291 = vmul.f32 %v287, 0.35355338
    %v292 = vsel %vm134, 65537, 0
    %v293 = vunpack.c.l.b16 %v292
    %vm294 = vcmp.ne.s32.totalorder %v293, 0
    %v295 = vsel %vm294, 1, 0
    %vm296 = vcmp.eq.s32.totalorder %v295, 1
    %v297 = vsel %vm296, %v290, -1e+30
    %v298 = vsel %vm296, %v291, -1e+30
    %v299 = vsel %vm138, %v297, -inf
    %300 = vmax.xlane.f32.xlu0 %v299
    %v301 = vpop.xlane.xlu0 %300
    %v302 = vsel %vm138, %v298, -inf
    %303 = vmax.xlane.f32.xlu0 %v302
    %v304 = vpop.xlane.xlu0 %303
    %v305 = vsub.f32 %v297, %v301
    %v306 = vsub.f32 %v298, %v304
    %v307 = vmul.f32 %v305, 1.442695
    %v308 = vpow.pop %v307
    %v309 = vmul.f32 %v306, 1.442695
    %v310 = vpow.pop %v309
    %v311 = vsel %vm138, %v308, 0.0
    %312 = vadd.xlane.f32.xlu0 %v311
    %v313 = vpop.xlane.xlu0 %312
    %v314 = vsel %vm138, %v310, 0.0
    %315 = vadd.xlane.f32.xlu0 %v314
    %v316 = vpop.xlane.xlu0 %315
    %v317 = vrcp.pop %v313
    %v318 = vmul.f32 %v308, %v317
    %v319 = vrcp.pop %v316
    %v320 = vmul.f32 %v310, %v319
    %321 = vrot.lane.b32.xlu0 %v125, 64
    %v322 = vpop.permute.xlu0 %321
    %v325 = vsel %vm138, %v318, 0
    %327 = vmatprep.subr.mxu0 0.0
    %328 = vmatpush1.msra.mxu0 0.0
    %329 = vmatprep.subr.mxu0 0.0
    %330 = vmatpush1.msra.mxu0 0.0
    %331 = vmatprep.subr.mxu0 0.0
    %332 = vmatpush1.msra.mxu0 0.0
    %333 = vmatprep.subr.mxu0 0.0
    %334 = vmatpush1.msra.mxu0 0.0
    %335 = vmatprep.subr.mxu0 0.0
    %336 = vmatpush1.msra.mxu0 0.0
    %337 = vmatprep.subr.mxu0 0.0
    %338 = vmatpush1.msra.mxu0 0.0
    %339 = vmatprep.subr.mxu0 0.0
    %340 = vmatpush1.msra.mxu0 0.0
    %341 = vmatprep.subr.mxu0 0.0
    %342 = vmatpush1.msra.mxu0 0.0
    %343 = vmatprep.subr.mxu0 0.0
    %344 = vmatpush1.msra.mxu0 0.0
    %345 = vmatprep.subr.mxu0 0.0
    %346 = vmatpush1.msra.mxu0 0.0
    %347 = vmatprep.subr.mxu0 0.0
    %348 = vmatpush1.msra.mxu0 0.0
    %349 = vmatprep.subr.mxu0 0.0
    %350 = vmatpush1.msra.mxu0 0.0
    %351 = vmatprep.subr.mxu0 0.0
    %352 = vmatpush1.msra.mxu0 0.0
    %353 = vmatprep.subr.mxu0 0.0
    %354 = vmatpush1.msra.mxu0 0.0
    %355 = vmatprep.subr.mxu0 0.0
    %356 = vmatpush1.msra.mxu0 0.0
    %357 = vmatprep.subr.mxu0 0.0
    %358 = vmatpush1.msra.mxu0 %v322
    %359 = vmatprep.subr.mxu0 0.0
    %360 = vmatpush2.msra.mxu0 0.0
    %361 = vmatprep.subr.mxu0 0.0
    %362 = vmatpush2.msra.mxu0 0.0
    %363 = vmatprep.subr.mxu0 0.0
    %364 = vmatpush2.msra.mxu0 0.0
    %365 = vmatprep.subr.mxu0 0.0
    %366 = vmatpush2.msra.mxu0 0.0
    %367 = vmatprep.subr.mxu0 0.0
    %368 = vmatpush2.msra.mxu0 0.0
    %369 = vmatprep.subr.mxu0 0.0
    %370 = vmatpush2.msra.mxu0 0.0
    %371 = vmatprep.subr.mxu0 0.0
    %372 = vmatpush2.msra.mxu0 0.0
    %373 = vmatprep.subr.mxu0 0.0
    %374 = vmatpush2.msra.mxu0 0.0
    %375 = vmatprep.subr.mxu0 0.0
    %376 = vmatpush2.msra.mxu0 0.0
    %377 = vmatprep.subr.mxu0 0.0
    %378 = vmatpush2.msra.mxu0 0.0
    %379 = vmatprep.subr.mxu0 0.0
    %380 = vmatpush2.msra.mxu0 0.0
    %381 = vmatprep.subr.mxu0 0.0
    %382 = vmatpush2.msra.mxu0 0.0
    %383 = vmatprep.subr.mxu0 0.0
    %384 = vmatpush2.msra.mxu0 0.0
    %385 = vmatprep.subr.mxu0 0.0
    %386 = vmatpush2.msra.mxu0 0.0
    %387 = vmatprep.subr.mxu0 0.0
    %388 = vmatpush2.msra.mxu0 0.0
    %389 = vmatprep.subr.mxu0 0.0
    %390 = vmatpush2.msra.mxu0 0.0
    %391 = vmatprep.mubr.f32.mxu0 0.0
    %392 = vmatmul.mubr.f32.gmra.mxu0 %v325
    %v393 = vpop.f32.mrf.mxu0
    %v394 = vadd.f32 0.0, %v393
    %v395 = vpop.f32.mrf.mxu0
    %396 = vdwg.mxu0
    %397 = vrot.lane.b32.xlu0 %v130, 64
    %v398 = vpop.permute.xlu0 %397
    %v401 = vsel %vm138, %v320, 0
    %403 = vmatprep.subr.mxu0 0.0
    %404 = vmatpush1.msra.mxu0 0.0
    %405 = vmatprep.subr.mxu0 0.0
    %406 = vmatpush1.msra.mxu0 0.0
    %407 = vmatprep.subr.mxu0 0.0
    %408 = vmatpush1.msra.mxu0 0.0
    %409 = vmatprep.subr.mxu0 0.0
    %410 = vmatpush1.msra.mxu0 0.0
    %411 = vmatprep.subr.mxu0 0.0
    %412 = vmatpush1.msra.mxu0 0.0
    %413 = vmatprep.subr.mxu0 0.0
    %414 = vmatpush1.msra.mxu0 0.0
    %415 = vmatprep.subr.mxu0 0.0
    %416 = vmatpush1.msra.mxu0 0.0
    %417 = vmatprep.subr.mxu0 0.0
    %418 = vmatpush1.msra.mxu0 0.0
    %419 = vmatprep.subr.mxu0 0.0
    %420 = vmatpush1.msra.mxu0 0.0
    %421 = vmatprep.subr.mxu0 0.0
    %422 = vmatpush1.msra.mxu0 0.0
    %423 = vmatprep.subr.mxu0 0.0
    %424 = vmatpush1.msra.mxu0 0.0
    %425 = vmatprep.subr.mxu0 0.0
    %426 = vmatpush1.msra.mxu0 0.0
    %427 = vmatprep.subr.mxu0 0.0
    %428 = vmatpush1.msra.mxu0 0.0
    %429 = vmatprep.subr.mxu0 0.0
    %430 = vmatpush1.msra.mxu0 0.0
    %431 = vmatprep.subr.mxu0 0.0
    %432 = vmatpush1.msra.mxu0 0.0
    %433 = vmatprep.subr.mxu0 0.0
    %434 = vmatpush1.msra.mxu0 %v398
    %435 = vmatprep.subr.mxu0 0.0
    %436 = vmatpush2.msra.mxu0 0.0
    %437 = vmatprep.subr.mxu0 0.0
    %438 = vmatpush2.msra.mxu0 0.0
    %439 = vmatprep.subr.mxu0 0.0
    %440 = vmatpush2.msra.mxu0 0.0
    %441 = vmatprep.subr.mxu0 0.0
    %442 = vmatpush2.msra.mxu0 0.0
    %443 = vmatprep.subr.mxu0 0.0
    %444 = vmatpush2.msra.mxu0 0.0
    %445 = vmatprep.subr.mxu0 0.0
    %446 = vmatpush2.msra.mxu0 0.0
    %447 = vmatprep.subr.mxu0 0.0
    %448 = vmatpush2.msra.mxu0 0.0
    %449 = vmatprep.subr.mxu0 0.0
    %450 = vmatpush2.msra.mxu0 0.0
    %451 = vmatprep.subr.mxu0 0.0
    %452 = vmatpush2.msra.mxu0 0.0
    %453 = vmatprep.subr.mxu0 0.0
    %454 = vmatpush2.msra.mxu0 0.0
    %455 = vmatprep.subr.mxu0 0.0
    %456 = vmatpush2.msra.mxu0 0.0
    %457 = vmatprep.subr.mxu0 0.0
    %458 = vmatpush2.msra.mxu0 0.0
    %459 = vmatprep.subr.mxu0 0.0
    %460 = vmatpush2.msra.mxu0 0.0
    %461 = vmatprep.subr.mxu0 0.0
    %462 = vmatpush2.msra.mxu0 0.0
    %463 = vmatprep.subr.mxu0 0.0
    %464 = vmatpush2.msra.mxu0 0.0
    %465 = vmatprep.subr.mxu0 0.0
    %466 = vmatpush2.msra.mxu0 0.0
    %467 = vmatprep.mubr.f32.mxu0 0.0
    %468 = vmatmul.mubr.f32.gmra.mxu0 %v401
    %v469 = vpop.f32.mrf.mxu0
    %v470 = vadd.f32 0.0, %v469
    %v471 = vpop.f32.mrf.mxu0
    %472 = vdwg.mxu0
    %473 = vst.msk [vmem:[#allocation2] sm:$0xff] %vm138, %v394
    %474 = vst.msk [vmem:[#allocation2 + $0x8] sm:$0xff] %vm138, %v470
    %475 = vrot.lane.b32.xlu0 %v125, 120
    %v476 = vpop.permute.xlu0 %475
    %477 = vrot.lane.b32.xlu0 %v125, 88
    %v478 = vpop.permute.xlu0 %477
    %v479 = vsel %vm138, %v476, 0
    %v481 = vsel %vm138, %v478, 0
    %483 = vmatprep.subr.mxu0 0.0
    %484 = vmatpush1.xpose.msra.mxu0 0.0
    %485 = vmatprep.subr.mxu0 0.0
    %486 = vmatpush1.xpose.msra.mxu0 0.0
    %487 = vmatprep.subr.mxu0 0.0
    %488 = vmatpush1.xpose.msra.mxu0 0.0
    %489 = vmatprep.subr.mxu0 0.0
    %490 = vmatpush1.xpose.msra.mxu0 0.0
    %491 = vmatprep.subr.mxu0 0.0
    %492 = vmatpush1.xpose.msra.mxu0 0.0
    %493 = vmatprep.subr.mxu0 0.0
    %494 = vmatpush1.xpose.msra.mxu0 0.0
    %495 = vmatprep.subr.mxu0 0.0
    %496 = vmatpush1.xpose.msra.mxu0 0.0
    %497 = vmatprep.subr.mxu0 0.0
    %498 = vmatpush1.xpose.msra.mxu0 0.0
    %499 = vmatprep.subr.mxu0 0.0
    %500 = vmatpush1.xpose.msra.mxu0 0.0
    %501 = vmatprep.subr.mxu0 0.0
    %502 = vmatpush1.xpose.msra.mxu0 0.0
    %503 = vmatprep.subr.mxu0 0.0
    %504 = vmatpush1.xpose.msra.mxu0 0.0
    %505 = vmatprep.subr.mxu0 0.0
    %506 = vmatpush1.xpose.msra.mxu0 0.0
    %507 = vmatprep.subr.mxu0 0.0
    %508 = vmatpush1.xpose.msra.mxu0 0.0
    %509 = vmatprep.subr.mxu0 0.0
    %510 = vmatpush1.xpose.msra.mxu0 0.0
    %511 = vmatprep.subr.mxu0 0.0
    %512 = vmatpush1.xpose.msra.mxu0 0.0
    %513 = vmatprep.subr.mxu0 0.0
    %514 = vmatpush1.xpose.msra.mxu0 %v481
    %515 = vmatprep.subr.mxu0 0.0
    %516 = vmatpush2.xpose.msra.mxu0 0.0
    %517 = vmatprep.subr.mxu0 0.0
    %518 = vmatpush2.xpose.msra.mxu0 0.0
    %519 = vmatprep.subr.mxu0 0.0
    %520 = vmatpush2.xpose.msra.mxu0 0.0
    %521 = vmatprep.subr.mxu0 0.0
    %522 = vmatpush2.xpose.msra.mxu0 0.0
    %523 = vmatprep.subr.mxu0 0.0
    %524 = vmatpush2.xpose.msra.mxu0 0.0
    %525 = vmatprep.subr.mxu0 0.0
    %526 = vmatpush2.xpose.msra.mxu0 0.0
    %527 = vmatprep.subr.mxu0 0.0
    %528 = vmatpush2.xpose.msra.mxu0 0.0
    %529 = vmatprep.subr.mxu0 0.0
    %530 = vmatpush2.xpose.msra.mxu0 0.0
    %531 = vmatprep.subr.mxu0 0.0
    %532 = vmatpush2.xpose.msra.mxu0 0.0
    %533 = vmatprep.subr.mxu0 0.0
    %534 = vmatpush2.xpose.msra.mxu0 0.0
    %535 = vmatprep.subr.mxu0 0.0
    %536 = vmatpush2.xpose.msra.mxu0 0.0
    %537 = vmatprep.subr.mxu0 0.0
    %538 = vmatpush2.xpose.msra.mxu0 0.0
    %539 = vmatprep.subr.mxu0 0.0
    %540 = vmatpush2.xpose.msra.mxu0 0.0
    %541 = vmatprep.subr.mxu0 0.0
    %542 = vmatpush2.xpose.msra.mxu0 0.0
    %543 = vmatprep.subr.mxu0 0.0
    %544 = vmatpush2.xpose.msra.mxu0 0.0
    %545 = vmatprep.subr.mxu0 0.0
    %546 = vmatpush2.xpose.msra.mxu0 0.0
    %547 = vmatprep.mubr.f32.mxu0 0.0
    %548 = vmatmul.mubr.f32.gmra.mxu0 %v479
    %v549 = vpop.f32.mrf.mxu0
    %v550 = vadd.f32 0.0, %v549
    %v551 = vpop.f32.mrf.mxu0
    %552 = vdwg.mxu0
    %553 = vrot.lane.b32.xlu0 %v130, 120
    %v554 = vpop.permute.xlu0 %553
    %555 = vrot.lane.b32.xlu0 %v130, 88
    %v556 = vpop.permute.xlu0 %555
    %v557 = vsel %vm138, %v554, 0
    %v559 = vsel %vm138, %v556, 0
    %561 = vmatprep.subr.mxu0 0.0
    %562 = vmatpush1.xpose.msra.mxu0 0.0
    %563 = vmatprep.subr.mxu0 0.0
    %564 = vmatpush1.xpose.msra.mxu0 0.0
    %565 = vmatprep.subr.mxu0 0.0
    %566 = vmatpush1.xpose.msra.mxu0 0.0
    %567 = vmatprep.subr.mxu0 0.0
    %568 = vmatpush1.xpose.msra.mxu0 0.0
    %569 = vmatprep.subr.mxu0 0.0
    %570 = vmatpush1.xpose.msra.mxu0 0.0
    %571 = vmatprep.subr.mxu0 0.0
    %572 = vmatpush1.xpose.msra.mxu0 0.0
    %573 = vmatprep.subr.mxu0 0.0
    %574 = vmatpush1.xpose.msra.mxu0 0.0
    %575 = vmatprep.subr.mxu0 0.0
    %576 = vmatpush1.xpose.msra.mxu0 0.0
    %577 = vmatprep.subr.mxu0 0.0
    %578 = vmatpush1.xpose.msra.mxu0 0.0
    %579 = vmatprep.subr.mxu0 0.0
    %580 = vmatpush1.xpose.msra.mxu0 0.0
    %581 = vmatprep.subr.mxu0 0.0
    %582 = vmatpush1.xpose.msra.mxu0 0.0
    %583 = vmatprep.subr.mxu0 0.0
    %584 = vmatpush1.xpose.msra.mxu0 0.0
    %585 = vmatprep.subr.mxu0 0.0
    %586 = vmatpush1.xpose.msra.mxu0 0.0
    %587 = vmatprep.subr.mxu0 0.0
    %588 = vmatpush1.xpose.msra.mxu0 0.0
    %589 = vmatprep.subr.mxu0 0.0
    %590 = vmatpush1.xpose.msra.mxu0 0.0
    %591 = vmatprep.subr.mxu0 0.0
    %592 = vmatpush1.xpose.msra.mxu0 %v559
    %593 = vmatprep.subr.mxu0 0.0
    %594 = vmatpush2.xpose.msra.mxu0 0.0
    %595 = vmatprep.subr.mxu0 0.0
    %596 = vmatpush2.xpose.msra.mxu0 0.0
    %597 = vmatprep.subr.mxu0 0.0
    %598 = vmatpush2.xpose.msra.mxu0 0.0
    %599 = vmatprep.subr.mxu0 0.0
    %600 = vmatpush2.xpose.msra.mxu0 0.0
    %601 = vmatprep.subr.mxu0 0.0
    %602 = vmatpush2.xpose.msra.mxu0 0.0
    %603 = vmatprep.subr.mxu0 0.0
    %604 = vmatpush2.xpose.msra.mxu0 0.0
    %605 = vmatprep.subr.mxu0 0.0
    %606 = vmatpush2.xpose.msra.mxu0 0.0
    %607 = vmatprep.subr.mxu0 0.0
    %608 = vmatpush2.xpose.msra.mxu0 0.0
    %609 = vmatprep.subr.mxu0 0.0
    %610 = vmatpush2.xpose.msra.mxu0 0.0
    %611 = vmatprep.subr.mxu0 0.0
    %612 = vmatpush2.xpose.msra.mxu0 0.0
    %613 = vmatprep.subr.mxu0 0.0
    %614 = vmatpush2.xpose.msra.mxu0 0.0
    %615 = vmatprep.subr.mxu0 0.0
    %616 = vmatpush2.xpose.msra.mxu0 0.0
    %617 = vmatprep.subr.mxu0 0.0
    %618 = vmatpush2.xpose.msra.mxu0 0.0
    %619 = vmatprep.subr.mxu0 0.0
    %620 = vmatpush2.xpose.msra.mxu0 0.0
    %621 = vmatprep.subr.mxu0 0.0
    %622 = vmatpush2.xpose.msra.mxu0 0.0
    %623 = vmatprep.subr.mxu0 0.0
    %624 = vmatpush2.xpose.msra.mxu0 0.0
    %625 = vmatprep.mubr.f32.mxu0 0.0
    %626 = vmatmul.mubr.f32.gmra.mxu0 %v557
    %v627 = vpop.f32.mrf.mxu0
    %v628 = vadd.f32 0.0, %v627
    %v629 = vpop.f32.mrf.mxu0
    %630 = vdwg.mxu0
    %v631 = vmul.f32 %v550, 0.35355338
    %v632 = vmul.f32 %v628, 0.35355338
    %v633 = vsel %vm296, %v631, -1e+30
    %v634 = vsel %vm296, %v632, -1e+30
    %v635 = vsel %vm138, %v633, -inf
    %636 = vmax.xlane.f32.xlu0 %v635
    %v637 = vpop.xlane.xlu0 %636
    %v638 = vsel %vm138, %v634, -inf
    %639 = vmax.xlane.f32.xlu0 %v638
    %v640 = vpop.xlane.xlu0 %639
    %v641 = vsub.f32 %v633, %v637
    %v642 = vsub.f32 %v634, %v640
    %v643 = vmul.f32 %v641, 1.442695
    %v644 = vpow.pop %v643
    %v645 = vmul.f32 %v642, 1.442695
    %v646 = vpow.pop %v645
    %v647 = vsel %vm138, %v644, 0.0
    %648 = vadd.xlane.f32.xlu0 %v647
    %v649 = vpop.xlane.xlu0 %648
    %v650 = vsel %vm138, %v646, 0.0
    %651 = vadd.xlane.f32.xlu0 %v650
    %v652 = vpop.xlane.xlu0 %651
    %v653 = vrcp.pop %v649
    %v654 = vmul.f32 %v644, %v653
    %v655 = vrcp.pop %v652
    %v656 = vmul.f32 %v646, %v655
    %657 = vrot.lane.b32.xlu0 %v125, 56
    %v658 = vpop.permute.xlu0 %657
    %v661 = vsel %vm138, %v654, 0
    %663 = vmatprep.subr.mxu0 0.0
    %664 = vmatpush1.msra.mxu0 0.0
    %665 = vmatprep.subr.mxu0 0.0
    %666 = vmatpush1.msra.mxu0 0.0
    %667 = vmatprep.subr.mxu0 0.0
    %668 = vmatpush1.msra.mxu0 0.0
    %669 = vmatprep.subr.mxu0 0.0
    %670 = vmatpush1.msra.mxu0 0.0
    %671 = vmatprep.subr.mxu0 0.0
    %672 = vmatpush1.msra.mxu0 0.0
    %673 = vmatprep.subr.mxu0 0.0
    %674 = vmatpush1.msra.mxu0 0.0
    %675 = vmatprep.subr.mxu0 0.0
    %676 = vmatpush1.msra.mxu0 0.0
    %677 = vmatprep.subr.mxu0 0.0
    %678 = vmatpush1.msra.mxu0 0.0
    %679 = vmatprep.subr.mxu0 0.0
    %680 = vmatpush1.msra.mxu0 0.0
    %681 = vmatprep.subr.mxu0 0.0
    %682 = vmatpush1.msra.mxu0 0.0
    %683 = vmatprep.subr.mxu0 0.0
    %684 = vmatpush1.msra.mxu0 0.0
    %685 = vmatprep.subr.mxu0 0.0
    %686 = vmatpush1.msra.mxu0 0.0
    %687 = vmatprep.subr.mxu0 0.0
    %688 = vmatpush1.msra.mxu0 0.0
    %689 = vmatprep.subr.mxu0 0.0
    %690 = vmatpush1.msra.mxu0 0.0
    %691 = vmatprep.subr.mxu0 0.0
    %692 = vmatpush1.msra.mxu0 0.0
    %693 = vmatprep.subr.mxu0 0.0
    %694 = vmatpush1.msra.mxu0 %v658
    %695 = vmatprep.subr.mxu0 0.0
    %696 = vmatpush2.msra.mxu0 0.0
    %697 = vmatprep.subr.mxu0 0.0
    %698 = vmatpush2.msra.mxu0 0.0
    %699 = vmatprep.subr.mxu0 0.0
    %700 = vmatpush2.msra.mxu0 0.0
    %701 = vmatprep.subr.mxu0 0.0
    %702 = vmatpush2.msra.mxu0 0.0
    %703 = vmatprep.subr.mxu0 0.0
    %704 = vmatpush2.msra.mxu0 0.0
    %705 = vmatprep.subr.mxu0 0.0
    %706 = vmatpush2.msra.mxu0 0.0
    %707 = vmatprep.subr.mxu0 0.0
    %708 = vmatpush2.msra.mxu0 0.0
    %709 = vmatprep.subr.mxu0 0.0
    %710 = vmatpush2.msra.mxu0 0.0
    %711 = vmatprep.subr.mxu0 0.0
    %712 = vmatpush2.msra.mxu0 0.0
    %713 = vmatprep.subr.mxu0 0.0
    %714 = vmatpush2.msra.mxu0 0.0
    %715 = vmatprep.subr.mxu0 0.0
    %716 = vmatpush2.msra.mxu0 0.0
    %717 = vmatprep.subr.mxu0 0.0
    %718 = vmatpush2.msra.mxu0 0.0
    %719 = vmatprep.subr.mxu0 0.0
    %720 = vmatpush2.msra.mxu0 0.0
    %721 = vmatprep.subr.mxu0 0.0
    %722 = vmatpush2.msra.mxu0 0.0
    %723 = vmatprep.subr.mxu0 0.0
    %724 = vmatpush2.msra.mxu0 0.0
    %725 = vmatprep.subr.mxu0 0.0
    %726 = vmatpush2.msra.mxu0 0.0
    %727 = vmatprep.mubr.f32.mxu0 0.0
    %728 = vmatmul.mubr.f32.gmra.mxu0 %v661
    %v729 = vpop.f32.mrf.mxu0
    %v730 = vadd.f32 0.0, %v729
    %v731 = vpop.f32.mrf.mxu0
    %732 = vdwg.mxu0
    %733 = vrot.lane.b32.xlu0 %v130, 56
    %v734 = vpop.permute.xlu0 %733
    %v737 = vsel %vm138, %v656, 0
    %739 = vmatprep.subr.mxu0 0.0
    %740 = vmatpush1.msra.mxu0 0.0
    %741 = vmatprep.subr.mxu0 0.0
    %742 = vmatpush1.msra.mxu0 0.0
    %743 = vmatprep.subr.mxu0 0.0
    %744 = vmatpush1.msra.mxu0 0.0
    %745 = vmatprep.subr.mxu0 0.0
    %746 = vmatpush1.msra.mxu0 0.0
    %747 = vmatprep.subr.mxu0 0.0
    %748 = vmatpush1.msra.mxu0 0.0
    %749 = vmatprep.subr.mxu0 0.0
    %750 = vmatpush1.msra.mxu0 0.0
    %751 = vmatprep.subr.mxu0 0.0
    %752 = vmatpush1.msra.mxu0 0.0
    %753 = vmatprep.subr.mxu0 0.0
    %754 = vmatpush1.msra.mxu0 0.0
    %755 = vmatprep.subr.mxu0 0.0
    %756 = vmatpush1.msra.mxu0 0.0
    %757 = vmatprep.subr.mxu0 0.0
    %758 = vmatpush1.msra.mxu0 0.0
    %759 = vmatprep.subr.mxu0 0.0
    %760 = vmatpush1.msra.mxu0 0.0
    %761 = vmatprep.subr.mxu0 0.0
    %762 = vmatpush1.msra.mxu0 0.0
    %763 = vmatprep.subr.mxu0 0.0
    %764 = vmatpush1.msra.mxu0 0.0
    %765 = vmatprep.subr.mxu0 0.0
    %766 = vmatpush1.msra.mxu0 0.0
    %767 = vmatprep.subr.mxu0 0.0
    %768 = vmatpush1.msra.mxu0 0.0
    %769 = vmatprep.subr.mxu0 0.0
    %770 = vmatpush1.msra.mxu0 %v734
    %771 = vmatprep.subr.mxu0 0.0
    %772 = vmatpush2.msra.mxu0 0.0
    %773 = vmatprep.subr.mxu0 0.0
    %774 = vmatpush2.msra.mxu0 0.0
    %775 = vmatprep.subr.mxu0 0.0
    %776 = vmatpush2.msra.mxu0 0.0
    %777 = vmatprep.subr.mxu0 0.0
    %778 = vmatpush2.msra.mxu0 0.0
    %779 = vmatprep.subr.mxu0 0.0
    %780 = vmatpush2.msra.mxu0 0.0
    %781 = vmatprep.subr.mxu0 0.0
    %782 = vmatpush2.msra.mxu0 0.0
    %783 = vmatprep.subr.mxu0 0.0
    %784 = vmatpush2.msra.mxu0 0.0
    %785 = vmatprep.subr.mxu0 0.0
    %786 = vmatpush2.msra.mxu0 0.0
    %787 = vmatprep.subr.mxu0 0.0
    %788 = vmatpush2.msra.mxu0 0.0
    %789 = vmatprep.subr.mxu0 0.0
    %790 = vmatpush2.msra.mxu0 0.0
    %791 = vmatprep.subr.mxu0 0.0
    %792 = vmatpush2.msra.mxu0 0.0
    %793 = vmatprep.subr.mxu0 0.0
    %794 = vmatpush2.msra.mxu0 0.0
    %795 = vmatprep.subr.mxu0 0.0
    %796 = vmatpush2.msra.mxu0 0.0
    %797 = vmatprep.subr.mxu0 0.0
    %798 = vmatpush2.msra.mxu0 0.0
    %799 = vmatprep.subr.mxu0 0.0
    %800 = vmatpush2.msra.mxu0 0.0
    %801 = vmatprep.subr.mxu0 0.0
    %802 = vmatpush2.msra.mxu0 0.0
    %803 = vmatprep.mubr.f32.mxu0 0.0
    %804 = vmatmul.mubr.f32.gmra.mxu0 %v737
    %v805 = vpop.f32.mrf.mxu0
    %v806 = vadd.f32 0.0, %v805
    %v807 = vpop.f32.mrf.mxu0
    %808 = vdwg.mxu0
    %811 = vrot.lane.b32.xlu0 %v730, 8
    %v812 = vpop.permute.xlu0 %811
    %813 = vrot.lane.b32.xlu0 %v806, 8
    %v814 = vpop.permute.xlu0 %813
    %vm817 = vcmask 130112
    %818 = vst.msk [vmem:[#allocation2] sm:$0xff] %vm817, %v812
    %819 = vst.msk [vmem:[#allocation2 + $0x8] sm:$0xff] %vm817, %v814
    %820 = vrot.lane.b32.xlu0 %v125, 112
    %v821 = vpop.permute.xlu0 %820
    %822 = vrot.lane.b32.xlu0 %v125, 80
    %v823 = vpop.permute.xlu0 %822
    %v824 = vsel %vm138, %v821, 0
    %v826 = vsel %vm138, %v823, 0
    %828 = vmatprep.subr.mxu0 0.0
    %829 = vmatpush1.xpose.msra.mxu0 0.0
    %830 = vmatprep.subr.mxu0 0.0
    %831 = vmatpush1.xpose.msra.mxu0 0.0
    %832 = vmatprep.subr.mxu0 0.0
    %833 = vmatpush1.xpose.msra.mxu0 0.0
    %834 = vmatprep.subr.mxu0 0.0
    %835 = vmatpush1.xpose.msra.mxu0 0.0
    %836 = vmatprep.subr.mxu0 0.0
    %837 = vmatpush1.xpose.msra.mxu0 0.0
    %838 = vmatprep.subr.mxu0 0.0
    %839 = vmatpush1.xpose.msra.mxu0 0.0
    %840 = vmatprep.subr.mxu0 0.0
    %841 = vmatpush1.xpose.msra.mxu0 0.0
    %842 = vmatprep.subr.mxu0 0.0
    %843 = vmatpush1.xpose.msra.mxu0 0.0
    %844 = vmatprep.subr.mxu0 0.0
    %845 = vmatpush1.xpose.msra.mxu0 0.0
    %846 = vmatprep.subr.mxu0 0.0
    %847 = vmatpush1.xpose.msra.mxu0 0.0
    %848 = vmatprep.subr.mxu0 0.0
    %849 = vmatpush1.xpose.msra.mxu0 0.0
    %850 = vmatprep.subr.mxu0 0.0
    %851 = vmatpush1.xpose.msra.mxu0 0.0
    %852 = vmatprep.subr.mxu0 0.0
    %853 = vmatpush1.xpose.msra.mxu0 0.0
    %854 = vmatprep.subr.mxu0 0.0
    %855 = vmatpush1.xpose.msra.mxu0 0.0
    %856 = vmatprep.subr.mxu0 0.0
    %857 = vmatpush1.xpose.msra.mxu0 0.0
    %858 = vmatprep.subr.mxu0 0.0
    %859 = vmatpush1.xpose.msra.mxu0 %v826
    %860 = vmatprep.subr.mxu0 0.0
    %861 = vmatpush2.xpose.msra.mxu0 0.0
    %862 = vmatprep.subr.mxu0 0.0
    %863 = vmatpush2.xpose.msra.mxu0 0.0
    %864 = vmatprep.subr.mxu0 0.0
    %865 = vmatpush2.xpose.msra.mxu0 0.0
    %866 = vmatprep.subr.mxu0 0.0
    %867 = vmatpush2.xpose.msra.mxu0 0.0
    %868 = vmatprep.subr.mxu0 0.0
    %869 = vmatpush2.xpose.msra.mxu0 0.0
    %870 = vmatprep.subr.mxu0 0.0
    %871 = vmatpush2.xpose.msra.mxu0 0.0
    %872 = vmatprep.subr.mxu0 0.0
    %873 = vmatpush2.xpose.msra.mxu0 0.0
    %874 = vmatprep.subr.mxu0 0.0
    %875 = vmatpush2.xpose.msra.mxu0 0.0
    %876 = vmatprep.subr.mxu0 0.0
    %877 = vmatpush2.xpose.msra.mxu0 0.0
    %878 = vmatprep.subr.mxu0 0.0
    %879 = vmatpush2.xpose.msra.mxu0 0.0
    %880 = vmatprep.subr.mxu0 0.0
    %881 = vmatpush2.xpose.msra.mxu0 0.0
    %882 = vmatprep.subr.mxu0 0.0
    %883 = vmatpush2.xpose.msra.mxu0 0.0
    %884 = vmatprep.subr.mxu0 0.0
    %885 = vmatpush2.xpose.msra.mxu0 0.0
    %886 = vmatprep.subr.mxu0 0.0
    %887 = vmatpush2.xpose.msra.mxu0 0.0
    %888 = vmatprep.subr.mxu0 0.0
    %889 = vmatpush2.xpose.msra.mxu0 0.0
    %890 = vmatprep.subr.mxu0 0.0
    %891 = vmatpush2.xpose.msra.mxu0 0.0
    %892 = vmatprep.mubr.f32.mxu0 0.0
    %893 = vmatmul.mubr.f32.gmra.mxu0 %v824
    %v894 = vpop.f32.mrf.mxu0
    %v895 = vadd.f32 0.0, %v894
    %v896 = vpop.f32.mrf.mxu0
    %897 = vdwg.mxu0
    %898 = vrot.lane.b32.xlu0 %v130, 112
    %v899 = vpop.permute.xlu0 %898
    %900 = vrot.lane.b32.xlu0 %v130, 80
    %v901 = vpop.permute.xlu0 %900
    %v902 = vsel %vm138, %v899, 0
    %v904 = vsel %vm138, %v901, 0
    %906 = vmatprep.subr.mxu0 0.0
    %907 = vmatpush1.xpose.msra.mxu0 0.0
    %908 = vmatprep.subr.mxu0 0.0
    %909 = vmatpush1.xpose.msra.mxu0 0.0
    %910 = vmatprep.subr.mxu0 0.0
    %911 = vmatpush1.xpose.msra.mxu0 0.0
    %912 = vmatprep.subr.mxu0 0.0
    %913 = vmatpush1.xpose.msra.mxu0 0.0
    %914 = vmatprep.subr.mxu0 0.0
    %915 = vmatpush1.xpose.msra.mxu0 0.0
    %916 = vmatprep.subr.mxu0 0.0
    %917 = vmatpush1.xpose.msra.mxu0 0.0
    %918 = vmatprep.subr.mxu0 0.0
    %919 = vmatpush1.xpose.msra.mxu0 0.0
    %920 = vmatprep.subr.mxu0 0.0
    %921 = vmatpush1.xpose.msra.mxu0 0.0
    %922 = vmatprep.subr.mxu0 0.0
    %923 = vmatpush1.xpose.msra.mxu0 0.0
    %924 = vmatprep.subr.mxu0 0.0
    %925 = vmatpush1.xpose.msra.mxu0 0.0
    %926 = vmatprep.subr.mxu0 0.0
    %927 = vmatpush1.xpose.msra.mxu0 0.0
    %928 = vmatprep.subr.mxu0 0.0
    %929 = vmatpush1.xpose.msra.mxu0 0.0
    %930 = vmatprep.subr.mxu0 0.0
    %931 = vmatpush1.xpose.msra.mxu0 0.0
    %932 = vmatprep.subr.mxu0 0.0
    %933 = vmatpush1.xpose.msra.mxu0 0.0
    %934 = vmatprep.subr.mxu0 0.0
    %935 = vmatpush1.xpose.msra.mxu0 0.0
    %936 = vmatprep.subr.mxu0 0.0
    %937 = vmatpush1.xpose.msra.mxu0 %v904
    %938 = vmatprep.subr.mxu0 0.0
    %939 = vmatpush2.xpose.msra.mxu0 0.0
    %940 = vmatprep.subr.mxu0 0.0
    %941 = vmatpush2.xpose.msra.mxu0 0.0
    %942 = vmatprep.subr.mxu0 0.0
    %943 = vmatpush2.xpose.msra.mxu0 0.0
    %944 = vmatprep.subr.mxu0 0.0
    %945 = vmatpush2.xpose.msra.mxu0 0.0
    %946 = vmatprep.subr.mxu0 0.0
    %947 = vmatpush2.xpose.msra.mxu0 0.0
    %948 = vmatprep.subr.mxu0 0.0
    %949 = vmatpush2.xpose.msra.mxu0 0.0
    %950 = vmatprep.subr.mxu0 0.0
    %951 = vmatpush2.xpose.msra.mxu0 0.0
    %952 = vmatprep.subr.mxu0 0.0
    %953 = vmatpush2.xpose.msra.mxu0 0.0
    %954 = vmatprep.subr.mxu0 0.0
    %955 = vmatpush2.xpose.msra.mxu0 0.0
    %956 = vmatprep.subr.mxu0 0.0
    %957 = vmatpush2.xpose.msra.mxu0 0.0
    %958 = vmatprep.subr.mxu0 0.0
    %959 = vmatpush2.xpose.msra.mxu0 0.0
    %960 = vmatprep.subr.mxu0 0.0
    %961 = vmatpush2.xpose.msra.mxu0 0.0
    %962 = vmatprep.subr.mxu0 0.0
    %963 = vmatpush2.xpose.msra.mxu0 0.0
    %964 = vmatprep.subr.mxu0 0.0
    %965 = vmatpush2.xpose.msra.mxu0 0.0
    %966 = vmatprep.subr.mxu0 0.0
    %967 = vmatpush2.xpose.msra.mxu0 0.0
    %968 = vmatprep.subr.mxu0 0.0
    %969 = vmatpush2.xpose.msra.mxu0 0.0
    %970 = vmatprep.mubr.f32.mxu0 0.0
    %971 = vmatmul.mubr.f32.gmra.mxu0 %v902
    %v972 = vpop.f32.mrf.mxu0
    %v973 = vadd.f32 0.0, %v972
    %v974 = vpop.f32.mrf.mxu0
    %975 = vdwg.mxu0
    %v976 = vmul.f32 %v895, 0.35355338
    %v977 = vmul.f32 %v973, 0.35355338
    %v978 = vsel %vm296, %v976, -1e+30
    %v979 = vsel %vm296, %v977, -1e+30
    %v980 = vsel %vm138, %v978, -inf
    %981 = vmax.xlane.f32.xlu0 %v980
    %v982 = vpop.xlane.xlu0 %981
    %v983 = vsel %vm138, %v979, -inf
    %984 = vmax.xlane.f32.xlu0 %v983
    %v985 = vpop.xlane.xlu0 %984
    %v986 = vsub.f32 %v978, %v982
    %v987 = vsub.f32 %v979, %v985
    %v988 = vmul.f32 %v986, 1.442695
    %v989 = vpow.pop %v988
    %v990 = vmul.f32 %v987, 1.442695
    %v991 = vpow.pop %v990
    %v992 = vsel %vm138, %v989, 0.0
    %993 = vadd.xlane.f32.xlu0 %v992
    %v994 = vpop.xlane.xlu0 %993
    %v995 = vsel %vm138, %v991, 0.0
    %996 = vadd.xlane.f32.xlu0 %v995
    %v997 = vpop.xlane.xlu0 %996
    %v998 = vrcp.pop %v994
    %v999 = vmul.f32 %v989, %v998
    %v1000 = vrcp.pop %v997
    %v1001 = vmul.f32 %v991, %v1000
    %1002 = vrot.lane.b32.xlu0 %v125, 48
    %v1003 = vpop.permute.xlu0 %1002
    %v1006 = vsel %vm138, %v999, 0
    %1008 = vmatprep.subr.mxu0 0.0
    %1009 = vmatpush1.msra.mxu0 0.0
    %1010 = vmatprep.subr.mxu0 0.0
    %1011 = vmatpush1.msra.mxu0 0.0
    %1012 = vmatprep.subr.mxu0 0.0
    %1013 = vmatpush1.msra.mxu0 0.0
    %1014 = vmatprep.subr.mxu0 0.0
    %1015 = vmatpush1.msra.mxu0 0.0
    %1016 = vmatprep.subr.mxu0 0.0
    %1017 = vmatpush1.msra.mxu0 0.0
    %1018 = vmatprep.subr.mxu0 0.0
    %1019 = vmatpush1.msra.mxu0 0.0
    %1020 = vmatprep.subr.mxu0 0.0
    %1021 = vmatpush1.msra.mxu0 0.0
    %1022 = vmatprep.subr.mxu0 0.0
    %1023 = vmatpush1.msra.mxu0 0.0
    %1024 = vmatprep.subr.mxu0 0.0
    %1025 = vmatpush1.msra.mxu0 0.0
    %1026 = vmatprep.subr.mxu0 0.0
    %1027 = vmatpush1.msra.mxu0 0.0
    %1028 = vmatprep.subr.mxu0 0.0
    %1029 = vmatpush1.msra.mxu0 0.0
    %1030 = vmatprep.subr.mxu0 0.0
    %1031 = vmatpush1.msra.mxu0 0.0
    %1032 = vmatprep.subr.mxu0 0.0
    %1033 = vmatpush1.msra.mxu0 0.0
    %1034 = vmatprep.subr.mxu0 0.0
    %1035 = vmatpush1.msra.mxu0 0.0
    %1036 = vmatprep.subr.mxu0 0.0
    %1037 = vmatpush1.msra.mxu0 0.0
    %1038 = vmatprep.subr.mxu0 0.0
    %1039 = vmatpush1.msra.mxu0 %v1003
    %1040 = vmatprep.subr.mxu0 0.0
    %1041 = vmatpush2.msra.mxu0 0.0
    %1042 = vmatprep.subr.mxu0 0.0
    %1043 = vmatpush2.msra.mxu0 0.0
    %1044 = vmatprep.subr.mxu0 0.0
    %1045 = vmatpush2.msra.mxu0 0.0
    %1046 = vmatprep.subr.mxu0 0.0
    %1047 = vmatpush2.msra.mxu0 0.0
    %1048 = vmatprep.subr.mxu0 0.0
    %1049 = vmatpush2.msra.mxu0 0.0
    %1050 = vmatprep.subr.mxu0 0.0
    %1051 = vmatpush2.msra.mxu0 0.0
    %1052 = vmatprep.subr.mxu0 0.0
    %1053 = vmatpush2.msra.mxu0 0.0
    %1054 = vmatprep.subr.mxu0 0.0
    %1055 = vmatpush2.msra.mxu0 0.0
    %1056 = vmatprep.subr.mxu0 0.0
    %1057 = vmatpush2.msra.mxu0 0.0
    %1058 = vmatprep.subr.mxu0 0.0
    %1059 = vmatpush2.msra.mxu0 0.0
    %1060 = vmatprep.subr.mxu0 0.0
    %1061 = vmatpush2.msra.mxu0 0.0
    %1062 = vmatprep.subr.mxu0 0.0
    %1063 = vmatpush2.msra.mxu0 0.0
    %1064 = vmatprep.subr.mxu0 0.0
    %1065 = vmatpush2.msra.mxu0 0.0
    %1066 = vmatprep.subr.mxu0 0.0
    %1067 = vmatpush2.msra.mxu0 0.0
    %1068 = vmatprep.subr.mxu0 0.0
    %1069 = vmatpush2.msra.mxu0 0.0
    %1070 = vmatprep.subr.mxu0 0.0
    %1071 = vmatpush2.msra.mxu0 0.0
    %1072 = vmatprep.mubr.f32.mxu0 0.0
    %1073 = vmatmul.mubr.f32.gmra.mxu0 %v1006
    %v1074 = vpop.f32.mrf.mxu0
    %v1075 = vadd.f32 0.0, %v1074
    %v1076 = vpop.f32.mrf.mxu0
    %1077 = vdwg.mxu0
    %1078 = vrot.lane.b32.xlu0 %v130, 48
    %v1079 = vpop.permute.xlu0 %1078
    %v1082 = vsel %vm138, %v1001, 0
    %1084 = vmatprep.subr.mxu0 0.0
    %1085 = vmatpush1.msra.mxu0 0.0
    %1086 = vmatprep.subr.mxu0 0.0
    %1087 = vmatpush1.msra.mxu0 0.0
    %1088 = vmatprep.subr.mxu0 0.0
    %1089 = vmatpush1.msra.mxu0 0.0
    %1090 = vmatprep.subr.mxu0 0.0
    %1091 = vmatpush1.msra.mxu0 0.0
    %1092 = vmatprep.subr.mxu0 0.0
    %1093 = vmatpush1.msra.mxu0 0.0
    %1094 = vmatprep.subr.mxu0 0.0
    %1095 = vmatpush1.msra.mxu0 0.0
    %1096 = vmatprep.subr.mxu0 0.0
    %1097 = vmatpush1.msra.mxu0 0.0
    %1098 = vmatprep.subr.mxu0 0.0
    %1099 = vmatpush1.msra.mxu0 0.0
    %1100 = vmatprep.subr.mxu0 0.0
    %1101 = vmatpush1.msra.mxu0 0.0
    %1102 = vmatprep.subr.mxu0 0.0
    %1103 = vmatpush1.msra.mxu0 0.0
    %1104 = vmatprep.subr.mxu0 0.0
    %1105 = vmatpush1.msra.mxu0 0.0
    %1106 = vmatprep.subr.mxu0 0.0
    %1107 = vmatpush1.msra.mxu0 0.0
    %1108 = vmatprep.subr.mxu0 0.0
    %1109 = vmatpush1.msra.mxu0 0.0
    %1110 = vmatprep.subr.mxu0 0.0
    %1111 = vmatpush1.msra.mxu0 0.0
    %1112 = vmatprep.subr.mxu0 0.0
    %1113 = vmatpush1.msra.mxu0 0.0
    %1114 = vmatprep.subr.mxu0 0.0
    %1115 = vmatpush1.msra.mxu0 %v1079
    %1116 = vmatprep.subr.mxu0 0.0
    %1117 = vmatpush2.msra.mxu0 0.0
    %1118 = vmatprep.subr.mxu0 0.0
    %1119 = vmatpush2.msra.mxu0 0.0
    %1120 = vmatprep.subr.mxu0 0.0
    %1121 = vmatpush2.msra.mxu0 0.0
    %1122 = vmatprep.subr.mxu0 0.0
    %1123 = vmatpush2.msra.mxu0 0.0
    %1124 = vmatprep.subr.mxu0 0.0
    %1125 = vmatpush2.msra.mxu0 0.0
    %1126 = vmatprep.subr.mxu0 0.0
    %1127 = vmatpush2.msra.mxu0 0.0
    %1128 = vmatprep.subr.mxu0 0.0
    %1129 = vmatpush2.msra.mxu0 0.0
    %1130 = vmatprep.subr.mxu0 0.0
    %1131 = vmatpush2.msra.mxu0 0.0
    %1132 = vmatprep.subr.mxu0 0.0
    %1133 = vmatpush2.msra.mxu0 0.0
    %1134 = vmatprep.subr.mxu0 0.0
    %1135 = vmatpush2.msra.mxu0 0.0
    %1136 = vmatprep.subr.mxu0 0.0
    %1137 = vmatpush2.msra.mxu0 0.0
    %1138 = vmatprep.subr.mxu0 0.0
    %1139 = vmatpush2.msra.mxu0 0.0
    %1140 = vmatprep.subr.mxu0 0.0
    %1141 = vmatpush2.msra.mxu0 0.0
    %1142 = vmatprep.subr.mxu0 0.0
    %1143 = vmatpush2.msra.mxu0 0.0
    %1144 = vmatprep.subr.mxu0 0.0
    %1145 = vmatpush2.msra.mxu0 0.0
    %1146 = vmatprep.subr.mxu0 0.0
    %1147 = vmatpush2.msra.mxu0 0.0
    %1148 = vmatprep.mubr.f32.mxu0 0.0
    %1149 = vmatmul.mubr.f32.gmra.mxu0 %v1082
    %v1150 = vpop.f32.mrf.mxu0
    %v1151 = vadd.f32 0.0, %v1150
    %v1152 = vpop.f32.mrf.mxu0
    %1153 = vdwg.mxu0
    %1156 = vrot.lane.b32.xlu0 %v1075, 16
    %v1157 = vpop.permute.xlu0 %1156
    %1158 = vrot.lane.b32.xlu0 %v1151, 16
    %v1159 = vpop.permute.xlu0 %1158
    %vm1162 = vcmask 195712
    %1163 = vst.msk [vmem:[#allocation2] sm:$0xff] %vm1162, %v1157
    %1164 = vst.msk [vmem:[#allocation2 + $0x8] sm:$0xff] %vm1162, %v1159
    %1165 = vrot.lane.b32.xlu0 %v125, 104
    %v1166 = vpop.permute.xlu0 %1165
    %1167 = vrot.lane.b32.xlu0 %v125, 72
    %v1168 = vpop.permute.xlu0 %1167
    %v1169 = vsel %vm138, %v1166, 0
    %v1171 = vsel %vm138, %v1168, 0
    %1173 = vmatprep.subr.mxu0 0.0
    %1174 = vmatpush1.xpose.msra.mxu0 0.0
    %1175 = vmatprep.subr.mxu0 0.0
    %1176 = vmatpush1.xpose.msra.mxu0 0.0
    %1177 = vmatprep.subr.mxu0 0.0
    %1178 = vmatpush1.xpose.msra.mxu0 0.0
    %1179 = vmatprep.subr.mxu0 0.0
    %1180 = vmatpush1.xpose.msra.mxu0 0.0
    %1181 = vmatprep.subr.mxu0 0.0
    %1182 = vmatpush1.xpose.msra.mxu0 0.0
    %1183 = vmatprep.subr.mxu0 0.0
    %1184 = vmatpush1.xpose.msra.mxu0 0.0
    %1185 = vmatprep.subr.mxu0 0.0
    %1186 = vmatpush1.xpose.msra.mxu0 0.0
    %1187 = vmatprep.subr.mxu0 0.0
    %1188 = vmatpush1.xpose.msra.mxu0 0.0
    %1189 = vmatprep.subr.mxu0 0.0
    %1190 = vmatpush1.xpose.msra.mxu0 0.0
    %1191 = vmatprep.subr.mxu0 0.0
    %1192 = vmatpush1.xpose.msra.mxu0 0.0
    %1193 = vmatprep.subr.mxu0 0.0
    %1194 = vmatpush1.xpose.msra.mxu0 0.0
    %1195 = vmatprep.subr.mxu0 0.0
    %1196 = vmatpush1.xpose.msra.mxu0 0.0
    %1197 = vmatprep.subr.mxu0 0.0
    %1198 = vmatpush1.xpose.msra.mxu0 0.0
    %1199 = vmatprep.subr.mxu0 0.0
    %1200 = vmatpush1.xpose.msra.mxu0 0.0
    %1201 = vmatprep.subr.mxu0 0.0
    %1202 = vmatpush1.xpose.msra.mxu0 0.0
    %1203 = vmatprep.subr.mxu0 0.0
    %1204 = vmatpush1.xpose.msra.mxu0 %v1171
    %1205 = vmatprep.subr.mxu0 0.0
    %1206 = vmatpush2.xpose.msra.mxu0 0.0
    %1207 = vmatprep.subr.mxu0 0.0
    %1208 = vmatpush2.xpose.msra.mxu0 0.0
    %1209 = vmatprep.subr.mxu0 0.0
    %1210 = vmatpush2.xpose.msra.mxu0 0.0
    %1211 = vmatprep.subr.mxu0 0.0
    %1212 = vmatpush2.xpose.msra.mxu0 0.0
    %1213 = vmatprep.subr.mxu0 0.0
    %1214 = vmatpush2.xpose.msra.mxu0 0.0
    %1215 = vmatprep.subr.mxu0 0.0
    %1216 = vmatpush2.xpose.msra.mxu0 0.0
    %1217 = vmatprep.subr.mxu0 0.0
    %1218 = vmatpush2.xpose.msra.mxu0 0.0
    %1219 = vmatprep.subr.mxu0 0.0
    %1220 = vmatpush2.xpose.msra.mxu0 0.0
    %1221 = vmatprep.subr.mxu0 0.0
    %1222 = vmatpush2.xpose.msra.mxu0 0.0
    %1223 = vmatprep.subr.mxu0 0.0
    %1224 = vmatpush2.xpose.msra.mxu0 0.0
    %1225 = vmatprep.subr.mxu0 0.0
    %1226 = vmatpush2.xpose.msra.mxu0 0.0
    %1227 = vmatprep.subr.mxu0 0.0
    %1228 = vmatpush2.xpose.msra.mxu0 0.0
    %1229 = vmatprep.subr.mxu0 0.0
    %1230 = vmatpush2.xpose.msra.mxu0 0.0
    %1231 = vmatprep.subr.mxu0 0.0
    %1232 = vmatpush2.xpose.msra.mxu0 0.0
    %1233 = vmatprep.subr.mxu0 0.0
    %1234 = vmatpush2.xpose.msra.mxu0 0.0
    %1235 = vmatprep.subr.mxu0 0.0
    %1236 = vmatpush2.xpose.msra.mxu0 0.0
    %1237 = vmatprep.mubr.f32.mxu0 0.0
    %1238 = vmatmul.mubr.f32.gmra.mxu0 %v1169
    %v1239 = vpop.f32.mrf.mxu0
    %v1240 = vadd.f32 0.0, %v1239
    %v1241 = vpop.f32.mrf.mxu0
    %1242 = vdwg.mxu0
    %1243 = vrot.lane.b32.xlu0 %v130, 104
    %v1244 = vpop.permute.xlu0 %1243
    %1245 = vrot.lane.b32.xlu0 %v130, 72
    %v1246 = vpop.permute.xlu0 %1245
    %v1247 = vsel %vm138, %v1244, 0
    %v1249 = vsel %vm138, %v1246, 0
    %1251 = vmatprep.subr.mxu0 0.0
    %1252 = vmatpush1.xpose.msra.mxu0 0.0
    %1253 = vmatprep.subr.mxu0 0.0
    %1254 = vmatpush1.xpose.msra.mxu0 0.0
    %1255 = vmatprep.subr.mxu0 0.0
    %1256 = vmatpush1.xpose.msra.mxu0 0.0
    %1257 = vmatprep.subr.mxu0 0.0
    %1258 = vmatpush1.xpose.msra.mxu0 0.0
    %1259 = vmatprep.subr.mxu0 0.0
    %1260 = vmatpush1.xpose.msra.mxu0 0.0
    %1261 = vmatprep.subr.mxu0 0.0
    %1262 = vmatpush1.xpose.msra.mxu0 0.0
    %1263 = vmatprep.subr.mxu0 0.0
    %1264 = vmatpush1.xpose.msra.mxu0 0.0
    %1265 = vmatprep.subr.mxu0 0.0
    %1266 = vmatpush1.xpose.msra.mxu0 0.0
    %1267 = vmatprep.subr.mxu0 0.0
    %1268 = vmatpush1.xpose.msra.mxu0 0.0
    %1269 = vmatprep.subr.mxu0 0.0
    %1270 = vmatpush1.xpose.msra.mxu0 0.0
    %1271 = vmatprep.subr.mxu0 0.0
    %1272 = vmatpush1.xpose.msra.mxu0 0.0
    %1273 = vmatprep.subr.mxu0 0.0
    %1274 = vmatpush1.xpose.msra.mxu0 0.0
    %1275 = vmatprep.subr.mxu0 0.0
    %1276 = vmatpush1.xpose.msra.mxu0 0.0
    %1277 = vmatprep.subr.mxu0 0.0
    %1278 = vmatpush1.xpose.msra.mxu0 0.0
    %1279 = vmatprep.subr.mxu0 0.0
    %1280 = vmatpush1.xpose.msra.mxu0 0.0
    %1281 = vmatprep.subr.mxu0 0.0
    %1282 = vmatpush1.xpose.msra.mxu0 %v1249
    %1283 = vmatprep.subr.mxu0 0.0
    %1284 = vmatpush2.xpose.msra.mxu0 0.0
    %1285 = vmatprep.subr.mxu0 0.0
    %1286 = vmatpush2.xpose.msra.mxu0 0.0
    %1287 = vmatprep.subr.mxu0 0.0
    %1288 = vmatpush2.xpose.msra.mxu0 0.0
    %1289 = vmatprep.subr.mxu0 0.0
    %1290 = vmatpush2.xpose.msra.mxu0 0.0
    %1291 = vmatprep.subr.mxu0 0.0
    %1292 = vmatpush2.xpose.msra.mxu0 0.0
    %1293 = vmatprep.subr.mxu0 0.0
    %1294 = vmatpush2.xpose.msra.mxu0 0.0
    %1295 = vmatprep.subr.mxu0 0.0
    %1296 = vmatpush2.xpose.msra.mxu0 0.0
    %1297 = vmatprep.subr.mxu0 0.0
    %1298 = vmatpush2.xpose.msra.mxu0 0.0
    %1299 = vmatprep.subr.mxu0 0.0
    %1300 = vmatpush2.xpose.msra.mxu0 0.0
    %1301 = vmatprep.subr.mxu0 0.0
    %1302 = vmatpush2.xpose.msra.mxu0 0.0
    %1303 = vmatprep.subr.mxu0 0.0
    %1304 = vmatpush2.xpose.msra.mxu0 0.0
    %1305 = vmatprep.subr.mxu0 0.0
    %1306 = vmatpush2.xpose.msra.mxu0 0.0
    %1307 = vmatprep.subr.mxu0 0.0
    %1308 = vmatpush2.xpose.msra.mxu0 0.0
    %1309 = vmatprep.subr.mxu0 0.0
    %1310 = vmatpush2.xpose.msra.mxu0 0.0
    %1311 = vmatprep.subr.mxu0 0.0
    %1312 = vmatpush2.xpose.msra.mxu0 0.0
    %1313 = vmatprep.subr.mxu0 0.0
    %1314 = vmatpush2.xpose.msra.mxu0 0.0
    %1315 = vmatprep.mubr.f32.mxu0 0.0
    %1316 = vmatmul.mubr.f32.gmra.mxu0 %v1247
    %v1317 = vpop.f32.mrf.mxu0
    %v1318 = vadd.f32 0.0, %v1317
    %v1319 = vpop.f32.mrf.mxu0
    %1320 = vdwg.mxu0
    %v1321 = vmul.f32 %v1240, 0.35355338
    %v1322 = vmul.f32 %v1318, 0.35355338
    %v1323 = vsel %vm296, %v1321, -1e+30
    %v1324 = vsel %vm296, %v1322, -1e+30
    %v1325 = vsel %vm138, %v1323, -inf
    %1326 = vmax.xlane.f32.xlu0 %v1325
    %v1327 = vpop.xlane.xlu0 %1326
    %v1328 = vsel %vm138, %v1324, -inf
    %1329 = vmax.xlane.f32.xlu0 %v1328
    %v1330 = vpop.xlane.xlu0 %1329
    %v1331 = vsub.f32 %v1323, %v1327
    %v1332 = vsub.f32 %v1324, %v1330
    %v1333 = vmul.f32 %v1331, 1.442695
    %v1334 = vpow.pop %v1333
    %v1335 = vmul.f32 %v1332, 1.442695
    %v1336 = vpow.pop %v1335
    %v1337 = vsel %vm138, %v1334, 0.0
    %1338 = vadd.xlane.f32.xlu0 %v1337
    %v1339 = vpop.xlane.xlu0 %1338
    %v1340 = vsel %vm138, %v1336, 0.0
    %1341 = vadd.xlane.f32.xlu0 %v1340
    %v1342 = vpop.xlane.xlu0 %1341
    %v1343 = vrcp.pop %v1339
    %v1344 = vmul.f32 %v1334, %v1343
    %v1345 = vrcp.pop %v1342
    %v1346 = vmul.f32 %v1336, %v1345
    %1347 = vrot.lane.b32.xlu0 %v125, 40
    %v1348 = vpop.permute.xlu0 %1347
    %v1351 = vsel %vm138, %v1344, 0
    %1353 = vmatprep.subr.mxu0 0.0
    %1354 = vmatpush1.msra.mxu0 0.0
    %1355 = vmatprep.subr.mxu0 0.0
    %1356 = vmatpush1.msra.mxu0 0.0
    %1357 = vmatprep.subr.mxu0 0.0
    %1358 = vmatpush1.msra.mxu0 0.0
    %1359 = vmatprep.subr.mxu0 0.0
    %1360 = vmatpush1.msra.mxu0 0.0
    %1361 = vmatprep.subr.mxu0 0.0
    %1362 = vmatpush1.msra.mxu0 0.0
    %1363 = vmatprep.subr.mxu0 0.0
    %1364 = vmatpush1.msra.mxu0 0.0
    %1365 = vmatprep.subr.mxu0 0.0
    %1366 = vmatpush1.msra.mxu0 0.0
    %1367 = vmatprep.subr.mxu0 0.0
    %1368 = vmatpush1.msra.mxu0 0.0
    %1369 = vmatprep.subr.mxu0 0.0
    %1370 = vmatpush1.msra.mxu0 0.0
    %1371 = vmatprep.subr.mxu0 0.0
    %1372 = vmatpush1.msra.mxu0 0.0
    %1373 = vmatprep.subr.mxu0 0.0
    %1374 = vmatpush1.msra.mxu0 0.0
    %1375 = vmatprep.subr.mxu0 0.0
    %1376 = vmatpush1.msra.mxu0 0.0
    %1377 = vmatprep.subr.mxu0 0.0
    %1378 = vmatpush1.msra.mxu0 0.0
    %1379 = vmatprep.subr.mxu0 0.0
    %1380 = vmatpush1.msra.mxu0 0.0
    %1381 = vmatprep.subr.mxu0 0.0
    %1382 = vmatpush1.msra.mxu0 0.0
    %1383 = vmatprep.subr.mxu0 0.0
    %1384 = vmatpush1.msra.mxu0 %v1348
    %1385 = vmatprep.subr.mxu0 0.0
    %1386 = vmatpush2.msra.mxu0 0.0
    %1387 = vmatprep.subr.mxu0 0.0
    %1388 = vmatpush2.msra.mxu0 0.0
    %1389 = vmatprep.subr.mxu0 0.0
    %1390 = vmatpush2.msra.mxu0 0.0
    %1391 = vmatprep.subr.mxu0 0.0
    %1392 = vmatpush2.msra.mxu0 0.0
    %1393 = vmatprep.subr.mxu0 0.0
    %1394 = vmatpush2.msra.mxu0 0.0
    %1395 = vmatprep.subr.mxu0 0.0
    %1396 = vmatpush2.msra.mxu0 0.0
    %1397 = vmatprep.subr.mxu0 0.0
    %1398 = vmatpush2.msra.mxu0 0.0
    %1399 = vmatprep.subr.mxu0 0.0
    %1400 = vmatpush2.msra.mxu0 0.0
    %1401 = vmatprep.subr.mxu0 0.0
    %1402 = vmatpush2.msra.mxu0 0.0
    %1403 = vmatprep.subr.mxu0 0.0
    %1404 = vmatpush2.msra.mxu0 0.0
    %1405 = vmatprep.subr.mxu0 0.0
    %1406 = vmatpush2.msra.mxu0 0.0
    %1407 = vmatprep.subr.mxu0 0.0
    %1408 = vmatpush2.msra.mxu0 0.0
    %1409 = vmatprep.subr.mxu0 0.0
    %1410 = vmatpush2.msra.mxu0 0.0
    %1411 = vmatprep.subr.mxu0 0.0
    %1412 = vmatpush2.msra.mxu0 0.0
    %1413 = vmatprep.subr.mxu0 0.0
    %1414 = vmatpush2.msra.mxu0 0.0
    %1415 = vmatprep.subr.mxu0 0.0
    %1416 = vmatpush2.msra.mxu0 0.0
    %1417 = vmatprep.mubr.f32.mxu0 0.0
    %1418 = vmatmul.mubr.f32.gmra.mxu0 %v1351
    %v1419 = vpop.f32.mrf.mxu0
    %v1420 = vadd.f32 0.0, %v1419
    %v1421 = vpop.f32.mrf.mxu0
    %1422 = vdwg.mxu0
    %1423 = vrot.lane.b32.xlu0 %v130, 40
    %v1424 = vpop.permute.xlu0 %1423
    %v1427 = vsel %vm138, %v1346, 0
    %1429 = vmatprep.subr.mxu0 0.0
    %1430 = vmatpush1.msra.mxu0 0.0
    %1431 = vmatprep.subr.mxu0 0.0
    %1432 = vmatpush1.msra.mxu0 0.0
    %1433 = vmatprep.subr.mxu0 0.0
    %1434 = vmatpush1.msra.mxu0 0.0
    %1435 = vmatprep.subr.mxu0 0.0
    %1436 = vmatpush1.msra.mxu0 0.0
    %1437 = vmatprep.subr.mxu0 0.0
    %1438 = vmatpush1.msra.mxu0 0.0
    %1439 = vmatprep.subr.mxu0 0.0
    %1440 = vmatpush1.msra.mxu0 0.0
    %1441 = vmatprep.subr.mxu0 0.0
    %1442 = vmatpush1.msra.mxu0 0.0
    %1443 = vmatprep.subr.mxu0 0.0
    %1444 = vmatpush1.msra.mxu0 0.0
    %1445 = vmatprep.subr.mxu0 0.0
    %1446 = vmatpush1.msra.mxu0 0.0
    %1447 = vmatprep.subr.mxu0 0.0
    %1448 = vmatpush1.msra.mxu0 0.0
    %1449 = vmatprep.subr.mxu0 0.0
    %1450 = vmatpush1.msra.mxu0 0.0
    %1451 = vmatprep.subr.mxu0 0.0
    %1452 = vmatpush1.msra.mxu0 0.0
    %1453 = vmatprep.subr.mxu0 0.0
    %1454 = vmatpush1.msra.mxu0 0.0
    %1455 = vmatprep.subr.mxu0 0.0
    %1456 = vmatpush1.msra.mxu0 0.0
    %1457 = vmatprep.subr.mxu0 0.0
    %1458 = vmatpush1.msra.mxu0 0.0
    %1459 = vmatprep.subr.mxu0 0.0
    %1460 = vmatpush1.msra.mxu0 %v1424
    %1461 = vmatprep.subr.mxu0 0.0
    %1462 = vmatpush2.msra.mxu0 0.0
    %1463 = vmatprep.subr.mxu0 0.0
    %1464 = vmatpush2.msra.mxu0 0.0
    %1465 = vmatprep.subr.mxu0 0.0
    %1466 = vmatpush2.msra.mxu0 0.0
    %1467 = vmatprep.subr.mxu0 0.0
    %1468 = vmatpush2.msra.mxu0 0.0
    %1469 = vmatprep.subr.mxu0 0.0
    %1470 = vmatpush2.msra.mxu0 0.0
    %1471 = vmatprep.subr.mxu0 0.0
    %1472 = vmatpush2.msra.mxu0 0.0
    %1473 = vmatprep.subr.mxu0 0.0
    %1474 = vmatpush2.msra.mxu0 0.0
    %1475 = vmatprep.subr.mxu0 0.0
    %1476 = vmatpush2.msra.mxu0 0.0
    %1477 = vmatprep.subr.mxu0 0.0
    %1478 = vmatpush2.msra.mxu0 0.0
    %1479 = vmatprep.subr.mxu0 0.0
    %1480 = vmatpush2.msra.mxu0 0.0
    %1481 = vmatprep.subr.mxu0 0.0
    %1482 = vmatpush2.msra.mxu0 0.0
    %1483 = vmatprep.subr.mxu0 0.0
    %1484 = vmatpush2.msra.mxu0 0.0
    %1485 = vmatprep.subr.mxu0 0.0
    %1486 = vmatpush2.msra.mxu0 0.0
    %1487 = vmatprep.subr.mxu0 0.0
    %1488 = vmatpush2.msra.mxu0 0.0
    %1489 = vmatprep.subr.mxu0 0.0
    %1490 = vmatpush2.msra.mxu0 0.0
    %1491 = vmatprep.subr.mxu0 0.0
    %1492 = vmatpush2.msra.mxu0 0.0
    %1493 = vmatprep.mubr.f32.mxu0 0.0
    %1494 = vmatmul.mubr.f32.gmra.mxu0 %v1427
    %v1495 = vpop.f32.mrf.mxu0
    %v1496 = vadd.f32 0.0, %v1495
    %v1497 = vpop.f32.mrf.mxu0
    %1498 = vdwg.mxu0
    %1501 = vrot.lane.b32.xlu0 %v1420, 24
    %v1502 = vpop.permute.xlu0 %1501
    %1503 = vrot.lane.b32.xlu0 %v1496, 24
    %v1504 = vpop.permute.xlu0 %1503
    %vm1507 = vcmask 261312
    %1508 = vst.msk [vmem:[#allocation2] sm:$0xff] %vm1507, %v1502
    %1509 = vst.msk [vmem:[#allocation2 + $0x8] sm:$0xff] %vm1507, %v1504
    %v1510 = vld [vmem:[#allocation2] sm:$0xff]
    %v1511 = vld [vmem:[#allocation2 + $0x8] sm:$0xff]
    %v1512 = vadd.f32 %v45, %v1510
    %v1513 = vadd.f32 %v46, %v1511
    %v1514 = vsel %vm51, %v1512, 0.0
    %1515 = vadd.xlane.f32.xlu0 %v1514
    %v1516 = vpop.xlane.xlu0 %1515
    %v1517 = vsel %vm51, %v1513, 0.0
    %1518 = vadd.xlane.f32.xlu0 %v1517
    %v1519 = vpop.xlane.xlu0 %1518
    %v1520 = vrcp.pop 32.0
    %v1521 = vmul.f32 %v1516, %v1520
    %v1522 = vmul.f32 %v1519, %v1520
    %v1523 = vsub.f32 %v1512, %v1521
    %v1524 = vsub.f32 %v1513, %v1522
    %v1525 = vmul.f32 %v1523, %v1523
    %v1526 = vmul.f32 %v1524, %v1524
    %v1527 = vsel %vm51, %v1525, 0.0
    %1528 = vadd.xlane.f32.xlu0 %v1527
    %v1529 = vpop.xlane.xlu0 %1528
    %v1530 = vsel %vm51, %v1526, 0.0
    %1531 = vadd.xlane.f32.xlu0 %v1530
    %v1532 = vpop.xlane.xlu0 %1531
    %v1533 = vmul.f32 %v1529, %v1520
    %v1534 = vmul.f32 %v1532, %v1520
    %v1535 = vadd.f32 %v1533, 1e-05
    %v1536 = vadd.f32 %v1534, 1e-05
    %v1537 = vrsqrt.pop %v1535
    %v1538 = vrsqrt.pop %v1536
    %v1539 = vmul.f32 %v1523, %v1537
    %v1540 = vmul.f32 %v1524, %v1538
    %v1541 = vld [vmem:[%s8] sm:$0x1]
    %v1543 = vlaneseq
    %v1544 = vshrl.u32 %v1543, 7
    %v1545 = vsub.s32 0, %v1544
    %v1546 = vrot.slane %v1541, %v1545
    %v1548 = vmul.f32 %v1539, %v1546
    %v1549 = vmul.f32 %v1540, %v1546
    %v1550 = vld [vmem:[%s9] sm:$0x1]
    %v1552 = vlaneseq
    %v1553 = vshrl.u32 %v1552, 7
    %v1554 = vsub.s32 0, %v1553
    %v1555 = vrot.slane %v1550, %v1554
    %v1557 = vadd.f32 %v1548, %v1555
    %v1558 = vadd.f32 %v1549, %v1555
    %v1559 = vld [vmem:[%s4] sm:$0xff]
    %v1560 = vld [vmem:[%s4 + $0x8] sm:$0xff]
    %v1561 = vld [vmem:[%s4 + $0x10] sm:$0xff]
    %v1562 = vld [vmem:[%s4 + $0x18] sm:$0xff]
    %v1563 = vld [vmem:[%s5] sm:$0x1]
    %v1565 = vlaneseq
    %v1566 = vshrl.u32 %v1565, 7
    %v1567 = vsub.s32 0, %v1566
    %v1568 = vrot.slane %v1563, %v1567
    %v1571 = vsel %vm51, %v1557, 0
    %v1574 = vsel %vm51, %v1558, 0
    %1576 = vmatprep.subr.mxu0 0.0
    %1577 = vmatpush1.msra.mxu0 0.0
    %1578 = vmatprep.subr.mxu0 0.0
    %1579 = vmatpush1.msra.mxu0 0.0
    %1580 = vmatprep.subr.mxu0 0.0
    %1581 = vmatpush1.msra.mxu0 0.0
    %1582 = vmatprep.subr.mxu0 0.0
    %1583 = vmatpush1.msra.mxu0 0.0
    %1584 = vmatprep.subr.mxu0 0.0
    %1585 = vmatpush1.msra.mxu0 0.0
    %1586 = vmatprep.subr.mxu0 0.0
    %1587 = vmatpush1.msra.mxu0 0.0
    %1588 = vmatprep.subr.mxu0 0.0
    %1589 = vmatpush1.msra.mxu0 0.0
    %1590 = vmatprep.subr.mxu0 0.0
    %1591 = vmatpush1.msra.mxu0 0.0
    %1592 = vmatprep.subr.mxu0 0.0
    %1593 = vmatpush1.msra.mxu0 0.0
    %1594 = vmatprep.subr.mxu0 0.0
    %1595 = vmatpush1.msra.mxu0 0.0
    %1596 = vmatprep.subr.mxu0 0.0
    %1597 = vmatpush1.msra.mxu0 0.0
    %1598 = vmatprep.subr.mxu0 0.0
    %1599 = vmatpush1.msra.mxu0 0.0
    %1600 = vmatprep.subr.mxu0 0.0
    %1601 = vmatpush1.msra.mxu0 %v1562
    %1602 = vmatprep.subr.mxu0 0.0
    %1603 = vmatpush1.msra.mxu0 %v1561
    %1604 = vmatprep.subr.mxu0 0.0
    %1605 = vmatpush1.msra.mxu0 %v1560
    %1606 = vmatprep.subr.mxu0 0.0
    %1607 = vmatpush1.msra.mxu0 %v1559
    %1608 = vmatprep.subr.mxu0 0.0
    %1609 = vmatpush2.msra.mxu0 0.0
    %1610 = vmatprep.subr.mxu0 0.0
    %1611 = vmatpush2.msra.mxu0 0.0
    %1612 = vmatprep.subr.mxu0 0.0
    %1613 = vmatpush2.msra.mxu0 0.0
    %1614 = vmatprep.subr.mxu0 0.0
    %1615 = vmatpush2.msra.mxu0 0.0
    %1616 = vmatprep.subr.mxu0 0.0
    %1617 = vmatpush2.msra.mxu0 0.0
    %1618 = vmatprep.subr.mxu0 0.0
    %1619 = vmatpush2.msra.mxu0 0.0
    %1620 = vmatprep.subr.mxu0 0.0
    %1621 = vmatpush2.msra.mxu0 0.0
    %1622 = vmatprep.subr.mxu0 0.0
    %1623 = vmatpush2.msra.mxu0 0.0
    %1624 = vmatprep.subr.mxu0 0.0
    %1625 = vmatpush2.msra.mxu0 0.0
    %1626 = vmatprep.subr.mxu0 0.0
    %1627 = vmatpush2.msra.mxu0 0.0
    %1628 = vmatprep.subr.mxu0 0.0
    %1629 = vmatpush2.msra.mxu0 0.0
    %1630 = vmatprep.subr.mxu0 0.0
    %1631 = vmatpush2.msra.mxu0 0.0
    %1632 = vmatprep.subr.mxu0 0.0
    %1633 = vmatpush2.msra.mxu0 0.0
    %1634 = vmatprep.subr.mxu0 0.0
    %1635 = vmatpush2.msra.mxu0 0.0
    %1636 = vmatprep.subr.mxu0 0.0
    %1637 = vmatpush2.msra.mxu0 0.0
    %1638 = vmatprep.subr.mxu0 0.0
    %1639 = vmatpush2.msra.mxu0 0.0
    %1640 = vmatprep.mubr.f32.mxu0 0.0
    %1641 = vmatmul.mubr.f32.gmra.mxu0 %v1571
    %v1642 = vpop.f32.mrf.mxu0
    %v1643 = vadd.f32 %v1568, %v1642
    %v1644 = vpop.f32.mrf.mxu0
    %1645 = vmatprep.mubr.f32.mxu0 0.0
    %1646 = vmatmul.mubr.f32.gmra.mxu0 %v1574
    %v1647 = vpop.f32.mrf.mxu0
    %v1648 = vadd.f32 %v1568, %v1647
    %v1649 = vpop.f32.mrf.mxu0
    %1650 = vdwg.mxu0
    %v1651 = vmax.f32 %v1643, 0.0
    %v1652 = vmax.f32 %v1648, 0.0
    %v1653 = vld [vmem:[%s6] sm:$0xff]
    %v1654 = vld [vmem:[%s6 + $0x8] sm:$0xff]
    %v1655 = vld [vmem:[%s6 + $0x10] sm:$0xff]
    %v1656 = vld [vmem:[%s6 + $0x18] sm:$0xff]
    %v1657 = vld [vmem:[%s6 + $0x20] sm:$0xff]
    %v1658 = vld [vmem:[%s6 + $0x28] sm:$0xff]
    %v1659 = vld [vmem:[%s6 + $0x30] sm:$0xff]
    %v1660 = vld [vmem:[%s6 + $0x38] sm:$0xff]
    %v1661 = vld [vmem:[%s7] sm:$0x1]
    %v1663 = vlaneseq
    %v1664 = vshrl.u32 %v1663, 7
    %v1665 = vsub.s32 0, %v1664
    %v1666 = vrot.slane %v1661, %v1665
    %vm1668 = vcmask 523264
    %v1670 = vsel %vm1668, %v1651, 0
    %v1673 = vsel %vm1668, %v1652, 0
    %1675 = vmatprep.subr.mxu0 0.0
    %1676 = vmatpush1.msra.mxu0 0.0
    %1677 = vmatprep.subr.mxu0 0.0
    %1678 = vmatpush1.msra.mxu0 0.0
    %1679 = vmatprep.subr.mxu0 0.0
    %1680 = vmatpush1.msra.mxu0 0.0
    %1681 = vmatprep.subr.mxu0 0.0
    %1682 = vmatpush1.msra.mxu0 0.0
    %1683 = vmatprep.subr.mxu0 0.0
    %1684 = vmatpush1.msra.mxu0 0.0
    %1685 = vmatprep.subr.mxu0 0.0
    %1686 = vmatpush1.msra.mxu0 0.0
    %1687 = vmatprep.subr.mxu0 0.0
    %1688 = vmatpush1.msra.mxu0 0.0
    %1689 = vmatprep.subr.mxu0 0.0
    %1690 = vmatpush1.msra.mxu0 0.0
    %1691 = vmatprep.subr.mxu0 0.0
    %1692 = vmatpush1.msra.mxu0 %v1660
    %1693 = vmatprep.subr.mxu0 0.0
    %1694 = vmatpush1.msra.mxu0 %v1659
    %1695 = vmatprep.subr.mxu0 0.0
    %1696 = vmatpush1.msra.mxu0 %v1658
    %1697 = vmatprep.subr.mxu0 0.0
    %1698 = vmatpush1.msra.mxu0 %v1657
    %1699 = vmatprep.subr.mxu0 0.0
    %1700 = vmatpush1.msra.mxu0 %v1656
    %1701 = vmatprep.subr.mxu0 0.0
    %1702 = vmatpush1.msra.mxu0 %v1655
    %1703 = vmatprep.subr.mxu0 0.0
    %1704 = vmatpush1.msra.mxu0 %v1654
    %1705 = vmatprep.subr.mxu0 0.0
    %1706 = vmatpush1.msra.mxu0 %v1653
    %1707 = vmatprep.subr.mxu0 0.0
    %1708 = vmatpush2.msra.mxu0 0.0
    %1709 = vmatprep.subr.mxu0 0.0
    %1710 = vmatpush2.msra.mxu0 0.0
    %1711 = vmatprep.subr.mxu0 0.0
    %1712 = vmatpush2.msra.mxu0 0.0
    %1713 = vmatprep.subr.mxu0 0.0
    %1714 = vmatpush2.msra.mxu0 0.0
    %1715 = vmatprep.subr.mxu0 0.0
    %1716 = vmatpush2.msra.mxu0 0.0
    %1717 = vmatprep.subr.mxu0 0.0
    %1718 = vmatpush2.msra.mxu0 0.0
    %1719 = vmatprep.subr.mxu0 0.0
    %1720 = vmatpush2.msra.mxu0 0.0
    %1721 = vmatprep.subr.mxu0 0.0
    %1722 = vmatpush2.msra.mxu0 0.0
    %1723 = vmatprep.subr.mxu0 0.0
    %1724 = vmatpush2.msra.mxu0 0.0
    %1725 = vmatprep.subr.mxu0 0.0
    %1726 = vmatpush2.msra.mxu0 0.0
    %1727 = vmatprep.subr.mxu0 0.0
    %1728 = vmatpush2.msra.mxu0 0.0
    %1729 = vmatprep.subr.mxu0 0.0
    %1730 = vmatpush2.msra.mxu0 0.0
    %1731 = vmatprep.subr.mxu0 0.0
    %1732 = vmatpush2.msra.mxu0 0.0
    %1733 = vmatprep.subr.mxu0 0.0
    %1734 = vmatpush2.msra.mxu0 0.0
    %1735 = vmatprep.subr.mxu0 0.0
    %1736 = vmatpush2.msra.mxu0 0.0
    %1737 = vmatprep.subr.mxu0 0.0
    %1738 = vmatpush2.msra.mxu0 0.0
    %1739 = vmatprep.mubr.f32.mxu0 0.0
    %1740 = vmatmul.mubr.f32.gmra.mxu0 %v1670
    %v1741 = vpop.f32.mrf.mxu0
    %v1742 = vadd.f32 %v1666, %v1741
    %v1743 = vpop.f32.mrf.mxu0
    %1744 = vmatprep.mubr.f32.mxu0 0.0
    %1745 = vmatmul.mubr.f32.gmra.mxu0 %v1673
    %v1746 = vpop.f32.mrf.mxu0
    %v1747 = vadd.f32 %v1666, %v1746
    %v1748 = vpop.f32.mrf.mxu0
    %1749 = vdwg.mxu0
    %v1750 = vadd.f32 %v1557, %v1742
    %v1751 = vadd.f32 %v1558, %v1747
    %v1752 = vsel %vm51, %v1750, 0.0
    %1753 = vadd.xlane.f32.xlu0 %v1752
    %v1754 = vpop.xlane.xlu0 %1753
    %v1755 = vsel %vm51, %v1751, 0.0
    %1756 = vadd.xlane.f32.xlu0 %v1755
    %v1757 = vpop.xlane.xlu0 %1756
    %v1758 = vmul.f32 %v1754, %v1520
    %v1759 = vmul.f32 %v1757, %v1520
    %v1760 = vsub.f32 %v1750, %v1758
    %v1761 = vsub.f32 %v1751, %v1759
    %v1762 = vmul.f32 %v1760, %v1760
    %v1763 = vmul.f32 %v1761, %v1761
    %v1764 = vsel %vm51, %v1762, 0.0
    %1765 = vadd.xlane.f32.xlu0 %v1764
    %v1766 = vpop.xlane.xlu0 %1765
    %v1767 = vsel %vm51, %v1763, 0.0
    %1768 = vadd.xlane.f32.xlu0 %v1767
    %v1769 = vpop.xlane.xlu0 %1768
    %v1770 = vmul.f32 %v1766, %v1520
    %v1771 = vmul.f32 %v1769, %v1520
    %v1772 = vadd.f32 %v1770, 1e-05
    %v1773 = vadd.f32 %v1771, 1e-05
    %v1774 = vrsqrt.pop %v1772
    %v1775 = vrsqrt.pop %v1773
    %v1776 = vmul.f32 %v1760, %v1774
    %v1777 = vmul.f32 %v1761, %v1775
    %v1778 = vld [vmem:[%s10] sm:$0x1]
    %v1780 = vlaneseq
    %v1781 = vshrl.u32 %v1780, 7
    %v1782 = vsub.s32 0, %v1781
    %v1783 = vrot.slane %v1778, %v1782
    %v1785 = vmul.f32 %v1776, %v1783
    %v1786 = vmul.f32 %v1777, %v1783
    %v1787 = vld [vmem:[%s11] sm:$0x1]
    %v1789 = vlaneseq
    %v1790 = vshrl.u32 %v1789, 7
    %v1791 = vsub.s32 0, %v1790
    %v1792 = vrot.slane %v1787, %v1791
    %v1794 = vadd.f32 %v1785, %v1792
    %v1795 = vadd.f32 %v1786, %v1792
    %v1796 = vld [vmem:[%s2] sm:$0x3]
    %v1797 = vlaneseq
    %v1798 = vshrl.u32 %v1797, 7
    %v1799 = vsub.s32 0, %v1798
    %v1800 = vrot.slane %v1796, %v1799
    %1802 = vbcast.lane.b32.xlu0 %v1800, 256
    %v1803 = vpop.permute.xlu0 %1802
    %v1804 = vlaneseq
    %v1805 = vshrl.u32 %v1804, 7
    %v1806 = vsub.s32 1, %v1805
    %v1807 = vrot.slane %v1796, %v1806
    %1809 = vbcast.lane.b32.xlu0 %v1807, 256
    %v1810 = vpop.permute.xlu0 %1809
    %vm1811 = vcmp.gt.f32.partialorder %v1803, 0.5
    %vm1812 = vcmp.gt.f32.partialorder %v1810, 0.5
    %v1813 = vsel %vm1811, 1, 0
    %v1814 = vsel %vm1812, 1, 0
    %vm1815 = vcmp.eq.s32.totalorder %v1813, 1
    %vm1816 = vcmp.eq.s32.totalorder %v1814, 1
    %v1817 = vsel %vm1815, %v45, %v1794
    %v1818 = vsel %vm1816, %v46, %v1795
    %1819 = vst.msk [vmem:[#allocation3] sm:$0xff] %vm51, %v1817
    %1820 = vst.msk [vmem:[#allocation3 + $0x8] sm:$0xff] %vm51, %v1818
    // Predicated region
    $region50: #{tpu_custom_call.1} parent=1 // pred_check
      _
    $region51: #{tpu_custom_call.1} parent=1 // pred_check_branch
      %1822 = sbr.rel (0) target = $region53
    $region52: #{tpu_custom_call.1} parent=1 // pred_region
      %s1824 = ssub.s32 256, 256
      %1825 = vsyncadd [#allocation4], %s1824
      %s1826 = sshll.u32 [#allocation3], 4
      %s1827 = int_to_ptr.vmem [resolvable:$true] %s1826
      %1832 = dma.vmem_to_hbm [thread:$0]  %s1827, 256, %s12, [#allocation4], 128, 128, 8
    $region53: #{tpu_custom_call.1} parent=1 // pred_fallthru
      _
    // Predicated region
    $region54: #{tpu_custom_call.1} parent=1 // pred_check
      _
    $region55: #{tpu_custom_call.1} parent=1 // pred_check_branch
      %1834 = sbr.rel (0) target = $region57
    $region56: #{tpu_custom_call.1} parent=1 // pred_region
      %1835 = dma.done [#allocation4], 256
    $region57: #{tpu_custom_call.1} parent=1 // pred_fallthru
      _
    %1836 = vsyncpa [#allocation4], 1

</llo_original>
